<compile_context>
chip_gen: v7x
topology: tpu7x:2x2x1
jax: 0.10.0
libtpu: 0.0.40
codegen_flags: <defaults>
</compile_context>

<pallas_src>
import math

import jax
import jax.numpy as jnp
from jax.experimental import pallas as pl
from jax.experimental.pallas import tpu as pltpu


# ----------------------------------------------------------------------------- kernel
def crf_loss_kernel(emit_ref,     # (S, L, Bt)   f32 — time-major emissions, batch on lanes
                    mask_ref,     # (S, Bt)      f32
                    labels_ref,   # (S, Bt)      i32
                    params_ref,   # (L*L, L+3)   f32 — packed CRF parameters
                    out_ref):     # (1, Bt)      f32 — per-row log-likelihood
    S, L, B_t = emit_ref.shape
    LL = L * L

    # ---- unpack parameters (single small tile, loaded once) ----
    p = params_ref[...]                                        # (LL, L+3)
    trans_flat = p[:, 0:1]                                     # (LL, 1)  trans[prev*L + cur]
    start = p[0:L, 1:2]                                        # (L, 1)
    end = p[0:L, 2:3]                                          # (L, 1)
    trans_t = p[0:L, 3:3 + L]                                  # (L, L)   == transitions.T
    exp_trans_t = jnp.exp(trans_t)                             # for scaled-exp recursion

    emit_all = emit_ref[...]                                   # (S, L, Bt)
    mask = mask_ref[...]                                       # (S, Bt)
    lab = labels_ref[...]                                      # (S, Bt)

    # =======================================================================
    # Forward recursion (log-denominator) — the only sequential part.
    # Carry is just alpha (L, Bt); mask gates padded timesteps.
    # =======================================================================
    alpha0 = start + emit_all[0]                               # (L, Bt)

    def body(i, alpha):
        m = jnp.max(alpha, axis=0, keepdims=True)              # (1, Bt)
        s = jnp.dot(exp_trans_t, jnp.exp(alpha - m),
                    preferred_element_type=jnp.float32)        # (L, Bt)  MXU
        new_alpha = jnp.log(s) + m + emit_ref[i]               # (L, Bt)
        m_i = mask_ref[pl.ds(i, 1), :]                         # (1, Bt)
        return jnp.where(m_i > 0.0, new_alpha, alpha)

    alpha = jax.lax.fori_loop(1, S, body, alpha0, unroll=True)

    av = alpha + end                                           # (L, Bt)
    mx = jnp.max(av, axis=0, keepdims=True)                    # (1, Bt)
    log_den = mx + jnp.log(jnp.sum(jnp.exp(av - mx), axis=0, keepdims=True))

    # =======================================================================
    # Gold-path score (numerator) — no sequential dependence, fully vectorized.
    # =======================================================================
    iota_l = jax.lax.broadcasted_iota(jnp.int32, (S, L, B_t), 1)
    oh_all = (lab[:, None, :] == iota_l).astype(jnp.float32)   # (S, L, Bt)

    # emissions at the gold tags, gated by mask  (covers the last-position term
    # of the AllenNLP formula exactly, since mask is left-aligned)
    e_gather = jnp.sum(emit_all * oh_all, axis=1)              # (S, Bt)
    score = jnp.sum(e_gather * mask, axis=0, keepdims=True)    # (1, Bt)

    # start transition for the tag at t = 0
    score = score + jnp.sum(oh_all[0] * start, axis=0, keepdims=True)

    # pairwise transitions trans[tag_{i-1}, tag_i], gated by mask[i]
    if S > 1:
        pair = lab[:-1] * L + lab[1:]                          # (S-1, Bt) flat index
        iota_ll = jax.lax.broadcasted_iota(jnp.int32, (S - 1, LL, B_t), 1)
        oh_pair = (pair[:, None, :] == iota_ll).astype(jnp.float32)   # (S-1, LL, Bt)
        t_gather = jnp.sum(oh_pair * trans_flat[None, :, :], axis=1)  # (S-1, Bt)
        score = score + jnp.sum(t_gather * mask[1:], axis=0, keepdims=True)

    # end transition at the last valid tag (mask assumed left-aligned)
    lengths = jnp.sum(mask, axis=0, keepdims=True)             # (1, Bt)
    last_idx = lengths.astype(jnp.int32) - 1                   # (1, Bt)
    pos = jax.lax.broadcasted_iota(jnp.int32, (S, B_t), 0)
    sel = (pos == last_idx).astype(jnp.float32)                # (S, Bt)
    last_oh = jnp.sum(oh_all * sel[:, None, :], axis=0)        # (L, Bt)
    score = score + jnp.sum(end * last_oh, axis=0, keepdims=True)

    # lane-dense per-row log-likelihood; negation + reduction in the wrapper
    out_ref[...] = score - log_den


# ----------------------------------------------------------------------------- wrapper
def crf_output_layer_loss(x, mask, labels, params, *, b_tile=None):
    """Forward pass of CRFOutputLayer with labels -> {'loss': scalar}."""
    B, S, D = x.shape
    L = params["w"].shape[0]
    LL = L * L

    # Linear classifier with XLA: L << D, so feeding emissions to the kernel is
    # cheaper than feeding x (and avoids a full-x transpose / bf16 rounding).
    logits = (x @ params["w"].T + params["b"]).astype(jnp.float32)      # (B, S, L)

    mask_f = mask.astype(jnp.float32)
    labels_i = labels.astype(jnp.int32)

    # Fill the 128-lane axis; pad the batch to a multiple of b_tile.
    if b_tile is None:
        b_tile = min(B, 128)
    b_tile = max(1, min(b_tile, 128))
    nt = -(-B // b_tile)                                                # cdiv
    B_pad = nt * b_tile
    if B_pad != B:
        pad = B_pad - B
        logits = jnp.pad(logits, ((0, pad), (0, 0), (0, 0)))
        mask_f = jnp.pad(mask_f, ((0, pad), (0, 0)))
        labels_i = jnp.pad(labels_i, ((0, pad), (0, 0)))

    # Time-major, batch-on-lanes tiles (only the L-wide emissions get transposed).
    emit_t = logits.reshape(nt, b_tile, S, L).transpose(0, 2, 3, 1)     # (nt, S, L, Bt)
    mask_t = mask_f.reshape(nt, b_tile, S).transpose(0, 2, 1)           # (nt, S, Bt)
    labels_t = labels_i.reshape(nt, b_tile, S).transpose(0, 2, 1)       # (nt, S, Bt)

    # Pack all CRF parameters into one (L*L, L+3) f32 tile:
    #   col 0             : transitions.reshape(-1)  (flat index prev*L + cur)
    #   col 1, rows 0..L-1: start_transitions
    #   col 2, rows 0..L-1: end_transitions
    #   cols 3..2+L, rows 0..L-1 : transitions.T
    trans = params["transitions"].astype(jnp.float32)
    packed = jnp.zeros((LL, L + 3), jnp.float32)
    packed = packed.at[:, 0].set(trans.reshape(-1))
    packed = packed.at[:L, 1].set(params["start_transitions"].astype(jnp.float32))
    packed = packed.at[:L, 2].set(params["end_transitions"].astype(jnp.float32))
    packed = packed.at[:L, 3:3 + L].set(trans.T)

    grid_spec = pltpu.PrefetchScalarGridSpec(
        num_scalar_prefetch=0,
        grid=(nt,),
        in_specs=[
            pl.BlockSpec((None, S, L, b_tile), lambda i: (i, 0, 0, 0)),  # emissions
            pl.BlockSpec((None, S, b_tile), lambda i: (i, 0, 0)),        # mask
            pl.BlockSpec((None, S, b_tile), lambda i: (i, 0, 0)),        # labels
            pl.BlockSpec((LL, L + 3), lambda i: (0, 0)),                 # packed params
        ],
        out_specs=pl.BlockSpec((None, 1, b_tile), lambda i: (i, 0, 0)),
    )

    partial = pl.pallas_call(
        crf_loss_kernel,
        out_shape=jax.ShapeDtypeStruct((nt, 1, b_tile), jnp.float32),
        grid_spec=grid_spec,
        compiler_params=pltpu.CompilerParams(
            dimension_semantics=("parallel",),
            vmem_limit_bytes=32 * 1024 * 1024),
    )(emit_t, mask_t, labels_t, packed)

    # Mask out padded batch rows, sum, negate.
    valid = (jnp.arange(B_pad) < B).astype(jnp.float32)
    loglik = partial.reshape(B_pad) * valid
    return {"loss": -jnp.sum(loglik)}


# ----------------------------------------------------------------------------- pure-JAX reference
def ref_loss(x, mask, labels, params):
    w, b = params["w"], params["b"]
    trans = params["transitions"]
    start, end = params["start_transitions"], params["end_transitions"]
    B, S, D = x.shape
    mask = mask.astype(jnp.float32)
    logits = x @ w.T + b

    # denominator
    alpha = start[None, :] + logits[:, 0]
    for i in range(1, S):
        inner = alpha[:, :, None] + logits[:, i][:, None, :] + trans[None]
        new_alpha = jax.scipy.special.logsumexp(inner, axis=1)
        alpha = new_alpha * mask[:, i:i + 1] + alpha * (1.0 - mask[:, i:i + 1])
    log_den = jax.scipy.special.logsumexp(alpha + end[None, :], axis=1)

    # numerator
    score = start[labels[:, 0]]
    for i in range(S - 1):
        cur, nxt = labels[:, i], labels[:, i + 1]
        t_score = trans[cur, nxt]
        e_score = jnp.take_along_axis(logits[:, i], cur[:, None], axis=1)[:, 0]
        score = score + t_score * mask[:, i + 1] + e_score * mask[:, i]
    last_idx = mask.sum(1).astype(jnp.int32) - 1
    last_tags = jnp.take_along_axis(labels, last_idx[:, None], axis=1)[:, 0]
    score = score + end[last_tags]
    last_in = jnp.take_along_axis(logits[:, S - 1], last_tags[:, None], axis=1)[:, 0]
    score = score + last_in * mask[:, S - 1]

    return -jnp.sum(score - log_den)


# ----------------------------------------------------------------------------- main
if __name__ == "__main__":
    B, S, D, L = 32, 16, 32, 5

    key = jax.random.PRNGKey(0)
    kx, kl, klen, kw, kb, kt, ks, ke = jax.random.split(key, 8)

    x = jax.random.normal(kx, (B, S, D), dtype=jnp.float32)
    lengths = jax.random.randint(klen, (B,), 1, S + 1, dtype=jnp.int32)
    lengths = lengths.at[0].set(S)                       # at least one full-length row
    mask = (jnp.arange(S)[None, :] < lengths[:, None]).astype(jnp.float32)
    labels = jax.random.randint(kl, (B, S), 0, L, dtype=jnp.int32)

    bound = 1.0 / math.sqrt(D)
    params = {
        "w": jax.random.uniform(kw, (L, D), minval=-bound, maxval=bound,
                                dtype=jnp.float32),
        "b": jax.random.uniform(kb, (L,), minval=-bound, maxval=bound,
                                dtype=jnp.float32),
        "transitions": 0.1 * jax.random.normal(kt, (L, L), dtype=jnp.float32),
        "start_transitions": 0.1 * jax.random.normal(ks, (L,), dtype=jnp.float32),
        "end_transitions": 0.1 * jax.random.normal(ke, (L,), dtype=jnp.float32),
    }

    outputs = crf_output_layer_loss(x, mask, labels, params)
    loss = jax.block_until_ready(outputs["loss"])

    ref = jax.block_until_ready(ref_loss(x, mask, labels, params))
    assert jnp.allclose(loss, ref, rtol=1e-2, atol=0.5), (loss, ref)

    print("KERNEL_OK")
</pallas_src>

<mosaic_0001>
module attributes {stable_mosaic.version = 11 : i64} {
  func.func @crf_loss_kernel(%arg0: i32, %arg1: memref<1x16x5x32xf32, #tpu.memory_space<vmem>>, %arg2: memref<1x16x32xf32, #tpu.memory_space<vmem>>, %arg3: memref<1x16x32xi32, #tpu.memory_space<vmem>>, %arg4: memref<25x8xf32, #tpu.memory_space<vmem>>, %arg5: memref<1x1x32xf32, #tpu.memory_space<vmem>>) attributes {dimension_semantics = [#tpu.dimension_semantics<parallel>], iteration_bounds = array<i64: 1>, scalar_prefetch = 0 : i64, scratch_operands = 0 : i64, tpu.core_type = #tpu.core_type<tc>, window_params = [{transform_indices = @transform_0, window_bounds = array<i64: 1, 16, 5, 32>}, {transform_indices = @transform_1, window_bounds = array<i64: 1, 16, 32>}, {transform_indices = @transform_2, window_bounds = array<i64: 1, 16, 32>}, {pipeline_mode = #tpu.pipeline_mode<synchronous>, transform_indices = @transform_3, window_bounds = array<i64: 25, 8>}, {transform_indices = @transform_4, window_bounds = array<i64: 1, 1, 32>}]} {
    %c0 = arith.constant 0 : index
    %c0_0 = arith.constant 0 : index
    %0 = vector.load %arg4[%c0, %c0_0] : memref<25x8xf32, #tpu.memory_space<vmem>>, vector<25x8xf32>
    %1 = vector.extract_strided_slice %0 {offsets = [0, 0], sizes = [25, 1], strides = [1, 1]} : vector<25x8xf32> to vector<25x1xf32>
    %2 = vector.extract_strided_slice %0 {offsets = [0, 1], sizes = [5, 1], strides = [1, 1]} : vector<25x8xf32> to vector<5x1xf32>
    %3 = vector.extract_strided_slice %0 {offsets = [0, 2], sizes = [5, 1], strides = [1, 1]} : vector<25x8xf32> to vector<5x1xf32>
    %4 = vector.extract_strided_slice %0 {offsets = [0, 3], sizes = [5, 5], strides = [1, 1]} : vector<25x8xf32> to vector<5x5xf32>
    %5 = math.exp %4 : vector<5x5xf32>
    %c0_1 = arith.constant 0 : index
    %c0_2 = arith.constant 0 : index
    %c0_3 = arith.constant 0 : index
    %c0_4 = arith.constant 0 : index
    %6 = vector.load %arg1[%c0_1, %c0_2, %c0_3, %c0_4] : memref<1x16x5x32xf32, #tpu.memory_space<vmem>>, vector<1x16x5x32xf32>
    %7 = vector.shape_cast %6 : vector<1x16x5x32xf32> to vector<16x5x32xf32>
    %c0_5 = arith.constant 0 : index
    %c0_6 = arith.constant 0 : index
    %c0_7 = arith.constant 0 : index
    %8 = vector.load %arg2[%c0_5, %c0_6, %c0_7] : memref<1x16x32xf32, #tpu.memory_space<vmem>>, vector<1x16x32xf32>
    %9 = vector.shape_cast %8 : vector<1x16x32xf32> to vector<16x32xf32>
    %c0_8 = arith.constant 0 : index
    %c0_9 = arith.constant 0 : index
    %c0_10 = arith.constant 0 : index
    %10 = vector.load %arg3[%c0_8, %c0_9, %c0_10] : memref<1x16x32xi32, #tpu.memory_space<vmem>>, vector<1x16x32xi32>
    %11 = vector.shape_cast %10 : vector<1x16x32xi32> to vector<16x32xi32>
    %12 = vector.extract_strided_slice %7 {offsets = [0, 0, 0], sizes = [1, 5, 32], strides = [1, 1, 1]} : vector<16x5x32xf32> to vector<1x5x32xf32>
    %13 = vector.shape_cast %12 : vector<1x5x32xf32> to vector<5x32xf32>
    %14 = vector.broadcast %2 : vector<5x1xf32> to vector<5x32xf32>
    %15 = arith.addf %14, %13 : vector<5x32xf32>
    %c1_i32 = arith.constant 1 : i32
    %cst = arith.constant dense<0xFF800000> : vector<32xf32>
    %16 = vector.multi_reduction <maximumf>, %15, %cst [0] : vector<5x32xf32> to vector<32xf32>
    %17 = vector.shape_cast %16 : vector<32xf32> to vector<1x32xf32>
    %18 = vector.broadcast %17 : vector<1x32xf32> to vector<5x32xf32>
    %19 = arith.subf %15, %18 : vector<5x32xf32>
    %20 = math.exp %19 : vector<5x32xf32>
    %cst_11 = arith.constant dense<0.000000e+00> : vector<5x32xf32>
    %21 = tpu.matmul %5, %20, %cst_11 {dimension_numbers = #tpu.dot_dimension_numbers<[1], [0], [0], [1], [0, 0, 1, 1], [], []>} : vector<5x5xf32>, vector<5x32xf32>, vector<5x32xf32> -> vector<5x32xf32>
    %22 = math.log %21 : vector<5x32xf32>
    %23 = vector.broadcast %17 : vector<1x32xf32> to vector<5x32xf32>
    %24 = arith.addf %22, %23 : vector<5x32xf32>
    %c0_12 = arith.constant 0 : index
    %25 = arith.index_cast %c1_i32 : i32 to index
    %c0_13 = arith.constant 0 : index
    %c0_14 = arith.constant 0 : index
    %26 = vector.load %arg1[%c0_12, %25, %c0_13, %c0_14] : memref<1x16x5x32xf32, #tpu.memory_space<vmem>>, vector<1x1x5x32xf32>
    %27 = vector.shape_cast %26 : vector<1x1x5x32xf32> to vector<5x32xf32>
    %28 = arith.addf %24, %27 : vector<5x32xf32>
    %c0_15 = arith.constant 0 : index
    %29 = arith.index_cast %c1_i32 : i32 to index
    %c0_16 = arith.constant 0 : index
    %30 = vector.load %arg2[%c0_15, %29, %c0_16] : memref<1x16x32xf32, #tpu.memory_space<vmem>>, vector<1x1x32xf32>
    %31 = vector.shape_cast %30 : vector<1x1x32xf32> to vector<1x32xf32>
    %cst_17 = arith.constant 0.000000e+00 : f32
    %32 = vector.broadcast %cst_17 : f32 to vector<1x32xf32>
    %33 = arith.cmpf ogt, %31, %32 : vector<1x32xf32>
    %34 = vector.shape_cast %33 : vector<1x32xi1> to vector<1x32xi1>
    %35 = vector.broadcast %34 : vector<1x32xi1> to vector<5x32xi1>
    %36 = arith.select %35, %28, %15 : vector<5x32xi1>, vector<5x32xf32>
    %c2_i32 = arith.constant 2 : i32
    %cst_18 = arith.constant dense<0xFF800000> : vector<32xf32>
    %37 = vector.multi_reduction <maximumf>, %36, %cst_18 [0] : vector<5x32xf32> to vector<32xf32>
    %38 = vector.shape_cast %37 : vector<32xf32> to vector<1x32xf32>
    %39 = vector.broadcast %38 : vector<1x32xf32> to vector<5x32xf32>
    %40 = arith.subf %36, %39 : vector<5x32xf32>
    %41 = math.exp %40 : vector<5x32xf32>
    %cst_19 = arith.constant dense<0.000000e+00> : vector<5x32xf32>
    %42 = tpu.matmul %5, %41, %cst_19 {dimension_numbers = #tpu.dot_dimension_numbers<[1], [0], [0], [1], [0, 0, 1, 1], [], []>} : vector<5x5xf32>, vector<5x32xf32>, vector<5x32xf32> -> vector<5x32xf32>
    %43 = math.log %42 : vector<5x32xf32>
    %44 = vector.broadcast %38 : vector<1x32xf32> to vector<5x32xf32>
    %45 = arith.addf %43, %44 : vector<5x32xf32>
    %c0_20 = arith.constant 0 : index
    %46 = arith.index_cast %c2_i32 : i32 to index
    %c0_21 = arith.constant 0 : index
    %c0_22 = arith.constant 0 : index
    %47 = vector.load %arg1[%c0_20, %46, %c0_21, %c0_22] : memref<1x16x5x32xf32, #tpu.memory_space<vmem>>, vector<1x1x5x32xf32>
    %48 = vector.shape_cast %47 : vector<1x1x5x32xf32> to vector<5x32xf32>
    %49 = arith.addf %45, %48 : vector<5x32xf32>
    %c0_23 = arith.constant 0 : index
    %50 = arith.index_cast %c2_i32 : i32 to index
    %c0_24 = arith.constant 0 : index
    %51 = vector.load %arg2[%c0_23, %50, %c0_24] : memref<1x16x32xf32, #tpu.memory_space<vmem>>, vector<1x1x32xf32>
    %52 = vector.shape_cast %51 : vector<1x1x32xf32> to vector<1x32xf32>
    %cst_25 = arith.constant 0.000000e+00 : f32
    %53 = vector.broadcast %cst_25 : f32 to vector<1x32xf32>
    %54 = arith.cmpf ogt, %52, %53 : vector<1x32xf32>
    %55 = vector.shape_cast %54 : vector<1x32xi1> to vector<1x32xi1>
    %56 = vector.broadcast %55 : vector<1x32xi1> to vector<5x32xi1>
    %57 = arith.select %56, %49, %36 : vector<5x32xi1>, vector<5x32xf32>
    %c3_i32 = arith.constant 3 : i32
    %cst_26 = arith.constant dense<0xFF800000> : vector<32xf32>
    %58 = vector.multi_reduction <maximumf>, %57, %cst_26 [0] : vector<5x32xf32> to vector<32xf32>
    %59 = vector.shape_cast %58 : vector<32xf32> to vector<1x32xf32>
    %60 = vector.broadcast %59 : vector<1x32xf32> to vector<5x32xf32>
    %61 = arith.subf %57, %60 : vector<5x32xf32>
    %62 = math.exp %61 : vector<5x32xf32>
    %cst_27 = arith.constant dense<0.000000e+00> : vector<5x32xf32>
    %63 = tpu.matmul %5, %62, %cst_27 {dimension_numbers = #tpu.dot_dimension_numbers<[1], [0], [0], [1], [0, 0, 1, 1], [], []>} : vector<5x5xf32>, vector<5x32xf32>, vector<5x32xf32> -> vector<5x32xf32>
    %64 = math.log %63 : vector<5x32xf32>
    %65 = vector.broadcast %59 : vector<1x32xf32> to vector<5x32xf32>
    %66 = arith.addf %64, %65 : vector<5x32xf32>
    %c0_28 = arith.constant 0 : index
    %67 = arith.index_cast %c3_i32 : i32 to index
    %c0_29 = arith.constant 0 : index
    %c0_30 = arith.constant 0 : index
    %68 = vector.load %arg1[%c0_28, %67, %c0_29, %c0_30] : memref<1x16x5x32xf32, #tpu.memory_space<vmem>>, vector<1x1x5x32xf32>
    %69 = vector.shape_cast %68 : vector<1x1x5x32xf32> to vector<5x32xf32>
    %70 = arith.addf %66, %69 : vector<5x32xf32>
    %c0_31 = arith.constant 0 : index
    %71 = arith.index_cast %c3_i32 : i32 to index
    %c0_32 = arith.constant 0 : index
    %72 = vector.load %arg2[%c0_31, %71, %c0_32] : memref<1x16x32xf32, #tpu.memory_space<vmem>>, vector<1x1x32xf32>
    %73 = vector.shape_cast %72 : vector<1x1x32xf32> to vector<1x32xf32>
    %cst_33 = arith.constant 0.000000e+00 : f32
    %74 = vector.broadcast %cst_33 : f32 to vector<1x32xf32>
    %75 = arith.cmpf ogt, %73, %74 : vector<1x32xf32>
    %76 = vector.shape_cast %75 : vector<1x32xi1> to vector<1x32xi1>
    %77 = vector.broadcast %76 : vector<1x32xi1> to vector<5x32xi1>
    %78 = arith.select %77, %70, %57 : vector<5x32xi1>, vector<5x32xf32>
    %c4_i32 = arith.constant 4 : i32
    %cst_34 = arith.constant dense<0xFF800000> : vector<32xf32>
    %79 = vector.multi_reduction <maximumf>, %78, %cst_34 [0] : vector<5x32xf32> to vector<32xf32>
    %80 = vector.shape_cast %79 : vector<32xf32> to vector<1x32xf32>
    %81 = vector.broadcast %80 : vector<1x32xf32> to vector<5x32xf32>
    %82 = arith.subf %78, %81 : vector<5x32xf32>
    %83 = math.exp %82 : vector<5x32xf32>
    %cst_35 = arith.constant dense<0.000000e+00> : vector<5x32xf32>
    %84 = tpu.matmul %5, %83, %cst_35 {dimension_numbers = #tpu.dot_dimension_numbers<[1], [0], [0], [1], [0, 0, 1, 1], [], []>} : vector<5x5xf32>, vector<5x32xf32>, vector<5x32xf32> -> vector<5x32xf32>
    %85 = math.log %84 : vector<5x32xf32>
    %86 = vector.broadcast %80 : vector<1x32xf32> to vector<5x32xf32>
    %87 = arith.addf %85, %86 : vector<5x32xf32>
    %c0_36 = arith.constant 0 : index
    %88 = arith.index_cast %c4_i32 : i32 to index
    %c0_37 = arith.constant 0 : index
    %c0_38 = arith.constant 0 : index
    %89 = vector.load %arg1[%c0_36, %88, %c0_37, %c0_38] : memref<1x16x5x32xf32, #tpu.memory_space<vmem>>, vector<1x1x5x32xf32>
    %90 = vector.shape_cast %89 : vector<1x1x5x32xf32> to vector<5x32xf32>
    %91 = arith.addf %87, %90 : vector<5x32xf32>
    %c0_39 = arith.constant 0 : index
    %92 = arith.index_cast %c4_i32 : i32 to index
    %c0_40 = arith.constant 0 : index
    %93 = vector.load %arg2[%c0_39, %92, %c0_40] : memref<1x16x32xf32, #tpu.memory_space<vmem>>, vector<1x1x32xf32>
    %94 = vector.shape_cast %93 : vector<1x1x32xf32> to vector<1x32xf32>
    %cst_41 = arith.constant 0.000000e+00 : f32
    %95 = vector.broadcast %cst_41 : f32 to vector<1x32xf32>
    %96 = arith.cmpf ogt, %94, %95 : vector<1x32xf32>
    %97 = vector.shape_cast %96 : vector<1x32xi1> to vector<1x32xi1>
    %98 = vector.broadcast %97 : vector<1x32xi1> to vector<5x32xi1>
    %99 = arith.select %98, %91, %78 : vector<5x32xi1>, vector<5x32xf32>
    %c5_i32 = arith.constant 5 : i32
    %cst_42 = arith.constant dense<0xFF800000> : vector<32xf32>
    %100 = vector.multi_reduction <maximumf>, %99, %cst_42 [0] : vector<5x32xf32> to vector<32xf32>
    %101 = vector.shape_cast %100 : vector<32xf32> to vector<1x32xf32>
    %102 = vector.broadcast %101 : vector<1x32xf32> to vector<5x32xf32>
    %103 = arith.subf %99, %102 : vector<5x32xf32>
    %104 = math.exp %103 : vector<5x32xf32>
    %cst_43 = arith.constant dense<0.000000e+00> : vector<5x32xf32>
    %105 = tpu.matmul %5, %104, %cst_43 {dimension_numbers = #tpu.dot_dimension_numbers<[1], [0], [0], [1], [0, 0, 1, 1], [], []>} : vector<5x5xf32>, vector<5x32xf32>, vector<5x32xf32> -> vector<5x32xf32>
    %106 = math.log %105 : vector<5x32xf32>
    %107 = vector.broadcast %101 : vector<1x32xf32> to vector<5x32xf32>
    %108 = arith.addf %106, %107 : vector<5x32xf32>
    %c0_44 = arith.constant 0 : index
    %109 = arith.index_cast %c5_i32 : i32 to index
    %c0_45 = arith.constant 0 : index
    %c0_46 = arith.constant 0 : index
    %110 = vector.load %arg1[%c0_44, %109, %c0_45, %c0_46] : memref<1x16x5x32xf32, #tpu.memory_space<vmem>>, vector<1x1x5x32xf32>
    %111 = vector.shape_cast %110 : vector<1x1x5x32xf32> to vector<5x32xf32>
    %112 = arith.addf %108, %111 : vector<5x32xf32>
    %c0_47 = arith.constant 0 : index
    %113 = arith.index_cast %c5_i32 : i32 to index
    %c0_48 = arith.constant 0 : index
    %114 = vector.load %arg2[%c0_47, %113, %c0_48] : memref<1x16x32xf32, #tpu.memory_space<vmem>>, vector<1x1x32xf32>
    %115 = vector.shape_cast %114 : vector<1x1x32xf32> to vector<1x32xf32>
    %cst_49 = arith.constant 0.000000e+00 : f32
    %116 = vector.broadcast %cst_49 : f32 to vector<1x32xf32>
    %117 = arith.cmpf ogt, %115, %116 : vector<1x32xf32>
    %118 = vector.shape_cast %117 : vector<1x32xi1> to vector<1x32xi1>
    %119 = vector.broadcast %118 : vector<1x32xi1> to vector<5x32xi1>
    %120 = arith.select %119, %112, %99 : vector<5x32xi1>, vector<5x32xf32>
    %c6_i32 = arith.constant 6 : i32
    %cst_50 = arith.constant dense<0xFF800000> : vector<32xf32>
    %121 = vector.multi_reduction <maximumf>, %120, %cst_50 [0] : vector<5x32xf32> to vector<32xf32>
    %122 = vector.shape_cast %121 : vector<32xf32> to vector<1x32xf32>
    %123 = vector.broadcast %122 : vector<1x32xf32> to vector<5x32xf32>
    %124 = arith.subf %120, %123 : vector<5x32xf32>
    %125 = math.exp %124 : vector<5x32xf32>
    %cst_51 = arith.constant dense<0.000000e+00> : vector<5x32xf32>
    %126 = tpu.matmul %5, %125, %cst_51 {dimension_numbers = #tpu.dot_dimension_numbers<[1], [0], [0], [1], [0, 0, 1, 1], [], []>} : vector<5x5xf32>, vector<5x32xf32>, vector<5x32xf32> -> vector<5x32xf32>
    %127 = math.log %126 : vector<5x32xf32>
    %128 = vector.broadcast %122 : vector<1x32xf32> to vector<5x32xf32>
    %129 = arith.addf %127, %128 : vector<5x32xf32>
    %c0_52 = arith.constant 0 : index
    %130 = arith.index_cast %c6_i32 : i32 to index
    %c0_53 = arith.constant 0 : index
    %c0_54 = arith.constant 0 : index
    %131 = vector.load %arg1[%c0_52, %130, %c0_53, %c0_54] : memref<1x16x5x32xf32, #tpu.memory_space<vmem>>, vector<1x1x5x32xf32>
    %132 = vector.shape_cast %131 : vector<1x1x5x32xf32> to vector<5x32xf32>
    %133 = arith.addf %129, %132 : vector<5x32xf32>
    %c0_55 = arith.constant 0 : index
    %134 = arith.index_cast %c6_i32 : i32 to index
    %c0_56 = arith.constant 0 : index
    %135 = vector.load %arg2[%c0_55, %134, %c0_56] : memref<1x16x32xf32, #tpu.memory_space<vmem>>, vector<1x1x32xf32>
    %136 = vector.shape_cast %135 : vector<1x1x32xf32> to vector<1x32xf32>
    %cst_57 = arith.constant 0.000000e+00 : f32
    %137 = vector.broadcast %cst_57 : f32 to vector<1x32xf32>
    %138 = arith.cmpf ogt, %136, %137 : vector<1x32xf32>
    %139 = vector.shape_cast %138 : vector<1x32xi1> to vector<1x32xi1>
    %140 = vector.broadcast %139 : vector<1x32xi1> to vector<5x32xi1>
    %141 = arith.select %140, %133, %120 : vector<5x32xi1>, vector<5x32xf32>
    %c7_i32 = arith.constant 7 : i32
    %cst_58 = arith.constant dense<0xFF800000> : vector<32xf32>
    %142 = vector.multi_reduction <maximumf>, %141, %cst_58 [0] : vector<5x32xf32> to vector<32xf32>
    %143 = vector.shape_cast %142 : vector<32xf32> to vector<1x32xf32>
    %144 = vector.broadcast %143 : vector<1x32xf32> to vector<5x32xf32>
    %145 = arith.subf %141, %144 : vector<5x32xf32>
    %146 = math.exp %145 : vector<5x32xf32>
    %cst_59 = arith.constant dense<0.000000e+00> : vector<5x32xf32>
    %147 = tpu.matmul %5, %146, %cst_59 {dimension_numbers = #tpu.dot_dimension_numbers<[1], [0], [0], [1], [0, 0, 1, 1], [], []>} : vector<5x5xf32>, vector<5x32xf32>, vector<5x32xf32> -> vector<5x32xf32>
    %148 = math.log %147 : vector<5x32xf32>
    %149 = vector.broadcast %143 : vector<1x32xf32> to vector<5x32xf32>
    %150 = arith.addf %148, %149 : vector<5x32xf32>
    %c0_60 = arith.constant 0 : index
    %151 = arith.index_cast %c7_i32 : i32 to index
    %c0_61 = arith.constant 0 : index
    %c0_62 = arith.constant 0 : index
    %152 = vector.load %arg1[%c0_60, %151, %c0_61, %c0_62] : memref<1x16x5x32xf32, #tpu.memory_space<vmem>>, vector<1x1x5x32xf32>
    %153 = vector.shape_cast %152 : vector<1x1x5x32xf32> to vector<5x32xf32>
    %154 = arith.addf %150, %153 : vector<5x32xf32>
    %c0_63 = arith.constant 0 : index
    %155 = arith.index_cast %c7_i32 : i32 to index
    %c0_64 = arith.constant 0 : index
    %156 = vector.load %arg2[%c0_63, %155, %c0_64] : memref<1x16x32xf32, #tpu.memory_space<vmem>>, vector<1x1x32xf32>
    %157 = vector.shape_cast %156 : vector<1x1x32xf32> to vector<1x32xf32>
    %cst_65 = arith.constant 0.000000e+00 : f32
    %158 = vector.broadcast %cst_65 : f32 to vector<1x32xf32>
    %159 = arith.cmpf ogt, %157, %158 : vector<1x32xf32>
    %160 = vector.shape_cast %159 : vector<1x32xi1> to vector<1x32xi1>
    %161 = vector.broadcast %160 : vector<1x32xi1> to vector<5x32xi1>
    %162 = arith.select %161, %154, %141 : vector<5x32xi1>, vector<5x32xf32>
    %c8_i32 = arith.constant 8 : i32
    %cst_66 = arith.constant dense<0xFF800000> : vector<32xf32>
    %163 = vector.multi_reduction <maximumf>, %162, %cst_66 [0] : vector<5x32xf32> to vector<32xf32>
    %164 = vector.shape_cast %163 : vector<32xf32> to vector<1x32xf32>
    %165 = vector.broadcast %164 : vector<1x32xf32> to vector<5x32xf32>
    %166 = arith.subf %162, %165 : vector<5x32xf32>
    %167 = math.exp %166 : vector<5x32xf32>
    %cst_67 = arith.constant dense<0.000000e+00> : vector<5x32xf32>
    %168 = tpu.matmul %5, %167, %cst_67 {dimension_numbers = #tpu.dot_dimension_numbers<[1], [0], [0], [1], [0, 0, 1, 1], [], []>} : vector<5x5xf32>, vector<5x32xf32>, vector<5x32xf32> -> vector<5x32xf32>
    %169 = math.log %168 : vector<5x32xf32>
    %170 = vector.broadcast %164 : vector<1x32xf32> to vector<5x32xf32>
    %171 = arith.addf %169, %170 : vector<5x32xf32>
    %c0_68 = arith.constant 0 : index
    %172 = arith.index_cast %c8_i32 : i32 to index
    %c0_69 = arith.constant 0 : index
    %c0_70 = arith.constant 0 : index
    %173 = vector.load %arg1[%c0_68, %172, %c0_69, %c0_70] : memref<1x16x5x32xf32, #tpu.memory_space<vmem>>, vector<1x1x5x32xf32>
    %174 = vector.shape_cast %173 : vector<1x1x5x32xf32> to vector<5x32xf32>
    %175 = arith.addf %171, %174 : vector<5x32xf32>
    %c0_71 = arith.constant 0 : index
    %176 = arith.index_cast %c8_i32 : i32 to index
    %c0_72 = arith.constant 0 : index
    %177 = vector.load %arg2[%c0_71, %176, %c0_72] : memref<1x16x32xf32, #tpu.memory_space<vmem>>, vector<1x1x32xf32>
    %178 = vector.shape_cast %177 : vector<1x1x32xf32> to vector<1x32xf32>
    %cst_73 = arith.constant 0.000000e+00 : f32
    %179 = vector.broadcast %cst_73 : f32 to vector<1x32xf32>
    %180 = arith.cmpf ogt, %178, %179 : vector<1x32xf32>
    %181 = vector.shape_cast %180 : vector<1x32xi1> to vector<1x32xi1>
    %182 = vector.broadcast %181 : vector<1x32xi1> to vector<5x32xi1>
    %183 = arith.select %182, %175, %162 : vector<5x32xi1>, vector<5x32xf32>
    %c9_i32 = arith.constant 9 : i32
    %cst_74 = arith.constant dense<0xFF800000> : vector<32xf32>
    %184 = vector.multi_reduction <maximumf>, %183, %cst_74 [0] : vector<5x32xf32> to vector<32xf32>
    %185 = vector.shape_cast %184 : vector<32xf32> to vector<1x32xf32>
    %186 = vector.broadcast %185 : vector<1x32xf32> to vector<5x32xf32>
    %187 = arith.subf %183, %186 : vector<5x32xf32>
    %188 = math.exp %187 : vector<5x32xf32>
    %cst_75 = arith.constant dense<0.000000e+00> : vector<5x32xf32>
    %189 = tpu.matmul %5, %188, %cst_75 {dimension_numbers = #tpu.dot_dimension_numbers<[1], [0], [0], [1], [0, 0, 1, 1], [], []>} : vector<5x5xf32>, vector<5x32xf32>, vector<5x32xf32> -> vector<5x32xf32>
    %190 = math.log %189 : vector<5x32xf32>
    %191 = vector.broadcast %185 : vector<1x32xf32> to vector<5x32xf32>
    %192 = arith.addf %190, %191 : vector<5x32xf32>
    %c0_76 = arith.constant 0 : index
    %193 = arith.index_cast %c9_i32 : i32 to index
    %c0_77 = arith.constant 0 : index
    %c0_78 = arith.constant 0 : index
    %194 = vector.load %arg1[%c0_76, %193, %c0_77, %c0_78] : memref<1x16x5x32xf32, #tpu.memory_space<vmem>>, vector<1x1x5x32xf32>
    %195 = vector.shape_cast %194 : vector<1x1x5x32xf32> to vector<5x32xf32>
    %196 = arith.addf %192, %195 : vector<5x32xf32>
    %c0_79 = arith.constant 0 : index
    %197 = arith.index_cast %c9_i32 : i32 to index
    %c0_80 = arith.constant 0 : index
    %198 = vector.load %arg2[%c0_79, %197, %c0_80] : memref<1x16x32xf32, #tpu.memory_space<vmem>>, vector<1x1x32xf32>
    %199 = vector.shape_cast %198 : vector<1x1x32xf32> to vector<1x32xf32>
    %cst_81 = arith.constant 0.000000e+00 : f32
    %200 = vector.broadcast %cst_81 : f32 to vector<1x32xf32>
    %201 = arith.cmpf ogt, %199, %200 : vector<1x32xf32>
    %202 = vector.shape_cast %201 : vector<1x32xi1> to vector<1x32xi1>
    %203 = vector.broadcast %202 : vector<1x32xi1> to vector<5x32xi1>
    %204 = arith.select %203, %196, %183 : vector<5x32xi1>, vector<5x32xf32>
    %c10_i32 = arith.constant 10 : i32
    %cst_82 = arith.constant dense<0xFF800000> : vector<32xf32>
    %205 = vector.multi_reduction <maximumf>, %204, %cst_82 [0] : vector<5x32xf32> to vector<32xf32>
    %206 = vector.shape_cast %205 : vector<32xf32> to vector<1x32xf32>
    %207 = vector.broadcast %206 : vector<1x32xf32> to vector<5x32xf32>
    %208 = arith.subf %204, %207 : vector<5x32xf32>
    %209 = math.exp %208 : vector<5x32xf32>
    %cst_83 = arith.constant dense<0.000000e+00> : vector<5x32xf32>
    %210 = tpu.matmul %5, %209, %cst_83 {dimension_numbers = #tpu.dot_dimension_numbers<[1], [0], [0], [1], [0, 0, 1, 1], [], []>} : vector<5x5xf32>, vector<5x32xf32>, vector<5x32xf32> -> vector<5x32xf32>
    %211 = math.log %210 : vector<5x32xf32>
    %212 = vector.broadcast %206 : vector<1x32xf32> to vector<5x32xf32>
    %213 = arith.addf %211, %212 : vector<5x32xf32>
    %c0_84 = arith.constant 0 : index
    %214 = arith.index_cast %c10_i32 : i32 to index
    %c0_85 = arith.constant 0 : index
    %c0_86 = arith.constant 0 : index
    %215 = vector.load %arg1[%c0_84, %214, %c0_85, %c0_86] : memref<1x16x5x32xf32, #tpu.memory_space<vmem>>, vector<1x1x5x32xf32>
    %216 = vector.shape_cast %215 : vector<1x1x5x32xf32> to vector<5x32xf32>
    %217 = arith.addf %213, %216 : vector<5x32xf32>
    %c0_87 = arith.constant 0 : index
    %218 = arith.index_cast %c10_i32 : i32 to index
    %c0_88 = arith.constant 0 : index
    %219 = vector.load %arg2[%c0_87, %218, %c0_88] : memref<1x16x32xf32, #tpu.memory_space<vmem>>, vector<1x1x32xf32>
    %220 = vector.shape_cast %219 : vector<1x1x32xf32> to vector<1x32xf32>
    %cst_89 = arith.constant 0.000000e+00 : f32
    %221 = vector.broadcast %cst_89 : f32 to vector<1x32xf32>
    %222 = arith.cmpf ogt, %220, %221 : vector<1x32xf32>
    %223 = vector.shape_cast %222 : vector<1x32xi1> to vector<1x32xi1>
    %224 = vector.broadcast %223 : vector<1x32xi1> to vector<5x32xi1>
    %225 = arith.select %224, %217, %204 : vector<5x32xi1>, vector<5x32xf32>
    %c11_i32 = arith.constant 11 : i32
    %cst_90 = arith.constant dense<0xFF800000> : vector<32xf32>
    %226 = vector.multi_reduction <maximumf>, %225, %cst_90 [0] : vector<5x32xf32> to vector<32xf32>
    %227 = vector.shape_cast %226 : vector<32xf32> to vector<1x32xf32>
    %228 = vector.broadcast %227 : vector<1x32xf32> to vector<5x32xf32>
    %229 = arith.subf %225, %228 : vector<5x32xf32>
    %230 = math.exp %229 : vector<5x32xf32>
    %cst_91 = arith.constant dense<0.000000e+00> : vector<5x32xf32>
    %231 = tpu.matmul %5, %230, %cst_91 {dimension_numbers = #tpu.dot_dimension_numbers<[1], [0], [0], [1], [0, 0, 1, 1], [], []>} : vector<5x5xf32>, vector<5x32xf32>, vector<5x32xf32> -> vector<5x32xf32>
    %232 = math.log %231 : vector<5x32xf32>
    %233 = vector.broadcast %227 : vector<1x32xf32> to vector<5x32xf32>
    %234 = arith.addf %232, %233 : vector<5x32xf32>
    %c0_92 = arith.constant 0 : index
    %235 = arith.index_cast %c11_i32 : i32 to index
    %c0_93 = arith.constant 0 : index
    %c0_94 = arith.constant 0 : index
    %236 = vector.load %arg1[%c0_92, %235, %c0_93, %c0_94] : memref<1x16x5x32xf32, #tpu.memory_space<vmem>>, vector<1x1x5x32xf32>
    %237 = vector.shape_cast %236 : vector<1x1x5x32xf32> to vector<5x32xf32>
    %238 = arith.addf %234, %237 : vector<5x32xf32>
    %c0_95 = arith.constant 0 : index
    %239 = arith.index_cast %c11_i32 : i32 to index
    %c0_96 = arith.constant 0 : index
    %240 = vector.load %arg2[%c0_95, %239, %c0_96] : memref<1x16x32xf32, #tpu.memory_space<vmem>>, vector<1x1x32xf32>
    %241 = vector.shape_cast %240 : vector<1x1x32xf32> to vector<1x32xf32>
    %cst_97 = arith.constant 0.000000e+00 : f32
    %242 = vector.broadcast %cst_97 : f32 to vector<1x32xf32>
    %243 = arith.cmpf ogt, %241, %242 : vector<1x32xf32>
    %244 = vector.shape_cast %243 : vector<1x32xi1> to vector<1x32xi1>
    %245 = vector.broadcast %244 : vector<1x32xi1> to vector<5x32xi1>
    %246 = arith.select %245, %238, %225 : vector<5x32xi1>, vector<5x32xf32>
    %c12_i32 = arith.constant 12 : i32
    %cst_98 = arith.constant dense<0xFF800000> : vector<32xf32>
    %247 = vector.multi_reduction <maximumf>, %246, %cst_98 [0] : vector<5x32xf32> to vector<32xf32>
    %248 = vector.shape_cast %247 : vector<32xf32> to vector<1x32xf32>
    %249 = vector.broadcast %248 : vector<1x32xf32> to vector<5x32xf32>
    %250 = arith.subf %246, %249 : vector<5x32xf32>
    %251 = math.exp %250 : vector<5x32xf32>
    %cst_99 = arith.constant dense<0.000000e+00> : vector<5x32xf32>
    %252 = tpu.matmul %5, %251, %cst_99 {dimension_numbers = #tpu.dot_dimension_numbers<[1], [0], [0], [1], [0, 0, 1, 1], [], []>} : vector<5x5xf32>, vector<5x32xf32>, vector<5x32xf32> -> vector<5x32xf32>
    %253 = math.log %252 : vector<5x32xf32>
    %254 = vector.broadcast %248 : vector<1x32xf32> to vector<5x32xf32>
    %255 = arith.addf %253, %254 : vector<5x32xf32>
    %c0_100 = arith.constant 0 : index
    %256 = arith.index_cast %c12_i32 : i32 to index
    %c0_101 = arith.constant 0 : index
    %c0_102 = arith.constant 0 : index
    %257 = vector.load %arg1[%c0_100, %256, %c0_101, %c0_102] : memref<1x16x5x32xf32, #tpu.memory_space<vmem>>, vector<1x1x5x32xf32>
    %258 = vector.shape_cast %257 : vector<1x1x5x32xf32> to vector<5x32xf32>
    %259 = arith.addf %255, %258 : vector<5x32xf32>
    %c0_103 = arith.constant 0 : index
    %260 = arith.index_cast %c12_i32 : i32 to index
    %c0_104 = arith.constant 0 : index
    %261 = vector.load %arg2[%c0_103, %260, %c0_104] : memref<1x16x32xf32, #tpu.memory_space<vmem>>, vector<1x1x32xf32>
    %262 = vector.shape_cast %261 : vector<1x1x32xf32> to vector<1x32xf32>
    %cst_105 = arith.constant 0.000000e+00 : f32
    %263 = vector.broadcast %cst_105 : f32 to vector<1x32xf32>
    %264 = arith.cmpf ogt, %262, %263 : vector<1x32xf32>
    %265 = vector.shape_cast %264 : vector<1x32xi1> to vector<1x32xi1>
    %266 = vector.broadcast %265 : vector<1x32xi1> to vector<5x32xi1>
    %267 = arith.select %266, %259, %246 : vector<5x32xi1>, vector<5x32xf32>
    %c13_i32 = arith.constant 13 : i32
    %cst_106 = arith.constant dense<0xFF800000> : vector<32xf32>
    %268 = vector.multi_reduction <maximumf>, %267, %cst_106 [0] : vector<5x32xf32> to vector<32xf32>
    %269 = vector.shape_cast %268 : vector<32xf32> to vector<1x32xf32>
    %270 = vector.broadcast %269 : vector<1x32xf32> to vector<5x32xf32>
    %271 = arith.subf %267, %270 : vector<5x32xf32>
    %272 = math.exp %271 : vector<5x32xf32>
    %cst_107 = arith.constant dense<0.000000e+00> : vector<5x32xf32>
    %273 = tpu.matmul %5, %272, %cst_107 {dimension_numbers = #tpu.dot_dimension_numbers<[1], [0], [0], [1], [0, 0, 1, 1], [], []>} : vector<5x5xf32>, vector<5x32xf32>, vector<5x32xf32> -> vector<5x32xf32>
    %274 = math.log %273 : vector<5x32xf32>
    %275 = vector.broadcast %269 : vector<1x32xf32> to vector<5x32xf32>
    %276 = arith.addf %274, %275 : vector<5x32xf32>
    %c0_108 = arith.constant 0 : index
    %277 = arith.index_cast %c13_i32 : i32 to index
    %c0_109 = arith.constant 0 : index
    %c0_110 = arith.constant 0 : index
    %278 = vector.load %arg1[%c0_108, %277, %c0_109, %c0_110] : memref<1x16x5x32xf32, #tpu.memory_space<vmem>>, vector<1x1x5x32xf32>
    %279 = vector.shape_cast %278 : vector<1x1x5x32xf32> to vector<5x32xf32>
    %280 = arith.addf %276, %279 : vector<5x32xf32>
    %c0_111 = arith.constant 0 : index
    %281 = arith.index_cast %c13_i32 : i32 to index
    %c0_112 = arith.constant 0 : index
    %282 = vector.load %arg2[%c0_111, %281, %c0_112] : memref<1x16x32xf32, #tpu.memory_space<vmem>>, vector<1x1x32xf32>
    %283 = vector.shape_cast %282 : vector<1x1x32xf32> to vector<1x32xf32>
    %cst_113 = arith.constant 0.000000e+00 : f32
    %284 = vector.broadcast %cst_113 : f32 to vector<1x32xf32>
    %285 = arith.cmpf ogt, %283, %284 : vector<1x32xf32>
    %286 = vector.shape_cast %285 : vector<1x32xi1> to vector<1x32xi1>
    %287 = vector.broadcast %286 : vector<1x32xi1> to vector<5x32xi1>
    %288 = arith.select %287, %280, %267 : vector<5x32xi1>, vector<5x32xf32>
    %c14_i32 = arith.constant 14 : i32
    %cst_114 = arith.constant dense<0xFF800000> : vector<32xf32>
    %289 = vector.multi_reduction <maximumf>, %288, %cst_114 [0] : vector<5x32xf32> to vector<32xf32>
    %290 = vector.shape_cast %289 : vector<32xf32> to vector<1x32xf32>
    %291 = vector.broadcast %290 : vector<1x32xf32> to vector<5x32xf32>
    %292 = arith.subf %288, %291 : vector<5x32xf32>
    %293 = math.exp %292 : vector<5x32xf32>
    %cst_115 = arith.constant dense<0.000000e+00> : vector<5x32xf32>
    %294 = tpu.matmul %5, %293, %cst_115 {dimension_numbers = #tpu.dot_dimension_numbers<[1], [0], [0], [1], [0, 0, 1, 1], [], []>} : vector<5x5xf32>, vector<5x32xf32>, vector<5x32xf32> -> vector<5x32xf32>
    %295 = math.log %294 : vector<5x32xf32>
    %296 = vector.broadcast %290 : vector<1x32xf32> to vector<5x32xf32>
    %297 = arith.addf %295, %296 : vector<5x32xf32>
    %c0_116 = arith.constant 0 : index
    %298 = arith.index_cast %c14_i32 : i32 to index
    %c0_117 = arith.constant 0 : index
    %c0_118 = arith.constant 0 : index
    %299 = vector.load %arg1[%c0_116, %298, %c0_117, %c0_118] : memref<1x16x5x32xf32, #tpu.memory_space<vmem>>, vector<1x1x5x32xf32>
    %300 = vector.shape_cast %299 : vector<1x1x5x32xf32> to vector<5x32xf32>
    %301 = arith.addf %297, %300 : vector<5x32xf32>
    %c0_119 = arith.constant 0 : index
    %302 = arith.index_cast %c14_i32 : i32 to index
    %c0_120 = arith.constant 0 : index
    %303 = vector.load %arg2[%c0_119, %302, %c0_120] : memref<1x16x32xf32, #tpu.memory_space<vmem>>, vector<1x1x32xf32>
    %304 = vector.shape_cast %303 : vector<1x1x32xf32> to vector<1x32xf32>
    %cst_121 = arith.constant 0.000000e+00 : f32
    %305 = vector.broadcast %cst_121 : f32 to vector<1x32xf32>
    %306 = arith.cmpf ogt, %304, %305 : vector<1x32xf32>
    %307 = vector.shape_cast %306 : vector<1x32xi1> to vector<1x32xi1>
    %308 = vector.broadcast %307 : vector<1x32xi1> to vector<5x32xi1>
    %309 = arith.select %308, %301, %288 : vector<5x32xi1>, vector<5x32xf32>
    %c15_i32 = arith.constant 15 : i32
    %cst_122 = arith.constant dense<0xFF800000> : vector<32xf32>
    %310 = vector.multi_reduction <maximumf>, %309, %cst_122 [0] : vector<5x32xf32> to vector<32xf32>
    %311 = vector.shape_cast %310 : vector<32xf32> to vector<1x32xf32>
    %312 = vector.broadcast %311 : vector<1x32xf32> to vector<5x32xf32>
    %313 = arith.subf %309, %312 : vector<5x32xf32>
    %314 = math.exp %313 : vector<5x32xf32>
    %cst_123 = arith.constant dense<0.000000e+00> : vector<5x32xf32>
    %315 = tpu.matmul %5, %314, %cst_123 {dimension_numbers = #tpu.dot_dimension_numbers<[1], [0], [0], [1], [0, 0, 1, 1], [], []>} : vector<5x5xf32>, vector<5x32xf32>, vector<5x32xf32> -> vector<5x32xf32>
    %316 = math.log %315 : vector<5x32xf32>
    %317 = vector.broadcast %311 : vector<1x32xf32> to vector<5x32xf32>
    %318 = arith.addf %316, %317 : vector<5x32xf32>
    %c0_124 = arith.constant 0 : index
    %319 = arith.index_cast %c15_i32 : i32 to index
    %c0_125 = arith.constant 0 : index
    %c0_126 = arith.constant 0 : index
    %320 = vector.load %arg1[%c0_124, %319, %c0_125, %c0_126] : memref<1x16x5x32xf32, #tpu.memory_space<vmem>>, vector<1x1x5x32xf32>
    %321 = vector.shape_cast %320 : vector<1x1x5x32xf32> to vector<5x32xf32>
    %322 = arith.addf %318, %321 : vector<5x32xf32>
    %c0_127 = arith.constant 0 : index
    %323 = arith.index_cast %c15_i32 : i32 to index
    %c0_128 = arith.constant 0 : index
    %324 = vector.load %arg2[%c0_127, %323, %c0_128] : memref<1x16x32xf32, #tpu.memory_space<vmem>>, vector<1x1x32xf32>
    %325 = vector.shape_cast %324 : vector<1x1x32xf32> to vector<1x32xf32>
    %cst_129 = arith.constant 0.000000e+00 : f32
    %326 = vector.broadcast %cst_129 : f32 to vector<1x32xf32>
    %327 = arith.cmpf ogt, %325, %326 : vector<1x32xf32>
    %328 = vector.shape_cast %327 : vector<1x32xi1> to vector<1x32xi1>
    %329 = vector.broadcast %328 : vector<1x32xi1> to vector<5x32xi1>
    %330 = arith.select %329, %322, %309 : vector<5x32xi1>, vector<5x32xf32>
    %c15_i32_130 = arith.constant 15 : i32
    %331 = vector.broadcast %3 : vector<5x1xf32> to vector<5x32xf32>
    %332 = arith.addf %330, %331 : vector<5x32xf32>
    %cst_131 = arith.constant dense<0xFF800000> : vector<32xf32>
    %333 = vector.multi_reduction <maximumf>, %332, %cst_131 [0] : vector<5x32xf32> to vector<32xf32>
    %334 = vector.shape_cast %333 : vector<32xf32> to vector<1x32xf32>
    %335 = vector.broadcast %334 : vector<1x32xf32> to vector<5x32xf32>
    %336 = arith.subf %332, %335 : vector<5x32xf32>
    %337 = math.exp %336 : vector<5x32xf32>
    %cst_132 = arith.constant dense<0.000000e+00> : vector<32xf32>
    %338 = vector.multi_reduction <add>, %337, %cst_132 [0] : vector<5x32xf32> to vector<32xf32>
    %339 = vector.shape_cast %338 : vector<32xf32> to vector<1x32xf32>
    %340 = math.log %339 : vector<1x32xf32>
    %341 = arith.addf %334, %340 : vector<1x32xf32>
    %342 = tpu.iota {dimensions = array<i32: 1>} : vector<16x5x32xi32>
    %343 = vector.shape_cast %11 : vector<16x32xi32> to vector<16x1x32xi32>
    %344 = vector.broadcast %343 : vector<16x1x32xi32> to vector<16x5x32xi32>
    %345 = arith.cmpi eq, %344, %342 : vector<16x5x32xi32>
    %346 = arith.extui %345 : vector<16x5x32xi1> to vector<16x5x32xi32>
    %347 = arith.sitofp %346 : vector<16x5x32xi32> to vector<16x5x32xf32>
    %348 = arith.mulf %7, %347 : vector<16x5x32xf32>
    %cst_133 = arith.constant dense<0.000000e+00> : vector<16x32xf32>
    %349 = vector.multi_reduction <add>, %348, %cst_133 [1] : vector<16x5x32xf32> to vector<16x32xf32>
    %350 = arith.mulf %349, %9 : vector<16x32xf32>
    %cst_134 = arith.constant dense<0.000000e+00> : vector<32xf32>
    %351 = vector.multi_reduction <add>, %350, %cst_134 [0] : vector<16x32xf32> to vector<32xf32>
    %352 = vector.shape_cast %351 : vector<32xf32> to vector<1x32xf32>
    %353 = vector.extract_strided_slice %347 {offsets = [0, 0, 0], sizes = [1, 5, 32], strides = [1, 1, 1]} : vector<16x5x32xf32> to vector<1x5x32xf32>
    %354 = vector.shape_cast %353 : vector<1x5x32xf32> to vector<5x32xf32>
    %355 = vector.broadcast %2 : vector<5x1xf32> to vector<5x32xf32>
    %356 = arith.mulf %354, %355 : vector<5x32xf32>
    %cst_135 = arith.constant dense<0.000000e+00> : vector<32xf32>
    %357 = vector.multi_reduction <add>, %356, %cst_135 [0] : vector<5x32xf32> to vector<32xf32>
    %358 = vector.shape_cast %357 : vector<32xf32> to vector<1x32xf32>
    %359 = arith.addf %352, %358 : vector<1x32xf32>
    %360 = vector.extract_strided_slice %11 {offsets = [0, 0], sizes = [15, 32], strides = [1, 1]} : vector<16x32xi32> to vector<15x32xi32>
    %c5_i32_136 = arith.constant 5 : i32
    %361 = vector.broadcast %c5_i32_136 : i32 to vector<15x32xi32>
    %362 = arith.muli %360, %361 : vector<15x32xi32>
    %363 = vector.extract_strided_slice %11 {offsets = [1, 0], sizes = [15, 32], strides = [1, 1]} : vector<16x32xi32> to vector<15x32xi32>
    %364 = arith.addi %362, %363 : vector<15x32xi32>
    %365 = tpu.iota {dimensions = array<i32: 1>} : vector<15x25x32xi32>
    %366 = vector.shape_cast %364 : vector<15x32xi32> to vector<15x1x32xi32>
    %367 = vector.broadcast %366 : vector<15x1x32xi32> to vector<15x25x32xi32>
    %368 = arith.cmpi eq, %367, %365 : vector<15x25x32xi32>
    %369 = arith.extui %368 : vector<15x25x32xi1> to vector<15x25x32xi32>
    %370 = arith.sitofp %369 : vector<15x25x32xi32> to vector<15x25x32xf32>
    %371 = vector.shape_cast %1 : vector<25x1xf32> to vector<1x25x1xf32>
    %372 = vector.broadcast %371 : vector<1x25x1xf32> to vector<15x25x32xf32>
    %373 = arith.mulf %370, %372 : vector<15x25x32xf32>
    %cst_137 = arith.constant dense<0.000000e+00> : vector<15x32xf32>
    %374 = vector.multi_reduction <add>, %373, %cst_137 [1] : vector<15x25x32xf32> to vector<15x32xf32>
    %375 = vector.extract_strided_slice %9 {offsets = [1, 0], sizes = [15, 32], strides = [1, 1]} : vector<16x32xf32> to vector<15x32xf32>
    %376 = arith.mulf %374, %375 : vector<15x32xf32>
    %cst_138 = arith.constant dense<0.000000e+00> : vector<32xf32>
    %377 = vector.multi_reduction <add>, %376, %cst_138 [0] : vector<15x32xf32> to vector<32xf32>
    %378 = vector.shape_cast %377 : vector<32xf32> to vector<1x32xf32>
    %379 = arith.addf %359, %378 : vector<1x32xf32>
    %cst_139 = arith.constant dense<0.000000e+00> : vector<32xf32>
    %380 = vector.multi_reduction <add>, %9, %cst_139 [0] : vector<16x32xf32> to vector<32xf32>
    %381 = vector.shape_cast %380 : vector<32xf32> to vector<1x32xf32>
    %382 = arith.fptosi %381 : vector<1x32xf32> to vector<1x32xi32>
    %c1_i32_140 = arith.constant 1 : i32
    %383 = vector.broadcast %c1_i32_140 : i32 to vector<1x32xi32>
    %384 = arith.subi %382, %383 : vector<1x32xi32>
    %385 = tpu.iota {dimensions = array<i32: 0>} : vector<16x32xi32>
    %386 = vector.broadcast %384 : vector<1x32xi32> to vector<16x32xi32>
    %387 = arith.cmpi eq, %385, %386 : vector<16x32xi32>
    %388 = arith.extui %387 : vector<16x32xi1> to vector<16x32xi32>
    %389 = arith.sitofp %388 : vector<16x32xi32> to vector<16x32xf32>
    %390 = vector.shape_cast %389 : vector<16x32xf32> to vector<16x1x32xf32>
    %391 = vector.broadcast %390 : vector<16x1x32xf32> to vector<16x5x32xf32>
    %392 = arith.mulf %347, %391 : vector<16x5x32xf32>
    %cst_141 = arith.constant dense<0.000000e+00> : vector<5x32xf32>
    %393 = vector.multi_reduction <add>, %392, %cst_141 [0] : vector<16x5x32xf32> to vector<5x32xf32>
    %394 = vector.broadcast %3 : vector<5x1xf32> to vector<5x32xf32>
    %395 = arith.mulf %394, %393 : vector<5x32xf32>
    %cst_142 = arith.constant dense<0.000000e+00> : vector<32xf32>
    %396 = vector.multi_reduction <add>, %395, %cst_142 [0] : vector<5x32xf32> to vector<32xf32>
    %397 = vector.shape_cast %396 : vector<32xf32> to vector<1x32xf32>
    %398 = arith.addf %379, %397 : vector<1x32xf32>
    %399 = arith.subf %398, %341 : vector<1x32xf32>
    %c0_143 = arith.constant 0 : index
    %c0_144 = arith.constant 0 : index
    %c0_145 = arith.constant 0 : index
    %400 = vector.load %arg5[%c0_143, %c0_144, %c0_145] : memref<1x1x32xf32, #tpu.memory_space<vmem>>, vector<1x1x32xf32>
    %401 = vector.shape_cast %400 : vector<1x1x32xf32> to vector<1x32xf32>
    %402 = vector.shape_cast %399 : vector<1x32xf32> to vector<1x1x32xf32>
    tpu.vector_store %arg5[%c0_143, %c0_144, %c0_145], %402 {strides = array<i32>} : memref<1x1x32xf32, #tpu.memory_space<vmem>>, vector<1x1x32xf32>,
    return
  }
  func.func @transform_0(%arg0: i32) -> (i32, i32, i32, i32) {
    %c0_i32 = arith.constant 0 : i32
    %c0_i32_0 = arith.constant 0 : i32
    %c0_i32_1 = arith.constant 0 : i32
    %c0_i32_2 = arith.constant 0 : i32
    return %arg0, %c0_i32, %c0_i32_0, %c0_i32_1 : i32, i32, i32, i32
  }
  func.func @transform_1(%arg0: i32) -> (i32, i32, i32) {
    %c0_i32 = arith.constant 0 : i32
    %c0_i32_0 = arith.constant 0 : i32
    %c0_i32_1 = arith.constant 0 : i32
    return %arg0, %c0_i32, %c0_i32_0 : i32, i32, i32
  }
  func.func @transform_2(%arg0: i32) -> (i32, i32, i32) {
    %c0_i32 = arith.constant 0 : i32
    %c0_i32_0 = arith.constant 0 : i32
    %c0_i32_1 = arith.constant 0 : i32
    return %arg0, %c0_i32, %c0_i32_0 : i32, i32, i32
  }
  func.func @transform_3(%arg0: i32) -> (i32, i32) {
    %c0_i32 = arith.constant 0 : i32
    %c0_i32_0 = arith.constant 0 : i32
    %c0_i32_1 = arith.constant 0 : i32
    return %c0_i32, %c0_i32_0 : i32, i32
  }
  func.func @transform_4(%arg0: i32) -> (i32, i32, i32) {
    %c0_i32 = arith.constant 0 : i32
    %c0_i32_0 = arith.constant 0 : i32
    %c0_i32_1 = arith.constant 0 : i32
    return %arg0, %c0_i32, %c0_i32_0 : i32, i32, i32
  }
}

</mosaic_0001>

<llo_original>
// kernel: tpu_custom_call.1
$region0: #{tpu_custom_call.1}
  #allocation0 [shape = 'u32[]', space=smem, size = 0x4, offset = 0x4, fixed_abs, tag = 'smem constant byte address 0x4 - core index']
  #allocation1 [shape = 'u32[144,128]{1,0:T(1,128)}', space=vmem, size = 0x12000, scoped, tag = 'internal scratch']
  %s0 = inlined_call_operand.vmem [shape: f32[1,16,5,32], index: 0, kind: input, shape index: {}]
  %s1 = inlined_call_operand.vmem [shape: f32[1,16,32], index: 1, kind: input, shape index: {}]
  %s2 = inlined_call_operand.vmem [shape: s32[1,16,32], index: 2, kind: input, shape index: {}]
  %s3 = inlined_call_operand.vmem [shape: f32[25,8], index: 3, kind: input, shape index: {}]
  %s4 = inlined_call_operand.hbm [shape: f32[1,1,32], index: 4, kind: output, shape index: {}]
  %s5 = sld [smem:[#allocation0]]
  $region26: #{tpu_custom_call.1} parent=0
    _
  %s7 = ssub.s32 1, %s5
  %s8 = scalar_select 0, %s7, %s5
  $region1: #{tpu_custom_call.1} parent=0
    #allocation2 [shape = 'u8[512]{0}', space=vmem, size = 0x400, scoped, tag = 'output window, operand 0, single buffered']
    #allocation3 [shape = 's32[1]{0}', space=sflag, size = 0x4, scoped, tag = 'scoped memory for tpu_custom_call.1']
    %9 = vsyncpa [#allocation3], 0
    // Predicated region
    $region2: #{tpu_custom_call.1} parent=1 // pred_check
      _
    $region3: #{tpu_custom_call.1} parent=1 // pred_check_branch
      %11 = sbr.rel (0) target = $region5
    $region4: #{tpu_custom_call.1} parent=1 // pred_region
      _
    $region5: #{tpu_custom_call.1} parent=1 // pred_fallthru
      _
    // Predicated region
    $region6: #{tpu_custom_call.1} parent=1 // pred_check
      _
    $region7: #{tpu_custom_call.1} parent=1 // pred_check_branch
      %13 = sbr.rel (0) target = $region9
    $region8: #{tpu_custom_call.1} parent=1 // pred_region
      _
    $region9: #{tpu_custom_call.1} parent=1 // pred_fallthru
      _
    // Predicated region
    $region10: #{tpu_custom_call.1} parent=1 // pred_check
      _
    $region11: #{tpu_custom_call.1} parent=1 // pred_check_branch
      %15 = sbr.rel (0) target = $region13
    $region12: #{tpu_custom_call.1} parent=1 // pred_region
      _
    $region13: #{tpu_custom_call.1} parent=1 // pred_fallthru
      _
    // Predicated region
    $region14: #{tpu_custom_call.1} parent=1 // pred_check
      _
    $region15: #{tpu_custom_call.1} parent=1 // pred_check_branch
      %17 = sbr.rel (0) target = $region17
    $region16: #{tpu_custom_call.1} parent=1 // pred_region
      _
    $region17: #{tpu_custom_call.1} parent=1 // pred_fallthru
      _
    %v18 = vld [vmem:[%s3] sm:$0xff]
    %v19 = vld [vmem:[%s3 + $0x8] sm:$0xff]
    %v20 = vld [vmem:[%s3 + $0x10] sm:$0xff]
    %v21 = vld [vmem:[%s3 + $0x18] sm:$0x1]
    %v22 = vmul.f32 %v18, 1.442695
    %v23 = vpow.pop %v22
    %v24 = vld [vmem:[%s0] sm:$0x1f]
    %v25 = vld [vmem:[%s0 + $0x8] sm:$0x1f]
    %v26 = vld [vmem:[%s0 + $0x10] sm:$0x1f]
    %v27 = vld [vmem:[%s0 + $0x18] sm:$0x1f]
    %v28 = vld [vmem:[%s0 + $0x20] sm:$0x1f]
    %v29 = vld [vmem:[%s0 + $0x28] sm:$0x1f]
    %v30 = vld [vmem:[%s0 + $0x30] sm:$0x1f]
    %v31 = vld [vmem:[%s0 + $0x38] sm:$0x1f]
    %v32 = vld [vmem:[%s0 + $0x40] sm:$0x1f]
    %v33 = vld [vmem:[%s0 + $0x48] sm:$0x1f]
    %v34 = vld [vmem:[%s0 + $0x50] sm:$0x1f]
    %v35 = vld [vmem:[%s0 + $0x58] sm:$0x1f]
    %v36 = vld [vmem:[%s0 + $0x60] sm:$0x1f]
    %v37 = vld [vmem:[%s0 + $0x68] sm:$0x1f]
    %v38 = vld [vmem:[%s0 + $0x70] sm:$0x1f]
    %v39 = vld [vmem:[%s0 + $0x78] sm:$0x1f]
    %v40 = vld [vmem:[%s1] sm:$0xff]
    %v41 = vld [vmem:[%s1 + $0x8] sm:$0xff]
    %v42 = vld [vmem:[%s2] sm:$0xff]
    %v43 = vld [vmem:[%s2 + $0x8] sm:$0xff]
    %45 = vset.pattern.permute.xlu0 1
    %46 = vperm.xlu0 %45, %v18
    %v47 = vpop.permute.xlu0 %46
    %v49 = vadd.f32 %v47, %v24
    %vm50 = vcmask 258048
    %v51 = vsel %vm50, %v49, -inf
    %v52 = vrot.slane %v51, 4
    %v53 = vmax.f32 %v51, %v52
    %v54 = vrot.slane %v53, 2
    %v55 = vmax.f32 %v53, %v54
    %v56 = vrot.slane %v55, 1
    %v57 = vmax.f32 %v55, %v56
    %v58 = vsub.f32 %v49, %v57
    %v59 = vmul.f32 %v58, 1.442695
    %v60 = vpow.pop %v59
    %62 = vrot.lane.b32.xlu0 %v23, 125
    %v63 = vpop.permute.xlu0 %62
    %vm64 = vcmask 39936
    %v65 = vsel %vm64, %v63, 0
    %vm67 = vcmask 1044480
    %v69 = vsel %vm67, %v60, 0
    %71 = vmatprep.subr.mxu0 0.0
    %72 = vmatpush1.msra.mxu0 %v69
    %73 = vmatprep.subr.mxu0 0.0
    %74 = vmatpush1.msra.mxu0 0.0
    %75 = vmatprep.subr.mxu0 0.0
    %76 = vmatpush1.msra.mxu0 0.0
    %77 = vmatprep.subr.mxu0 0.0
    %78 = vmatpush1.msra.mxu0 0.0
    %79 = vmatprep.subr.mxu0 0.0
    %80 = vmatpush1.msra.mxu0 0.0
    %81 = vmatprep.subr.mxu0 0.0
    %82 = vmatpush1.msra.mxu0 0.0
    %83 = vmatprep.subr.mxu0 0.0
    %84 = vmatpush1.msra.mxu0 0.0
    %85 = vmatprep.subr.mxu0 0.0
    %86 = vmatpush1.msra.mxu0 0.0
    %87 = vmatprep.subr.mxu0 0.0
    %88 = vmatpush1.msra.mxu0 0.0
    %89 = vmatprep.subr.mxu0 0.0
    %90 = vmatpush1.msra.mxu0 0.0
    %91 = vmatprep.subr.mxu0 0.0
    %92 = vmatpush1.msra.mxu0 0.0
    %93 = vmatprep.subr.mxu0 0.0
    %94 = vmatpush1.msra.mxu0 0.0
    %95 = vmatprep.subr.mxu0 0.0
    %96 = vmatpush1.msra.mxu0 0.0
    %97 = vmatprep.subr.mxu0 0.0
    %98 = vmatpush1.msra.mxu0 0.0
    %99 = vmatprep.subr.mxu0 0.0
    %100 = vmatpush1.msra.mxu0 0.0
    %101 = vmatprep.subr.mxu0 0.0
    %102 = vmatpush1.msra.mxu0 0.0
    %103 = vmatprep.subr.mxu0 0.0
    %104 = vmatpush1.msra.mxu0 0.0
    %105 = vmatprep.subr.mxu0 0.0
    %106 = vmatpush1.msra.mxu0 0.0
    %107 = vmatprep.subr.mxu0 0.0
    %108 = vmatpush1.msra.mxu0 0.0
    %109 = vmatprep.subr.mxu0 0.0
    %110 = vmatpush1.msra.mxu0 0.0
    %111 = vmatprep.subr.mxu0 0.0
    %112 = vmatpush1.msra.mxu0 0.0
    %113 = vmatprep.subr.mxu0 0.0
    %114 = vmatpush1.msra.mxu0 0.0
    %115 = vmatprep.subr.mxu0 0.0
    %116 = vmatpush1.msra.mxu0 0.0
    %117 = vmatprep.subr.mxu0 0.0
    %118 = vmatpush1.msra.mxu0 0.0
    %119 = vmatprep.subr.mxu0 0.0
    %120 = vmatpush1.msra.mxu0 0.0
    %121 = vmatprep.subr.mxu0 0.0
    %122 = vmatpush1.msra.mxu0 0.0
    %123 = vmatprep.subr.mxu0 0.0
    %124 = vmatpush1.msra.mxu0 0.0
    %125 = vmatprep.subr.mxu0 0.0
    %126 = vmatpush1.msra.mxu0 0.0
    %127 = vmatprep.subr.mxu0 0.0
    %128 = vmatpush1.msra.mxu0 0.0
    %129 = vmatprep.subr.mxu0 0.0
    %130 = vmatpush1.msra.mxu0 0.0
    %131 = vmatprep.subr.mxu0 0.0
    %132 = vmatpush1.msra.mxu0 0.0
    %133 = vmatprep.subr.mxu0 0.0
    %134 = vmatpush1.msra.mxu0 0.0
    %135 = vmatprep.mubr.f32.mxu0 0.0
    %136 = vmatmul.mubr.f32.gmra.mrb[0].mxu0 %v65
    %v137 = vpop.f32.mrb[0].mxu0
    %v138 = vadd.f32 0.0, %v137
    %v139 = vpop.f32.mrb[0].mxu0
    %140 = vdwg.mxu0
    %v141 = vlog2.pop %v138
    %v142 = vmul.f32 %v141, 0.6931472
    %v143 = vadd.f32 %v142, %v57
    %s144 = scalar_lea.vmem %s0, 8
    %v145 = vld [vmem:[%s144] sm:$0x1f]
    %v146 = vadd.f32 %v143, %v145
    %v147 = vld [vmem:[%s1 + $0x1] sm:$0x1]
    %vm148 = vcmp.gt.f32.partialorder %v147, 0.0
    %v149 = vsel %vm148, 1, 0
    %v150 = vlaneseq
    %v151 = vshrl.u32 %v150, 7
    %v152 = vsub.s32 0, %v151
    %v153 = vrot.slane %v149, %v152
    %vm154 = vcmp.eq.s32.totalorder %v153, 1
    %v155 = vsel %vm154, %v146, %v49
    %v156 = vsel %vm50, %v155, -inf
    %v157 = vrot.slane %v156, 4
    %v158 = vmax.f32 %v156, %v157
    %v159 = vrot.slane %v158, 2
    %v160 = vmax.f32 %v158, %v159
    %v161 = vrot.slane %v160, 1
    %v162 = vmax.f32 %v160, %v161
    %v163 = vsub.f32 %v155, %v162
    %v164 = vmul.f32 %v163, 1.442695
    %v165 = vpow.pop %v164
    %v167 = vsel %vm67, %v165, 0
    %169 = vmatprep.subr.mxu0 0.0
    %170 = vmatpush1.msra.mxu0 %v167
    %171 = vmatprep.subr.mxu0 0.0
    %172 = vmatpush1.msra.mxu0 0.0
    %173 = vmatprep.subr.mxu0 0.0
    %174 = vmatpush1.msra.mxu0 0.0
    %175 = vmatprep.subr.mxu0 0.0
    %176 = vmatpush1.msra.mxu0 0.0
    %177 = vmatprep.subr.mxu0 0.0
    %178 = vmatpush1.msra.mxu0 0.0
    %179 = vmatprep.subr.mxu0 0.0
    %180 = vmatpush1.msra.mxu0 0.0
    %181 = vmatprep.subr.mxu0 0.0
    %182 = vmatpush1.msra.mxu0 0.0
    %183 = vmatprep.subr.mxu0 0.0
    %184 = vmatpush1.msra.mxu0 0.0
    %185 = vmatprep.subr.mxu0 0.0
    %186 = vmatpush1.msra.mxu0 0.0
    %187 = vmatprep.subr.mxu0 0.0
    %188 = vmatpush1.msra.mxu0 0.0
    %189 = vmatprep.subr.mxu0 0.0
    %190 = vmatpush1.msra.mxu0 0.0
    %191 = vmatprep.subr.mxu0 0.0
    %192 = vmatpush1.msra.mxu0 0.0
    %193 = vmatprep.subr.mxu0 0.0
    %194 = vmatpush1.msra.mxu0 0.0
    %195 = vmatprep.subr.mxu0 0.0
    %196 = vmatpush1.msra.mxu0 0.0
    %197 = vmatprep.subr.mxu0 0.0
    %198 = vmatpush1.msra.mxu0 0.0
    %199 = vmatprep.subr.mxu0 0.0
    %200 = vmatpush1.msra.mxu0 0.0
    %201 = vmatprep.subr.mxu0 0.0
    %202 = vmatpush1.msra.mxu0 0.0
    %203 = vmatprep.subr.mxu0 0.0
    %204 = vmatpush1.msra.mxu0 0.0
    %205 = vmatprep.subr.mxu0 0.0
    %206 = vmatpush1.msra.mxu0 0.0
    %207 = vmatprep.subr.mxu0 0.0
    %208 = vmatpush1.msra.mxu0 0.0
    %209 = vmatprep.subr.mxu0 0.0
    %210 = vmatpush1.msra.mxu0 0.0
    %211 = vmatprep.subr.mxu0 0.0
    %212 = vmatpush1.msra.mxu0 0.0
    %213 = vmatprep.subr.mxu0 0.0
    %214 = vmatpush1.msra.mxu0 0.0
    %215 = vmatprep.subr.mxu0 0.0
    %216 = vmatpush1.msra.mxu0 0.0
    %217 = vmatprep.subr.mxu0 0.0
    %218 = vmatpush1.msra.mxu0 0.0
    %219 = vmatprep.subr.mxu0 0.0
    %220 = vmatpush1.msra.mxu0 0.0
    %221 = vmatprep.subr.mxu0 0.0
    %222 = vmatpush1.msra.mxu0 0.0
    %223 = vmatprep.subr.mxu0 0.0
    %224 = vmatpush1.msra.mxu0 0.0
    %225 = vmatprep.subr.mxu0 0.0
    %226 = vmatpush1.msra.mxu0 0.0
    %227 = vmatprep.subr.mxu0 0.0
    %228 = vmatpush1.msra.mxu0 0.0
    %229 = vmatprep.subr.mxu0 0.0
    %230 = vmatpush1.msra.mxu0 0.0
    %231 = vmatprep.subr.mxu0 0.0
    %232 = vmatpush1.msra.mxu0 0.0
    %233 = vmatprep.mubr.f32.mxu0 0.0
    %234 = vmatmul.mubr.f32.gmra.mrb[0].mxu0 %v65
    %v235 = vpop.f32.mrb[0].mxu0
    %v236 = vadd.f32 0.0, %v235
    %v237 = vpop.f32.mrb[0].mxu0
    %238 = vdwg.mxu0
    %v239 = vlog2.pop %v236
    %v240 = vmul.f32 %v239, 0.6931472
    %v241 = vadd.f32 %v240, %v162
    %s242 = scalar_lea.vmem %s0, 16
    %v243 = vld [vmem:[%s242] sm:$0x1f]
    %v244 = vadd.f32 %v241, %v243
    %v245 = vld [vmem:[%s1 + $0x2] sm:$0x1]
    %vm246 = vcmp.gt.f32.partialorder %v245, 0.0
    %v247 = vsel %vm246, 1, 0
    %v248 = vlaneseq
    %v249 = vshrl.u32 %v248, 7
    %v250 = vsub.s32 0, %v249
    %v251 = vrot.slane %v247, %v250
    %vm252 = vcmp.eq.s32.totalorder %v251, 1
    %v253 = vsel %vm252, %v244, %v155
    %v254 = vsel %vm50, %v253, -inf
    %v255 = vrot.slane %v254, 4
    %v256 = vmax.f32 %v254, %v255
    %v257 = vrot.slane %v256, 2
    %v258 = vmax.f32 %v256, %v257
    %v259 = vrot.slane %v258, 1
    %v260 = vmax.f32 %v258, %v259
    %v261 = vsub.f32 %v253, %v260
    %v262 = vmul.f32 %v261, 1.442695
    %v263 = vpow.pop %v262
    %v265 = vsel %vm67, %v263, 0
    %267 = vmatprep.subr.mxu0 0.0
    %268 = vmatpush1.msra.mxu0 %v265
    %269 = vmatprep.subr.mxu0 0.0
    %270 = vmatpush1.msra.mxu0 0.0
    %271 = vmatprep.subr.mxu0 0.0
    %272 = vmatpush1.msra.mxu0 0.0
    %273 = vmatprep.subr.mxu0 0.0
    %274 = vmatpush1.msra.mxu0 0.0
    %275 = vmatprep.subr.mxu0 0.0
    %276 = vmatpush1.msra.mxu0 0.0
    %277 = vmatprep.subr.mxu0 0.0
    %278 = vmatpush1.msra.mxu0 0.0
    %279 = vmatprep.subr.mxu0 0.0
    %280 = vmatpush1.msra.mxu0 0.0
    %281 = vmatprep.subr.mxu0 0.0
    %282 = vmatpush1.msra.mxu0 0.0
    %283 = vmatprep.subr.mxu0 0.0
    %284 = vmatpush1.msra.mxu0 0.0
    %285 = vmatprep.subr.mxu0 0.0
    %286 = vmatpush1.msra.mxu0 0.0
    %287 = vmatprep.subr.mxu0 0.0
    %288 = vmatpush1.msra.mxu0 0.0
    %289 = vmatprep.subr.mxu0 0.0
    %290 = vmatpush1.msra.mxu0 0.0
    %291 = vmatprep.subr.mxu0 0.0
    %292 = vmatpush1.msra.mxu0 0.0
    %293 = vmatprep.subr.mxu0 0.0
    %294 = vmatpush1.msra.mxu0 0.0
    %295 = vmatprep.subr.mxu0 0.0
    %296 = vmatpush1.msra.mxu0 0.0
    %297 = vmatprep.subr.mxu0 0.0
    %298 = vmatpush1.msra.mxu0 0.0
    %299 = vmatprep.subr.mxu0 0.0
    %300 = vmatpush1.msra.mxu0 0.0
    %301 = vmatprep.subr.mxu0 0.0
    %302 = vmatpush1.msra.mxu0 0.0
    %303 = vmatprep.subr.mxu0 0.0
    %304 = vmatpush1.msra.mxu0 0.0
    %305 = vmatprep.subr.mxu0 0.0
    %306 = vmatpush1.msra.mxu0 0.0
    %307 = vmatprep.subr.mxu0 0.0
    %308 = vmatpush1.msra.mxu0 0.0
    %309 = vmatprep.subr.mxu0 0.0
    %310 = vmatpush1.msra.mxu0 0.0
    %311 = vmatprep.subr.mxu0 0.0
    %312 = vmatpush1.msra.mxu0 0.0
    %313 = vmatprep.subr.mxu0 0.0
    %314 = vmatpush1.msra.mxu0 0.0
    %315 = vmatprep.subr.mxu0 0.0
    %316 = vmatpush1.msra.mxu0 0.0
    %317 = vmatprep.subr.mxu0 0.0
    %318 = vmatpush1.msra.mxu0 0.0
    %319 = vmatprep.subr.mxu0 0.0
    %320 = vmatpush1.msra.mxu0 0.0
    %321 = vmatprep.subr.mxu0 0.0
    %322 = vmatpush1.msra.mxu0 0.0
    %323 = vmatprep.subr.mxu0 0.0
    %324 = vmatpush1.msra.mxu0 0.0
    %325 = vmatprep.subr.mxu0 0.0
    %326 = vmatpush1.msra.mxu0 0.0
    %327 = vmatprep.subr.mxu0 0.0
    %328 = vmatpush1.msra.mxu0 0.0
    %329 = vmatprep.subr.mxu0 0.0
    %330 = vmatpush1.msra.mxu0 0.0
    %331 = vmatprep.mubr.f32.mxu0 0.0
    %332 = vmatmul.mubr.f32.gmra.mrb[0].mxu0 %v65
    %v333 = vpop.f32.mrb[0].mxu0
    %v334 = vadd.f32 0.0, %v333
    %v335 = vpop.f32.mrb[0].mxu0
    %336 = vdwg.mxu0
    %v337 = vlog2.pop %v334
    %v338 = vmul.f32 %v337, 0.6931472
    %v339 = vadd.f32 %v338, %v260
    %s340 = scalar_lea.vmem %s0, 24
    %v341 = vld [vmem:[%s340] sm:$0x1f]
    %v342 = vadd.f32 %v339, %v341
    %v343 = vld [vmem:[%s1 + $0x3] sm:$0x1]
    %vm344 = vcmp.gt.f32.partialorder %v343, 0.0
    %v345 = vsel %vm344, 1, 0
    %v346 = vlaneseq
    %v347 = vshrl.u32 %v346, 7
    %v348 = vsub.s32 0, %v347
    %v349 = vrot.slane %v345, %v348
    %vm350 = vcmp.eq.s32.totalorder %v349, 1
    %v351 = vsel %vm350, %v342, %v253
    %v352 = vsel %vm50, %v351, -inf
    %v353 = vrot.slane %v352, 4
    %v354 = vmax.f32 %v352, %v353
    %v355 = vrot.slane %v354, 2
    %v356 = vmax.f32 %v354, %v355
    %v357 = vrot.slane %v356, 1
    %v358 = vmax.f32 %v356, %v357
    %v359 = vsub.f32 %v351, %v358
    %v360 = vmul.f32 %v359, 1.442695
    %v361 = vpow.pop %v360
    %v363 = vsel %vm67, %v361, 0
    %365 = vmatprep.subr.mxu0 0.0
    %366 = vmatpush1.msra.mxu0 %v363
    %367 = vmatprep.subr.mxu0 0.0
    %368 = vmatpush1.msra.mxu0 0.0
    %369 = vmatprep.subr.mxu0 0.0
    %370 = vmatpush1.msra.mxu0 0.0
    %371 = vmatprep.subr.mxu0 0.0
    %372 = vmatpush1.msra.mxu0 0.0
    %373 = vmatprep.subr.mxu0 0.0
    %374 = vmatpush1.msra.mxu0 0.0
    %375 = vmatprep.subr.mxu0 0.0
    %376 = vmatpush1.msra.mxu0 0.0
    %377 = vmatprep.subr.mxu0 0.0
    %378 = vmatpush1.msra.mxu0 0.0
    %379 = vmatprep.subr.mxu0 0.0
    %380 = vmatpush1.msra.mxu0 0.0
    %381 = vmatprep.subr.mxu0 0.0
    %382 = vmatpush1.msra.mxu0 0.0
    %383 = vmatprep.subr.mxu0 0.0
    %384 = vmatpush1.msra.mxu0 0.0
    %385 = vmatprep.subr.mxu0 0.0
    %386 = vmatpush1.msra.mxu0 0.0
    %387 = vmatprep.subr.mxu0 0.0
    %388 = vmatpush1.msra.mxu0 0.0
    %389 = vmatprep.subr.mxu0 0.0
    %390 = vmatpush1.msra.mxu0 0.0
    %391 = vmatprep.subr.mxu0 0.0
    %392 = vmatpush1.msra.mxu0 0.0
    %393 = vmatprep.subr.mxu0 0.0
    %394 = vmatpush1.msra.mxu0 0.0
    %395 = vmatprep.subr.mxu0 0.0
    %396 = vmatpush1.msra.mxu0 0.0
    %397 = vmatprep.subr.mxu0 0.0
    %398 = vmatpush1.msra.mxu0 0.0
    %399 = vmatprep.subr.mxu0 0.0
    %400 = vmatpush1.msra.mxu0 0.0
    %401 = vmatprep.subr.mxu0 0.0
    %402 = vmatpush1.msra.mxu0 0.0
    %403 = vmatprep.subr.mxu0 0.0
    %404 = vmatpush1.msra.mxu0 0.0
    %405 = vmatprep.subr.mxu0 0.0
    %406 = vmatpush1.msra.mxu0 0.0
    %407 = vmatprep.subr.mxu0 0.0
    %408 = vmatpush1.msra.mxu0 0.0
    %409 = vmatprep.subr.mxu0 0.0
    %410 = vmatpush1.msra.mxu0 0.0
    %411 = vmatprep.subr.mxu0 0.0
    %412 = vmatpush1.msra.mxu0 0.0
    %413 = vmatprep.subr.mxu0 0.0
    %414 = vmatpush1.msra.mxu0 0.0
    %415 = vmatprep.subr.mxu0 0.0
    %416 = vmatpush1.msra.mxu0 0.0
    %417 = vmatprep.subr.mxu0 0.0
    %418 = vmatpush1.msra.mxu0 0.0
    %419 = vmatprep.subr.mxu0 0.0
    %420 = vmatpush1.msra.mxu0 0.0
    %421 = vmatprep.subr.mxu0 0.0
    %422 = vmatpush1.msra.mxu0 0.0
    %423 = vmatprep.subr.mxu0 0.0
    %424 = vmatpush1.msra.mxu0 0.0
    %425 = vmatprep.subr.mxu0 0.0
    %426 = vmatpush1.msra.mxu0 0.0
    %427 = vmatprep.subr.mxu0 0.0
    %428 = vmatpush1.msra.mxu0 0.0
    %429 = vmatprep.mubr.f32.mxu0 0.0
    %430 = vmatmul.mubr.f32.gmra.mrb[0].mxu0 %v65
    %v431 = vpop.f32.mrb[0].mxu0
    %v432 = vadd.f32 0.0, %v431
    %v433 = vpop.f32.mrb[0].mxu0
    %434 = vdwg.mxu0
    %v435 = vlog2.pop %v432
    %v436 = vmul.f32 %v435, 0.6931472
    %v437 = vadd.f32 %v436, %v358
    %s438 = scalar_lea.vmem %s0, 32
    %v439 = vld [vmem:[%s438] sm:$0x1f]
    %v440 = vadd.f32 %v437, %v439
    %v441 = vld [vmem:[%s1 + $0x4] sm:$0x1]
    %vm442 = vcmp.gt.f32.partialorder %v441, 0.0
    %v443 = vsel %vm442, 1, 0
    %v444 = vlaneseq
    %v445 = vshrl.u32 %v444, 7
    %v446 = vsub.s32 0, %v445
    %v447 = vrot.slane %v443, %v446
    %vm448 = vcmp.eq.s32.totalorder %v447, 1
    %v449 = vsel %vm448, %v440, %v351
    %v450 = vsel %vm50, %v449, -inf
    %v451 = vrot.slane %v450, 4
    %v452 = vmax.f32 %v450, %v451
    %v453 = vrot.slane %v452, 2
    %v454 = vmax.f32 %v452, %v453
    %v455 = vrot.slane %v454, 1
    %v456 = vmax.f32 %v454, %v455
    %v457 = vsub.f32 %v449, %v456
    %v458 = vmul.f32 %v457, 1.442695
    %v459 = vpow.pop %v458
    %v461 = vsel %vm67, %v459, 0
    %463 = vmatprep.subr.mxu0 0.0
    %464 = vmatpush1.msra.mxu0 %v461
    %465 = vmatprep.subr.mxu0 0.0
    %466 = vmatpush1.msra.mxu0 0.0
    %467 = vmatprep.subr.mxu0 0.0
    %468 = vmatpush1.msra.mxu0 0.0
    %469 = vmatprep.subr.mxu0 0.0
    %470 = vmatpush1.msra.mxu0 0.0
    %471 = vmatprep.subr.mxu0 0.0
    %472 = vmatpush1.msra.mxu0 0.0
    %473 = vmatprep.subr.mxu0 0.0
    %474 = vmatpush1.msra.mxu0 0.0
    %475 = vmatprep.subr.mxu0 0.0
    %476 = vmatpush1.msra.mxu0 0.0
    %477 = vmatprep.subr.mxu0 0.0
    %478 = vmatpush1.msra.mxu0 0.0
    %479 = vmatprep.subr.mxu0 0.0
    %480 = vmatpush1.msra.mxu0 0.0
    %481 = vmatprep.subr.mxu0 0.0
    %482 = vmatpush1.msra.mxu0 0.0
    %483 = vmatprep.subr.mxu0 0.0
    %484 = vmatpush1.msra.mxu0 0.0
    %485 = vmatprep.subr.mxu0 0.0
    %486 = vmatpush1.msra.mxu0 0.0
    %487 = vmatprep.subr.mxu0 0.0
    %488 = vmatpush1.msra.mxu0 0.0
    %489 = vmatprep.subr.mxu0 0.0
    %490 = vmatpush1.msra.mxu0 0.0
    %491 = vmatprep.subr.mxu0 0.0
    %492 = vmatpush1.msra.mxu0 0.0
    %493 = vmatprep.subr.mxu0 0.0
    %494 = vmatpush1.msra.mxu0 0.0
    %495 = vmatprep.subr.mxu0 0.0
    %496 = vmatpush1.msra.mxu0 0.0
    %497 = vmatprep.subr.mxu0 0.0
    %498 = vmatpush1.msra.mxu0 0.0
    %499 = vmatprep.subr.mxu0 0.0
    %500 = vmatpush1.msra.mxu0 0.0
    %501 = vmatprep.subr.mxu0 0.0
    %502 = vmatpush1.msra.mxu0 0.0
    %503 = vmatprep.subr.mxu0 0.0
    %504 = vmatpush1.msra.mxu0 0.0
    %505 = vmatprep.subr.mxu0 0.0
    %506 = vmatpush1.msra.mxu0 0.0
    %507 = vmatprep.subr.mxu0 0.0
    %508 = vmatpush1.msra.mxu0 0.0
    %509 = vmatprep.subr.mxu0 0.0
    %510 = vmatpush1.msra.mxu0 0.0
    %511 = vmatprep.subr.mxu0 0.0
    %512 = vmatpush1.msra.mxu0 0.0
    %513 = vmatprep.subr.mxu0 0.0
    %514 = vmatpush1.msra.mxu0 0.0
    %515 = vmatprep.subr.mxu0 0.0
    %516 = vmatpush1.msra.mxu0 0.0
    %517 = vmatprep.subr.mxu0 0.0
    %518 = vmatpush1.msra.mxu0 0.0
    %519 = vmatprep.subr.mxu0 0.0
    %520 = vmatpush1.msra.mxu0 0.0
    %521 = vmatprep.subr.mxu0 0.0
    %522 = vmatpush1.msra.mxu0 0.0
    %523 = vmatprep.subr.mxu0 0.0
    %524 = vmatpush1.msra.mxu0 0.0
    %525 = vmatprep.subr.mxu0 0.0
    %526 = vmatpush1.msra.mxu0 0.0
    %527 = vmatprep.mubr.f32.mxu0 0.0
    %528 = vmatmul.mubr.f32.gmra.mrb[0].mxu0 %v65
    %v529 = vpop.f32.mrb[0].mxu0
    %v530 = vadd.f32 0.0, %v529
    %v531 = vpop.f32.mrb[0].mxu0
    %532 = vdwg.mxu0
    %v533 = vlog2.pop %v530
    %v534 = vmul.f32 %v533, 0.6931472
    %v535 = vadd.f32 %v534, %v456
    %s536 = scalar_lea.vmem %s0, 40
    %v537 = vld [vmem:[%s536] sm:$0x1f]
    %v538 = vadd.f32 %v535, %v537
    %v539 = vld [vmem:[%s1 + $0x5] sm:$0x1]
    %vm540 = vcmp.gt.f32.partialorder %v539, 0.0
    %v541 = vsel %vm540, 1, 0
    %v542 = vlaneseq
    %v543 = vshrl.u32 %v542, 7
    %v544 = vsub.s32 0, %v543
    %v545 = vrot.slane %v541, %v544
    %vm546 = vcmp.eq.s32.totalorder %v545, 1
    %v547 = vsel %vm546, %v538, %v449
    %v548 = vsel %vm50, %v547, -inf
    %v549 = vrot.slane %v548, 4
    %v550 = vmax.f32 %v548, %v549
    %v551 = vrot.slane %v550, 2
    %v552 = vmax.f32 %v550, %v551
    %v553 = vrot.slane %v552, 1
    %v554 = vmax.f32 %v552, %v553
    %v555 = vsub.f32 %v547, %v554
    %v556 = vmul.f32 %v555, 1.442695
    %v557 = vpow.pop %v556
    %v559 = vsel %vm67, %v557, 0
    %561 = vmatprep.subr.mxu0 0.0
    %562 = vmatpush1.msra.mxu0 %v559
    %563 = vmatprep.subr.mxu0 0.0
    %564 = vmatpush1.msra.mxu0 0.0
    %565 = vmatprep.subr.mxu0 0.0
    %566 = vmatpush1.msra.mxu0 0.0
    %567 = vmatprep.subr.mxu0 0.0
    %568 = vmatpush1.msra.mxu0 0.0
    %569 = vmatprep.subr.mxu0 0.0
    %570 = vmatpush1.msra.mxu0 0.0
    %571 = vmatprep.subr.mxu0 0.0
    %572 = vmatpush1.msra.mxu0 0.0
    %573 = vmatprep.subr.mxu0 0.0
    %574 = vmatpush1.msra.mxu0 0.0
    %575 = vmatprep.subr.mxu0 0.0
    %576 = vmatpush1.msra.mxu0 0.0
    %577 = vmatprep.subr.mxu0 0.0
    %578 = vmatpush1.msra.mxu0 0.0
    %579 = vmatprep.subr.mxu0 0.0
    %580 = vmatpush1.msra.mxu0 0.0
    %581 = vmatprep.subr.mxu0 0.0
    %582 = vmatpush1.msra.mxu0 0.0
    %583 = vmatprep.subr.mxu0 0.0
    %584 = vmatpush1.msra.mxu0 0.0
    %585 = vmatprep.subr.mxu0 0.0
    %586 = vmatpush1.msra.mxu0 0.0
    %587 = vmatprep.subr.mxu0 0.0
    %588 = vmatpush1.msra.mxu0 0.0
    %589 = vmatprep.subr.mxu0 0.0
    %590 = vmatpush1.msra.mxu0 0.0
    %591 = vmatprep.subr.mxu0 0.0
    %592 = vmatpush1.msra.mxu0 0.0
    %593 = vmatprep.subr.mxu0 0.0
    %594 = vmatpush1.msra.mxu0 0.0
    %595 = vmatprep.subr.mxu0 0.0
    %596 = vmatpush1.msra.mxu0 0.0
    %597 = vmatprep.subr.mxu0 0.0
    %598 = vmatpush1.msra.mxu0 0.0
    %599 = vmatprep.subr.mxu0 0.0
    %600 = vmatpush1.msra.mxu0 0.0
    %601 = vmatprep.subr.mxu0 0.0
    %602 = vmatpush1.msra.mxu0 0.0
    %603 = vmatprep.subr.mxu0 0.0
    %604 = vmatpush1.msra.mxu0 0.0
    %605 = vmatprep.subr.mxu0 0.0
    %606 = vmatpush1.msra.mxu0 0.0
    %607 = vmatprep.subr.mxu0 0.0
    %608 = vmatpush1.msra.mxu0 0.0
    %609 = vmatprep.subr.mxu0 0.0
    %610 = vmatpush1.msra.mxu0 0.0
    %611 = vmatprep.subr.mxu0 0.0
    %612 = vmatpush1.msra.mxu0 0.0
    %613 = vmatprep.subr.mxu0 0.0
    %614 = vmatpush1.msra.mxu0 0.0
    %615 = vmatprep.subr.mxu0 0.0
    %616 = vmatpush1.msra.mxu0 0.0
    %617 = vmatprep.subr.mxu0 0.0
    %618 = vmatpush1.msra.mxu0 0.0
    %619 = vmatprep.subr.mxu0 0.0
    %620 = vmatpush1.msra.mxu0 0.0
    %621 = vmatprep.subr.mxu0 0.0
    %622 = vmatpush1.msra.mxu0 0.0
    %623 = vmatprep.subr.mxu0 0.0
    %624 = vmatpush1.msra.mxu0 0.0
    %625 = vmatprep.mubr.f32.mxu0 0.0
    %626 = vmatmul.mubr.f32.gmra.mrb[0].mxu0 %v65
    %v627 = vpop.f32.mrb[0].mxu0
    %v628 = vadd.f32 0.0, %v627
    %v629 = vpop.f32.mrb[0].mxu0
    %630 = vdwg.mxu0
    %v631 = vlog2.pop %v628
    %v632 = vmul.f32 %v631, 0.6931472
    %v633 = vadd.f32 %v632, %v554
    %s634 = scalar_lea.vmem %s0, 48
    %v635 = vld [vmem:[%s634] sm:$0x1f]
    %v636 = vadd.f32 %v633, %v635
    %v637 = vld [vmem:[%s1 + $0x6] sm:$0x1]
    %vm638 = vcmp.gt.f32.partialorder %v637, 0.0
    %v639 = vsel %vm638, 1, 0
    %v640 = vlaneseq
    %v641 = vshrl.u32 %v640, 7
    %v642 = vsub.s32 0, %v641
    %v643 = vrot.slane %v639, %v642
    %vm644 = vcmp.eq.s32.totalorder %v643, 1
    %v645 = vsel %vm644, %v636, %v547
    %v646 = vsel %vm50, %v645, -inf
    %v647 = vrot.slane %v646, 4
    %v648 = vmax.f32 %v646, %v647
    %v649 = vrot.slane %v648, 2
    %v650 = vmax.f32 %v648, %v649
    %v651 = vrot.slane %v650, 1
    %v652 = vmax.f32 %v650, %v651
    %v653 = vsub.f32 %v645, %v652
    %v654 = vmul.f32 %v653, 1.442695
    %v655 = vpow.pop %v654
    %v657 = vsel %vm67, %v655, 0
    %659 = vmatprep.subr.mxu0 0.0
    %660 = vmatpush1.msra.mxu0 %v657
    %661 = vmatprep.subr.mxu0 0.0
    %662 = vmatpush1.msra.mxu0 0.0
    %663 = vmatprep.subr.mxu0 0.0
    %664 = vmatpush1.msra.mxu0 0.0
    %665 = vmatprep.subr.mxu0 0.0
    %666 = vmatpush1.msra.mxu0 0.0
    %667 = vmatprep.subr.mxu0 0.0
    %668 = vmatpush1.msra.mxu0 0.0
    %669 = vmatprep.subr.mxu0 0.0
    %670 = vmatpush1.msra.mxu0 0.0
    %671 = vmatprep.subr.mxu0 0.0
    %672 = vmatpush1.msra.mxu0 0.0
    %673 = vmatprep.subr.mxu0 0.0
    %674 = vmatpush1.msra.mxu0 0.0
    %675 = vmatprep.subr.mxu0 0.0
    %676 = vmatpush1.msra.mxu0 0.0
    %677 = vmatprep.subr.mxu0 0.0
    %678 = vmatpush1.msra.mxu0 0.0
    %679 = vmatprep.subr.mxu0 0.0
    %680 = vmatpush1.msra.mxu0 0.0
    %681 = vmatprep.subr.mxu0 0.0
    %682 = vmatpush1.msra.mxu0 0.0
    %683 = vmatprep.subr.mxu0 0.0
    %684 = vmatpush1.msra.mxu0 0.0
    %685 = vmatprep.subr.mxu0 0.0
    %686 = vmatpush1.msra.mxu0 0.0
    %687 = vmatprep.subr.mxu0 0.0
    %688 = vmatpush1.msra.mxu0 0.0
    %689 = vmatprep.subr.mxu0 0.0
    %690 = vmatpush1.msra.mxu0 0.0
    %691 = vmatprep.subr.mxu0 0.0
    %692 = vmatpush1.msra.mxu0 0.0
    %693 = vmatprep.subr.mxu0 0.0
    %694 = vmatpush1.msra.mxu0 0.0
    %695 = vmatprep.subr.mxu0 0.0
    %696 = vmatpush1.msra.mxu0 0.0
    %697 = vmatprep.subr.mxu0 0.0
    %698 = vmatpush1.msra.mxu0 0.0
    %699 = vmatprep.subr.mxu0 0.0
    %700 = vmatpush1.msra.mxu0 0.0
    %701 = vmatprep.subr.mxu0 0.0
    %702 = vmatpush1.msra.mxu0 0.0
    %703 = vmatprep.subr.mxu0 0.0
    %704 = vmatpush1.msra.mxu0 0.0
    %705 = vmatprep.subr.mxu0 0.0
    %706 = vmatpush1.msra.mxu0 0.0
    %707 = vmatprep.subr.mxu0 0.0
    %708 = vmatpush1.msra.mxu0 0.0
    %709 = vmatprep.subr.mxu0 0.0
    %710 = vmatpush1.msra.mxu0 0.0
    %711 = vmatprep.subr.mxu0 0.0
    %712 = vmatpush1.msra.mxu0 0.0
    %713 = vmatprep.subr.mxu0 0.0
    %714 = vmatpush1.msra.mxu0 0.0
    %715 = vmatprep.subr.mxu0 0.0
    %716 = vmatpush1.msra.mxu0 0.0
    %717 = vmatprep.subr.mxu0 0.0
    %718 = vmatpush1.msra.mxu0 0.0
    %719 = vmatprep.subr.mxu0 0.0
    %720 = vmatpush1.msra.mxu0 0.0
    %721 = vmatprep.subr.mxu0 0.0
    %722 = vmatpush1.msra.mxu0 0.0
    %723 = vmatprep.mubr.f32.mxu0 0.0
    %724 = vmatmul.mubr.f32.gmra.mrb[0].mxu0 %v65
    %v725 = vpop.f32.mrb[0].mxu0
    %v726 = vadd.f32 0.0, %v725
    %v727 = vpop.f32.mrb[0].mxu0
    %728 = vdwg.mxu0
    %v729 = vlog2.pop %v726
    %v730 = vmul.f32 %v729, 0.6931472
    %v731 = vadd.f32 %v730, %v652
    %s732 = scalar_lea.vmem %s0, 56
    %v733 = vld [vmem:[%s732] sm:$0x1f]
    %v734 = vadd.f32 %v731, %v733
    %v735 = vld [vmem:[%s1 + $0x7] sm:$0x1]
    %vm736 = vcmp.gt.f32.partialorder %v735, 0.0
    %v737 = vsel %vm736, 1, 0
    %v738 = vlaneseq
    %v739 = vshrl.u32 %v738, 7
    %v740 = vsub.s32 0, %v739
    %v741 = vrot.slane %v737, %v740
    %vm742 = vcmp.eq.s32.totalorder %v741, 1
    %v743 = vsel %vm742, %v734, %v645
    %v744 = vsel %vm50, %v743, -inf
    %v745 = vrot.slane %v744, 4
    %v746 = vmax.f32 %v744, %v745
    %v747 = vrot.slane %v746, 2
    %v748 = vmax.f32 %v746, %v747
    %v749 = vrot.slane %v748, 1
    %v750 = vmax.f32 %v748, %v749
    %v751 = vsub.f32 %v743, %v750
    %v752 = vmul.f32 %v751, 1.442695
    %v753 = vpow.pop %v752
    %v755 = vsel %vm67, %v753, 0
    %757 = vmatprep.subr.mxu0 0.0
    %758 = vmatpush1.msra.mxu0 %v755
    %759 = vmatprep.subr.mxu0 0.0
    %760 = vmatpush1.msra.mxu0 0.0
    %761 = vmatprep.subr.mxu0 0.0
    %762 = vmatpush1.msra.mxu0 0.0
    %763 = vmatprep.subr.mxu0 0.0
    %764 = vmatpush1.msra.mxu0 0.0
    %765 = vmatprep.subr.mxu0 0.0
    %766 = vmatpush1.msra.mxu0 0.0
    %767 = vmatprep.subr.mxu0 0.0
    %768 = vmatpush1.msra.mxu0 0.0
    %769 = vmatprep.subr.mxu0 0.0
    %770 = vmatpush1.msra.mxu0 0.0
    %771 = vmatprep.subr.mxu0 0.0
    %772 = vmatpush1.msra.mxu0 0.0
    %773 = vmatprep.subr.mxu0 0.0
    %774 = vmatpush1.msra.mxu0 0.0
    %775 = vmatprep.subr.mxu0 0.0
    %776 = vmatpush1.msra.mxu0 0.0
    %777 = vmatprep.subr.mxu0 0.0
    %778 = vmatpush1.msra.mxu0 0.0
    %779 = vmatprep.subr.mxu0 0.0
    %780 = vmatpush1.msra.mxu0 0.0
    %781 = vmatprep.subr.mxu0 0.0
    %782 = vmatpush1.msra.mxu0 0.0
    %783 = vmatprep.subr.mxu0 0.0
    %784 = vmatpush1.msra.mxu0 0.0
    %785 = vmatprep.subr.mxu0 0.0
    %786 = vmatpush1.msra.mxu0 0.0
    %787 = vmatprep.subr.mxu0 0.0
    %788 = vmatpush1.msra.mxu0 0.0
    %789 = vmatprep.subr.mxu0 0.0
    %790 = vmatpush1.msra.mxu0 0.0
    %791 = vmatprep.subr.mxu0 0.0
    %792 = vmatpush1.msra.mxu0 0.0
    %793 = vmatprep.subr.mxu0 0.0
    %794 = vmatpush1.msra.mxu0 0.0
    %795 = vmatprep.subr.mxu0 0.0
    %796 = vmatpush1.msra.mxu0 0.0
    %797 = vmatprep.subr.mxu0 0.0
    %798 = vmatpush1.msra.mxu0 0.0
    %799 = vmatprep.subr.mxu0 0.0
    %800 = vmatpush1.msra.mxu0 0.0
    %801 = vmatprep.subr.mxu0 0.0
    %802 = vmatpush1.msra.mxu0 0.0
    %803 = vmatprep.subr.mxu0 0.0
    %804 = vmatpush1.msra.mxu0 0.0
    %805 = vmatprep.subr.mxu0 0.0
    %806 = vmatpush1.msra.mxu0 0.0
    %807 = vmatprep.subr.mxu0 0.0
    %808 = vmatpush1.msra.mxu0 0.0
    %809 = vmatprep.subr.mxu0 0.0
    %810 = vmatpush1.msra.mxu0 0.0
    %811 = vmatprep.subr.mxu0 0.0
    %812 = vmatpush1.msra.mxu0 0.0
    %813 = vmatprep.subr.mxu0 0.0
    %814 = vmatpush1.msra.mxu0 0.0
    %815 = vmatprep.subr.mxu0 0.0
    %816 = vmatpush1.msra.mxu0 0.0
    %817 = vmatprep.subr.mxu0 0.0
    %818 = vmatpush1.msra.mxu0 0.0
    %819 = vmatprep.subr.mxu0 0.0
    %820 = vmatpush1.msra.mxu0 0.0
    %821 = vmatprep.mubr.f32.mxu0 0.0
    %822 = vmatmul.mubr.f32.gmra.mrb[0].mxu0 %v65
    %v823 = vpop.f32.mrb[0].mxu0
    %v824 = vadd.f32 0.0, %v823
    %v825 = vpop.f32.mrb[0].mxu0
    %826 = vdwg.mxu0
    %v827 = vlog2.pop %v824
    %v828 = vmul.f32 %v827, 0.6931472
    %v829 = vadd.f32 %v828, %v750
    %s830 = scalar_lea.vmem %s0, 64
    %v831 = vld [vmem:[%s830] sm:$0x1f]
    %v832 = vadd.f32 %v829, %v831
    %v833 = vld [vmem:[%s1 + $0x8] sm:$0x1]
    %vm834 = vcmp.gt.f32.partialorder %v833, 0.0
    %v835 = vsel %vm834, 1, 0
    %v836 = vlaneseq
    %v837 = vshrl.u32 %v836, 7
    %v838 = vsub.s32 0, %v837
    %v839 = vrot.slane %v835, %v838
    %vm840 = vcmp.eq.s32.totalorder %v839, 1
    %v841 = vsel %vm840, %v832, %v743
    %v842 = vsel %vm50, %v841, -inf
    %v843 = vrot.slane %v842, 4
    %v844 = vmax.f32 %v842, %v843
    %v845 = vrot.slane %v844, 2
    %v846 = vmax.f32 %v844, %v845
    %v847 = vrot.slane %v846, 1
    %v848 = vmax.f32 %v846, %v847
    %v849 = vsub.f32 %v841, %v848
    %v850 = vmul.f32 %v849, 1.442695
    %v851 = vpow.pop %v850
    %v853 = vsel %vm67, %v851, 0
    %855 = vmatprep.subr.mxu0 0.0
    %856 = vmatpush1.msra.mxu0 %v853
    %857 = vmatprep.subr.mxu0 0.0
    %858 = vmatpush1.msra.mxu0 0.0
    %859 = vmatprep.subr.mxu0 0.0
    %860 = vmatpush1.msra.mxu0 0.0
    %861 = vmatprep.subr.mxu0 0.0
    %862 = vmatpush1.msra.mxu0 0.0
    %863 = vmatprep.subr.mxu0 0.0
    %864 = vmatpush1.msra.mxu0 0.0
    %865 = vmatprep.subr.mxu0 0.0
    %866 = vmatpush1.msra.mxu0 0.0
    %867 = vmatprep.subr.mxu0 0.0
    %868 = vmatpush1.msra.mxu0 0.0
    %869 = vmatprep.subr.mxu0 0.0
    %870 = vmatpush1.msra.mxu0 0.0
    %871 = vmatprep.subr.mxu0 0.0
    %872 = vmatpush1.msra.mxu0 0.0
    %873 = vmatprep.subr.mxu0 0.0
    %874 = vmatpush1.msra.mxu0 0.0
    %875 = vmatprep.subr.mxu0 0.0
    %876 = vmatpush1.msra.mxu0 0.0
    %877 = vmatprep.subr.mxu0 0.0
    %878 = vmatpush1.msra.mxu0 0.0
    %879 = vmatprep.subr.mxu0 0.0
    %880 = vmatpush1.msra.mxu0 0.0
    %881 = vmatprep.subr.mxu0 0.0
    %882 = vmatpush1.msra.mxu0 0.0
    %883 = vmatprep.subr.mxu0 0.0
    %884 = vmatpush1.msra.mxu0 0.0
    %885 = vmatprep.subr.mxu0 0.0
    %886 = vmatpush1.msra.mxu0 0.0
    %887 = vmatprep.subr.mxu0 0.0
    %888 = vmatpush1.msra.mxu0 0.0
    %889 = vmatprep.subr.mxu0 0.0
    %890 = vmatpush1.msra.mxu0 0.0
    %891 = vmatprep.subr.mxu0 0.0
    %892 = vmatpush1.msra.mxu0 0.0
    %893 = vmatprep.subr.mxu0 0.0
    %894 = vmatpush1.msra.mxu0 0.0
    %895 = vmatprep.subr.mxu0 0.0
    %896 = vmatpush1.msra.mxu0 0.0
    %897 = vmatprep.subr.mxu0 0.0
    %898 = vmatpush1.msra.mxu0 0.0
    %899 = vmatprep.subr.mxu0 0.0
    %900 = vmatpush1.msra.mxu0 0.0
    %901 = vmatprep.subr.mxu0 0.0
    %902 = vmatpush1.msra.mxu0 0.0
    %903 = vmatprep.subr.mxu0 0.0
    %904 = vmatpush1.msra.mxu0 0.0
    %905 = vmatprep.subr.mxu0 0.0
    %906 = vmatpush1.msra.mxu0 0.0
    %907 = vmatprep.subr.mxu0 0.0
    %908 = vmatpush1.msra.mxu0 0.0
    %909 = vmatprep.subr.mxu0 0.0
    %910 = vmatpush1.msra.mxu0 0.0
    %911 = vmatprep.subr.mxu0 0.0
    %912 = vmatpush1.msra.mxu0 0.0
    %913 = vmatprep.subr.mxu0 0.0
    %914 = vmatpush1.msra.mxu0 0.0
    %915 = vmatprep.subr.mxu0 0.0
    %916 = vmatpush1.msra.mxu0 0.0
    %917 = vmatprep.subr.mxu0 0.0
    %918 = vmatpush1.msra.mxu0 0.0
    %919 = vmatprep.mubr.f32.mxu0 0.0
    %920 = vmatmul.mubr.f32.gmra.mrb[0].mxu0 %v65
    %v921 = vpop.f32.mrb[0].mxu0
    %v922 = vadd.f32 0.0, %v921
    %v923 = vpop.f32.mrb[0].mxu0
    %924 = vdwg.mxu0
    %v925 = vlog2.pop %v922
    %v926 = vmul.f32 %v925, 0.6931472
    %v927 = vadd.f32 %v926, %v848
    %s928 = scalar_lea.vmem %s0, 72
    %v929 = vld [vmem:[%s928] sm:$0x1f]
    %v930 = vadd.f32 %v927, %v929
    %v931 = vld [vmem:[%s1 + $0x9] sm:$0x1]
    %vm932 = vcmp.gt.f32.partialorder %v931, 0.0
    %v933 = vsel %vm932, 1, 0
    %v934 = vlaneseq
    %v935 = vshrl.u32 %v934, 7
    %v936 = vsub.s32 0, %v935
    %v937 = vrot.slane %v933, %v936
    %vm938 = vcmp.eq.s32.totalorder %v937, 1
    %v939 = vsel %vm938, %v930, %v841
    %v940 = vsel %vm50, %v939, -inf
    %v941 = vrot.slane %v940, 4
    %v942 = vmax.f32 %v940, %v941
    %v943 = vrot.slane %v942, 2
    %v944 = vmax.f32 %v942, %v943
    %v945 = vrot.slane %v944, 1
    %v946 = vmax.f32 %v944, %v945
    %v947 = vsub.f32 %v939, %v946
    %v948 = vmul.f32 %v947, 1.442695
    %v949 = vpow.pop %v948
    %v951 = vsel %vm67, %v949, 0
    %953 = vmatprep.subr.mxu0 0.0
    %954 = vmatpush1.msra.mxu0 %v951
    %955 = vmatprep.subr.mxu0 0.0
    %956 = vmatpush1.msra.mxu0 0.0
    %957 = vmatprep.subr.mxu0 0.0
    %958 = vmatpush1.msra.mxu0 0.0
    %959 = vmatprep.subr.mxu0 0.0
    %960 = vmatpush1.msra.mxu0 0.0
    %961 = vmatprep.subr.mxu0 0.0
    %962 = vmatpush1.msra.mxu0 0.0
    %963 = vmatprep.subr.mxu0 0.0
    %964 = vmatpush1.msra.mxu0 0.0
    %965 = vmatprep.subr.mxu0 0.0
    %966 = vmatpush1.msra.mxu0 0.0
    %967 = vmatprep.subr.mxu0 0.0
    %968 = vmatpush1.msra.mxu0 0.0
    %969 = vmatprep.subr.mxu0 0.0
    %970 = vmatpush1.msra.mxu0 0.0
    %971 = vmatprep.subr.mxu0 0.0
    %972 = vmatpush1.msra.mxu0 0.0
    %973 = vmatprep.subr.mxu0 0.0
    %974 = vmatpush1.msra.mxu0 0.0
    %975 = vmatprep.subr.mxu0 0.0
    %976 = vmatpush1.msra.mxu0 0.0
    %977 = vmatprep.subr.mxu0 0.0
    %978 = vmatpush1.msra.mxu0 0.0
    %979 = vmatprep.subr.mxu0 0.0
    %980 = vmatpush1.msra.mxu0 0.0
    %981 = vmatprep.subr.mxu0 0.0
    %982 = vmatpush1.msra.mxu0 0.0
    %983 = vmatprep.subr.mxu0 0.0
    %984 = vmatpush1.msra.mxu0 0.0
    %985 = vmatprep.subr.mxu0 0.0
    %986 = vmatpush1.msra.mxu0 0.0
    %987 = vmatprep.subr.mxu0 0.0
    %988 = vmatpush1.msra.mxu0 0.0
    %989 = vmatprep.subr.mxu0 0.0
    %990 = vmatpush1.msra.mxu0 0.0
    %991 = vmatprep.subr.mxu0 0.0
    %992 = vmatpush1.msra.mxu0 0.0
    %993 = vmatprep.subr.mxu0 0.0
    %994 = vmatpush1.msra.mxu0 0.0
    %995 = vmatprep.subr.mxu0 0.0
    %996 = vmatpush1.msra.mxu0 0.0
    %997 = vmatprep.subr.mxu0 0.0
    %998 = vmatpush1.msra.mxu0 0.0
    %999 = vmatprep.subr.mxu0 0.0
    %1000 = vmatpush1.msra.mxu0 0.0
    %1001 = vmatprep.subr.mxu0 0.0
    %1002 = vmatpush1.msra.mxu0 0.0
    %1003 = vmatprep.subr.mxu0 0.0
    %1004 = vmatpush1.msra.mxu0 0.0
    %1005 = vmatprep.subr.mxu0 0.0
    %1006 = vmatpush1.msra.mxu0 0.0
    %1007 = vmatprep.subr.mxu0 0.0
    %1008 = vmatpush1.msra.mxu0 0.0
    %1009 = vmatprep.subr.mxu0 0.0
    %1010 = vmatpush1.msra.mxu0 0.0
    %1011 = vmatprep.subr.mxu0 0.0
    %1012 = vmatpush1.msra.mxu0 0.0
    %1013 = vmatprep.subr.mxu0 0.0
    %1014 = vmatpush1.msra.mxu0 0.0
    %1015 = vmatprep.subr.mxu0 0.0
    %1016 = vmatpush1.msra.mxu0 0.0
    %1017 = vmatprep.mubr.f32.mxu0 0.0
    %1018 = vmatmul.mubr.f32.gmra.mrb[0].mxu0 %v65
    %v1019 = vpop.f32.mrb[0].mxu0
    %v1020 = vadd.f32 0.0, %v1019
    %v1021 = vpop.f32.mrb[0].mxu0
    %1022 = vdwg.mxu0
    %v1023 = vlog2.pop %v1020
    %v1024 = vmul.f32 %v1023, 0.6931472
    %v1025 = vadd.f32 %v1024, %v946
    %s1026 = scalar_lea.vmem %s0, 80
    %v1027 = vld [vmem:[%s1026] sm:$0x1f]
    %v1028 = vadd.f32 %v1025, %v1027
    %v1029 = vld [vmem:[%s1 + $0xa] sm:$0x1]
    %vm1030 = vcmp.gt.f32.partialorder %v1029, 0.0
    %v1031 = vsel %vm1030, 1, 0
    %v1032 = vlaneseq
    %v1033 = vshrl.u32 %v1032, 7
    %v1034 = vsub.s32 0, %v1033
    %v1035 = vrot.slane %v1031, %v1034
    %vm1036 = vcmp.eq.s32.totalorder %v1035, 1
    %v1037 = vsel %vm1036, %v1028, %v939
    %v1038 = vsel %vm50, %v1037, -inf
    %v1039 = vrot.slane %v1038, 4
    %v1040 = vmax.f32 %v1038, %v1039
    %v1041 = vrot.slane %v1040, 2
    %v1042 = vmax.f32 %v1040, %v1041
    %v1043 = vrot.slane %v1042, 1
    %v1044 = vmax.f32 %v1042, %v1043
    %v1045 = vsub.f32 %v1037, %v1044
    %v1046 = vmul.f32 %v1045, 1.442695
    %v1047 = vpow.pop %v1046
    %v1049 = vsel %vm67, %v1047, 0
    %1051 = vmatprep.subr.mxu0 0.0
    %1052 = vmatpush1.msra.mxu0 %v1049
    %1053 = vmatprep.subr.mxu0 0.0
    %1054 = vmatpush1.msra.mxu0 0.0
    %1055 = vmatprep.subr.mxu0 0.0
    %1056 = vmatpush1.msra.mxu0 0.0
    %1057 = vmatprep.subr.mxu0 0.0
    %1058 = vmatpush1.msra.mxu0 0.0
    %1059 = vmatprep.subr.mxu0 0.0
    %1060 = vmatpush1.msra.mxu0 0.0
    %1061 = vmatprep.subr.mxu0 0.0
    %1062 = vmatpush1.msra.mxu0 0.0
    %1063 = vmatprep.subr.mxu0 0.0
    %1064 = vmatpush1.msra.mxu0 0.0
    %1065 = vmatprep.subr.mxu0 0.0
    %1066 = vmatpush1.msra.mxu0 0.0
    %1067 = vmatprep.subr.mxu0 0.0
    %1068 = vmatpush1.msra.mxu0 0.0
    %1069 = vmatprep.subr.mxu0 0.0
    %1070 = vmatpush1.msra.mxu0 0.0
    %1071 = vmatprep.subr.mxu0 0.0
    %1072 = vmatpush1.msra.mxu0 0.0
    %1073 = vmatprep.subr.mxu0 0.0
    %1074 = vmatpush1.msra.mxu0 0.0
    %1075 = vmatprep.subr.mxu0 0.0
    %1076 = vmatpush1.msra.mxu0 0.0
    %1077 = vmatprep.subr.mxu0 0.0
    %1078 = vmatpush1.msra.mxu0 0.0
    %1079 = vmatprep.subr.mxu0 0.0
    %1080 = vmatpush1.msra.mxu0 0.0
    %1081 = vmatprep.subr.mxu0 0.0
    %1082 = vmatpush1.msra.mxu0 0.0
    %1083 = vmatprep.subr.mxu0 0.0
    %1084 = vmatpush1.msra.mxu0 0.0
    %1085 = vmatprep.subr.mxu0 0.0
    %1086 = vmatpush1.msra.mxu0 0.0
    %1087 = vmatprep.subr.mxu0 0.0
    %1088 = vmatpush1.msra.mxu0 0.0
    %1089 = vmatprep.subr.mxu0 0.0
    %1090 = vmatpush1.msra.mxu0 0.0
    %1091 = vmatprep.subr.mxu0 0.0
    %1092 = vmatpush1.msra.mxu0 0.0
    %1093 = vmatprep.subr.mxu0 0.0
    %1094 = vmatpush1.msra.mxu0 0.0
    %1095 = vmatprep.subr.mxu0 0.0
    %1096 = vmatpush1.msra.mxu0 0.0
    %1097 = vmatprep.subr.mxu0 0.0
    %1098 = vmatpush1.msra.mxu0 0.0
    %1099 = vmatprep.subr.mxu0 0.0
    %1100 = vmatpush1.msra.mxu0 0.0
    %1101 = vmatprep.subr.mxu0 0.0
    %1102 = vmatpush1.msra.mxu0 0.0
    %1103 = vmatprep.subr.mxu0 0.0
    %1104 = vmatpush1.msra.mxu0 0.0
    %1105 = vmatprep.subr.mxu0 0.0
    %1106 = vmatpush1.msra.mxu0 0.0
    %1107 = vmatprep.subr.mxu0 0.0
    %1108 = vmatpush1.msra.mxu0 0.0
    %1109 = vmatprep.subr.mxu0 0.0
    %1110 = vmatpush1.msra.mxu0 0.0
    %1111 = vmatprep.subr.mxu0 0.0
    %1112 = vmatpush1.msra.mxu0 0.0
    %1113 = vmatprep.subr.mxu0 0.0
    %1114 = vmatpush1.msra.mxu0 0.0
    %1115 = vmatprep.mubr.f32.mxu0 0.0
    %1116 = vmatmul.mubr.f32.gmra.mrb[0].mxu0 %v65
    %v1117 = vpop.f32.mrb[0].mxu0
    %v1118 = vadd.f32 0.0, %v1117
    %v1119 = vpop.f32.mrb[0].mxu0
    %1120 = vdwg.mxu0
    %v1121 = vlog2.pop %v1118
    %v1122 = vmul.f32 %v1121, 0.6931472
    %v1123 = vadd.f32 %v1122, %v1044
    %s1124 = scalar_lea.vmem %s0, 88
    %v1125 = vld [vmem:[%s1124] sm:$0x1f]
    %v1126 = vadd.f32 %v1123, %v1125
    %v1127 = vld [vmem:[%s1 + $0xb] sm:$0x1]
    %vm1128 = vcmp.gt.f32.partialorder %v1127, 0.0
    %v1129 = vsel %vm1128, 1, 0
    %v1130 = vlaneseq
    %v1131 = vshrl.u32 %v1130, 7
    %v1132 = vsub.s32 0, %v1131
    %v1133 = vrot.slane %v1129, %v1132
    %vm1134 = vcmp.eq.s32.totalorder %v1133, 1
    %v1135 = vsel %vm1134, %v1126, %v1037
    %v1136 = vsel %vm50, %v1135, -inf
    %v1137 = vrot.slane %v1136, 4
    %v1138 = vmax.f32 %v1136, %v1137
    %v1139 = vrot.slane %v1138, 2
    %v1140 = vmax.f32 %v1138, %v1139
    %v1141 = vrot.slane %v1140, 1
    %v1142 = vmax.f32 %v1140, %v1141
    %v1143 = vsub.f32 %v1135, %v1142
    %v1144 = vmul.f32 %v1143, 1.442695
    %v1145 = vpow.pop %v1144
    %v1147 = vsel %vm67, %v1145, 0
    %1149 = vmatprep.subr.mxu0 0.0
    %1150 = vmatpush1.msra.mxu0 %v1147
    %1151 = vmatprep.subr.mxu0 0.0
    %1152 = vmatpush1.msra.mxu0 0.0
    %1153 = vmatprep.subr.mxu0 0.0
    %1154 = vmatpush1.msra.mxu0 0.0
    %1155 = vmatprep.subr.mxu0 0.0
    %1156 = vmatpush1.msra.mxu0 0.0
    %1157 = vmatprep.subr.mxu0 0.0
    %1158 = vmatpush1.msra.mxu0 0.0
    %1159 = vmatprep.subr.mxu0 0.0
    %1160 = vmatpush1.msra.mxu0 0.0
    %1161 = vmatprep.subr.mxu0 0.0
    %1162 = vmatpush1.msra.mxu0 0.0
    %1163 = vmatprep.subr.mxu0 0.0
    %1164 = vmatpush1.msra.mxu0 0.0
    %1165 = vmatprep.subr.mxu0 0.0
    %1166 = vmatpush1.msra.mxu0 0.0
    %1167 = vmatprep.subr.mxu0 0.0
    %1168 = vmatpush1.msra.mxu0 0.0
    %1169 = vmatprep.subr.mxu0 0.0
    %1170 = vmatpush1.msra.mxu0 0.0
    %1171 = vmatprep.subr.mxu0 0.0
    %1172 = vmatpush1.msra.mxu0 0.0
    %1173 = vmatprep.subr.mxu0 0.0
    %1174 = vmatpush1.msra.mxu0 0.0
    %1175 = vmatprep.subr.mxu0 0.0
    %1176 = vmatpush1.msra.mxu0 0.0
    %1177 = vmatprep.subr.mxu0 0.0
    %1178 = vmatpush1.msra.mxu0 0.0
    %1179 = vmatprep.subr.mxu0 0.0
    %1180 = vmatpush1.msra.mxu0 0.0
    %1181 = vmatprep.subr.mxu0 0.0
    %1182 = vmatpush1.msra.mxu0 0.0
    %1183 = vmatprep.subr.mxu0 0.0
    %1184 = vmatpush1.msra.mxu0 0.0
    %1185 = vmatprep.subr.mxu0 0.0
    %1186 = vmatpush1.msra.mxu0 0.0
    %1187 = vmatprep.subr.mxu0 0.0
    %1188 = vmatpush1.msra.mxu0 0.0
    %1189 = vmatprep.subr.mxu0 0.0
    %1190 = vmatpush1.msra.mxu0 0.0
    %1191 = vmatprep.subr.mxu0 0.0
    %1192 = vmatpush1.msra.mxu0 0.0
    %1193 = vmatprep.subr.mxu0 0.0
    %1194 = vmatpush1.msra.mxu0 0.0
    %1195 = vmatprep.subr.mxu0 0.0
    %1196 = vmatpush1.msra.mxu0 0.0
    %1197 = vmatprep.subr.mxu0 0.0
    %1198 = vmatpush1.msra.mxu0 0.0
    %1199 = vmatprep.subr.mxu0 0.0
    %1200 = vmatpush1.msra.mxu0 0.0
    %1201 = vmatprep.subr.mxu0 0.0
    %1202 = vmatpush1.msra.mxu0 0.0
    %1203 = vmatprep.subr.mxu0 0.0
    %1204 = vmatpush1.msra.mxu0 0.0
    %1205 = vmatprep.subr.mxu0 0.0
    %1206 = vmatpush1.msra.mxu0 0.0
    %1207 = vmatprep.subr.mxu0 0.0
    %1208 = vmatpush1.msra.mxu0 0.0
    %1209 = vmatprep.subr.mxu0 0.0
    %1210 = vmatpush1.msra.mxu0 0.0
    %1211 = vmatprep.subr.mxu0 0.0
    %1212 = vmatpush1.msra.mxu0 0.0
    %1213 = vmatprep.mubr.f32.mxu0 0.0
    %1214 = vmatmul.mubr.f32.gmra.mrb[0].mxu0 %v65
    %v1215 = vpop.f32.mrb[0].mxu0
    %v1216 = vadd.f32 0.0, %v1215
    %v1217 = vpop.f32.mrb[0].mxu0
    %1218 = vdwg.mxu0
    %v1219 = vlog2.pop %v1216
    %v1220 = vmul.f32 %v1219, 0.6931472
    %v1221 = vadd.f32 %v1220, %v1142
    %s1222 = scalar_lea.vmem %s0, 96
    %v1223 = vld [vmem:[%s1222] sm:$0x1f]
    %v1224 = vadd.f32 %v1221, %v1223
    %v1225 = vld [vmem:[%s1 + $0xc] sm:$0x1]
    %vm1226 = vcmp.gt.f32.partialorder %v1225, 0.0
    %v1227 = vsel %vm1226, 1, 0
    %v1228 = vlaneseq
    %v1229 = vshrl.u32 %v1228, 7
    %v1230 = vsub.s32 0, %v1229
    %v1231 = vrot.slane %v1227, %v1230
    %vm1232 = vcmp.eq.s32.totalorder %v1231, 1
    %v1233 = vsel %vm1232, %v1224, %v1135
    %v1234 = vsel %vm50, %v1233, -inf
    %v1235 = vrot.slane %v1234, 4
    %v1236 = vmax.f32 %v1234, %v1235
    %v1237 = vrot.slane %v1236, 2
    %v1238 = vmax.f32 %v1236, %v1237
    %v1239 = vrot.slane %v1238, 1
    %v1240 = vmax.f32 %v1238, %v1239
    %v1241 = vsub.f32 %v1233, %v1240
    %v1242 = vmul.f32 %v1241, 1.442695
    %v1243 = vpow.pop %v1242
    %v1245 = vsel %vm67, %v1243, 0
    %1247 = vmatprep.subr.mxu0 0.0
    %1248 = vmatpush1.msra.mxu0 %v1245
    %1249 = vmatprep.subr.mxu0 0.0
    %1250 = vmatpush1.msra.mxu0 0.0
    %1251 = vmatprep.subr.mxu0 0.0
    %1252 = vmatpush1.msra.mxu0 0.0
    %1253 = vmatprep.subr.mxu0 0.0
    %1254 = vmatpush1.msra.mxu0 0.0
    %1255 = vmatprep.subr.mxu0 0.0
    %1256 = vmatpush1.msra.mxu0 0.0
    %1257 = vmatprep.subr.mxu0 0.0
    %1258 = vmatpush1.msra.mxu0 0.0
    %1259 = vmatprep.subr.mxu0 0.0
    %1260 = vmatpush1.msra.mxu0 0.0
    %1261 = vmatprep.subr.mxu0 0.0
    %1262 = vmatpush1.msra.mxu0 0.0
    %1263 = vmatprep.subr.mxu0 0.0
    %1264 = vmatpush1.msra.mxu0 0.0
    %1265 = vmatprep.subr.mxu0 0.0
    %1266 = vmatpush1.msra.mxu0 0.0
    %1267 = vmatprep.subr.mxu0 0.0
    %1268 = vmatpush1.msra.mxu0 0.0
    %1269 = vmatprep.subr.mxu0 0.0
    %1270 = vmatpush1.msra.mxu0 0.0
    %1271 = vmatprep.subr.mxu0 0.0
    %1272 = vmatpush1.msra.mxu0 0.0
    %1273 = vmatprep.subr.mxu0 0.0
    %1274 = vmatpush1.msra.mxu0 0.0
    %1275 = vmatprep.subr.mxu0 0.0
    %1276 = vmatpush1.msra.mxu0 0.0
    %1277 = vmatprep.subr.mxu0 0.0
    %1278 = vmatpush1.msra.mxu0 0.0
    %1279 = vmatprep.subr.mxu0 0.0
    %1280 = vmatpush1.msra.mxu0 0.0
    %1281 = vmatprep.subr.mxu0 0.0
    %1282 = vmatpush1.msra.mxu0 0.0
    %1283 = vmatprep.subr.mxu0 0.0
    %1284 = vmatpush1.msra.mxu0 0.0
    %1285 = vmatprep.subr.mxu0 0.0
    %1286 = vmatpush1.msra.mxu0 0.0
    %1287 = vmatprep.subr.mxu0 0.0
    %1288 = vmatpush1.msra.mxu0 0.0
    %1289 = vmatprep.subr.mxu0 0.0
    %1290 = vmatpush1.msra.mxu0 0.0
    %1291 = vmatprep.subr.mxu0 0.0
    %1292 = vmatpush1.msra.mxu0 0.0
    %1293 = vmatprep.subr.mxu0 0.0
    %1294 = vmatpush1.msra.mxu0 0.0
    %1295 = vmatprep.subr.mxu0 0.0
    %1296 = vmatpush1.msra.mxu0 0.0
    %1297 = vmatprep.subr.mxu0 0.0
    %1298 = vmatpush1.msra.mxu0 0.0
    %1299 = vmatprep.subr.mxu0 0.0
    %1300 = vmatpush1.msra.mxu0 0.0
    %1301 = vmatprep.subr.mxu0 0.0
    %1302 = vmatpush1.msra.mxu0 0.0
    %1303 = vmatprep.subr.mxu0 0.0
    %1304 = vmatpush1.msra.mxu0 0.0
    %1305 = vmatprep.subr.mxu0 0.0
    %1306 = vmatpush1.msra.mxu0 0.0
    %1307 = vmatprep.subr.mxu0 0.0
    %1308 = vmatpush1.msra.mxu0 0.0
    %1309 = vmatprep.subr.mxu0 0.0
    %1310 = vmatpush1.msra.mxu0 0.0
    %1311 = vmatprep.mubr.f32.mxu0 0.0
    %1312 = vmatmul.mubr.f32.gmra.mrb[0].mxu0 %v65
    %v1313 = vpop.f32.mrb[0].mxu0
    %v1314 = vadd.f32 0.0, %v1313
    %v1315 = vpop.f32.mrb[0].mxu0
    %1316 = vdwg.mxu0
    %v1317 = vlog2.pop %v1314
    %v1318 = vmul.f32 %v1317, 0.6931472
    %v1319 = vadd.f32 %v1318, %v1240
    %s1320 = scalar_lea.vmem %s0, 104
    %v1321 = vld [vmem:[%s1320] sm:$0x1f]
    %v1322 = vadd.f32 %v1319, %v1321
    %v1323 = vld [vmem:[%s1 + $0xd] sm:$0x1]
    %vm1324 = vcmp.gt.f32.partialorder %v1323, 0.0
    %v1325 = vsel %vm1324, 1, 0
    %v1326 = vlaneseq
    %v1327 = vshrl.u32 %v1326, 7
    %v1328 = vsub.s32 0, %v1327
    %v1329 = vrot.slane %v1325, %v1328
    %vm1330 = vcmp.eq.s32.totalorder %v1329, 1
    %v1331 = vsel %vm1330, %v1322, %v1233
    %v1332 = vsel %vm50, %v1331, -inf
    %v1333 = vrot.slane %v1332, 4
    %v1334 = vmax.f32 %v1332, %v1333
    %v1335 = vrot.slane %v1334, 2
    %v1336 = vmax.f32 %v1334, %v1335
    %v1337 = vrot.slane %v1336, 1
    %v1338 = vmax.f32 %v1336, %v1337
    %v1339 = vsub.f32 %v1331, %v1338
    %v1340 = vmul.f32 %v1339, 1.442695
    %v1341 = vpow.pop %v1340
    %v1343 = vsel %vm67, %v1341, 0
    %1345 = vmatprep.subr.mxu0 0.0
    %1346 = vmatpush1.msra.mxu0 %v1343
    %1347 = vmatprep.subr.mxu0 0.0
    %1348 = vmatpush1.msra.mxu0 0.0
    %1349 = vmatprep.subr.mxu0 0.0
    %1350 = vmatpush1.msra.mxu0 0.0
    %1351 = vmatprep.subr.mxu0 0.0
    %1352 = vmatpush1.msra.mxu0 0.0
    %1353 = vmatprep.subr.mxu0 0.0
    %1354 = vmatpush1.msra.mxu0 0.0
    %1355 = vmatprep.subr.mxu0 0.0
    %1356 = vmatpush1.msra.mxu0 0.0
    %1357 = vmatprep.subr.mxu0 0.0
    %1358 = vmatpush1.msra.mxu0 0.0
    %1359 = vmatprep.subr.mxu0 0.0
    %1360 = vmatpush1.msra.mxu0 0.0
    %1361 = vmatprep.subr.mxu0 0.0
    %1362 = vmatpush1.msra.mxu0 0.0
    %1363 = vmatprep.subr.mxu0 0.0
    %1364 = vmatpush1.msra.mxu0 0.0
    %1365 = vmatprep.subr.mxu0 0.0
    %1366 = vmatpush1.msra.mxu0 0.0
    %1367 = vmatprep.subr.mxu0 0.0
    %1368 = vmatpush1.msra.mxu0 0.0
    %1369 = vmatprep.subr.mxu0 0.0
    %1370 = vmatpush1.msra.mxu0 0.0
    %1371 = vmatprep.subr.mxu0 0.0
    %1372 = vmatpush1.msra.mxu0 0.0
    %1373 = vmatprep.subr.mxu0 0.0
    %1374 = vmatpush1.msra.mxu0 0.0
    %1375 = vmatprep.subr.mxu0 0.0
    %1376 = vmatpush1.msra.mxu0 0.0
    %1377 = vmatprep.subr.mxu0 0.0
    %1378 = vmatpush1.msra.mxu0 0.0
    %1379 = vmatprep.subr.mxu0 0.0
    %1380 = vmatpush1.msra.mxu0 0.0
    %1381 = vmatprep.subr.mxu0 0.0
    %1382 = vmatpush1.msra.mxu0 0.0
    %1383 = vmatprep.subr.mxu0 0.0
    %1384 = vmatpush1.msra.mxu0 0.0
    %1385 = vmatprep.subr.mxu0 0.0
    %1386 = vmatpush1.msra.mxu0 0.0
    %1387 = vmatprep.subr.mxu0 0.0
    %1388 = vmatpush1.msra.mxu0 0.0
    %1389 = vmatprep.subr.mxu0 0.0
    %1390 = vmatpush1.msra.mxu0 0.0
    %1391 = vmatprep.subr.mxu0 0.0
    %1392 = vmatpush1.msra.mxu0 0.0
    %1393 = vmatprep.subr.mxu0 0.0
    %1394 = vmatpush1.msra.mxu0 0.0
    %1395 = vmatprep.subr.mxu0 0.0
    %1396 = vmatpush1.msra.mxu0 0.0
    %1397 = vmatprep.subr.mxu0 0.0
    %1398 = vmatpush1.msra.mxu0 0.0
    %1399 = vmatprep.subr.mxu0 0.0
    %1400 = vmatpush1.msra.mxu0 0.0
    %1401 = vmatprep.subr.mxu0 0.0
    %1402 = vmatpush1.msra.mxu0 0.0
    %1403 = vmatprep.subr.mxu0 0.0
    %1404 = vmatpush1.msra.mxu0 0.0
    %1405 = vmatprep.subr.mxu0 0.0
    %1406 = vmatpush1.msra.mxu0 0.0
    %1407 = vmatprep.subr.mxu0 0.0
    %1408 = vmatpush1.msra.mxu0 0.0
    %1409 = vmatprep.mubr.f32.mxu0 0.0
    %1410 = vmatmul.mubr.f32.gmra.mrb[0].mxu0 %v65
    %v1411 = vpop.f32.mrb[0].mxu0
    %v1412 = vadd.f32 0.0, %v1411
    %v1413 = vpop.f32.mrb[0].mxu0
    %1414 = vdwg.mxu0
    %v1415 = vlog2.pop %v1412
    %v1416 = vmul.f32 %v1415, 0.6931472
    %v1417 = vadd.f32 %v1416, %v1338
    %s1418 = scalar_lea.vmem %s0, 112
    %v1419 = vld [vmem:[%s1418] sm:$0x1f]
    %v1420 = vadd.f32 %v1417, %v1419
    %v1421 = vld [vmem:[%s1 + $0xe] sm:$0x1]
    %vm1422 = vcmp.gt.f32.partialorder %v1421, 0.0
    %v1423 = vsel %vm1422, 1, 0
    %v1424 = vlaneseq
    %v1425 = vshrl.u32 %v1424, 7
    %v1426 = vsub.s32 0, %v1425
    %v1427 = vrot.slane %v1423, %v1426
    %vm1428 = vcmp.eq.s32.totalorder %v1427, 1
    %v1429 = vsel %vm1428, %v1420, %v1331
    %v1430 = vsel %vm50, %v1429, -inf
    %v1431 = vrot.slane %v1430, 4
    %v1432 = vmax.f32 %v1430, %v1431
    %v1433 = vrot.slane %v1432, 2
    %v1434 = vmax.f32 %v1432, %v1433
    %v1435 = vrot.slane %v1434, 1
    %v1436 = vmax.f32 %v1434, %v1435
    %v1437 = vsub.f32 %v1429, %v1436
    %v1438 = vmul.f32 %v1437, 1.442695
    %v1439 = vpow.pop %v1438
    %v1441 = vsel %vm67, %v1439, 0
    %1443 = vmatprep.subr.mxu0 0.0
    %1444 = vmatpush1.msra.mxu0 %v1441
    %1445 = vmatprep.subr.mxu0 0.0
    %1446 = vmatpush1.msra.mxu0 0.0
    %1447 = vmatprep.subr.mxu0 0.0
    %1448 = vmatpush1.msra.mxu0 0.0
    %1449 = vmatprep.subr.mxu0 0.0
    %1450 = vmatpush1.msra.mxu0 0.0
    %1451 = vmatprep.subr.mxu0 0.0
    %1452 = vmatpush1.msra.mxu0 0.0
    %1453 = vmatprep.subr.mxu0 0.0
    %1454 = vmatpush1.msra.mxu0 0.0
    %1455 = vmatprep.subr.mxu0 0.0
    %1456 = vmatpush1.msra.mxu0 0.0
    %1457 = vmatprep.subr.mxu0 0.0
    %1458 = vmatpush1.msra.mxu0 0.0
    %1459 = vmatprep.subr.mxu0 0.0
    %1460 = vmatpush1.msra.mxu0 0.0
    %1461 = vmatprep.subr.mxu0 0.0
    %1462 = vmatpush1.msra.mxu0 0.0
    %1463 = vmatprep.subr.mxu0 0.0
    %1464 = vmatpush1.msra.mxu0 0.0
    %1465 = vmatprep.subr.mxu0 0.0
    %1466 = vmatpush1.msra.mxu0 0.0
    %1467 = vmatprep.subr.mxu0 0.0
    %1468 = vmatpush1.msra.mxu0 0.0
    %1469 = vmatprep.subr.mxu0 0.0
    %1470 = vmatpush1.msra.mxu0 0.0
    %1471 = vmatprep.subr.mxu0 0.0
    %1472 = vmatpush1.msra.mxu0 0.0
    %1473 = vmatprep.subr.mxu0 0.0
    %1474 = vmatpush1.msra.mxu0 0.0
    %1475 = vmatprep.subr.mxu0 0.0
    %1476 = vmatpush1.msra.mxu0 0.0
    %1477 = vmatprep.subr.mxu0 0.0
    %1478 = vmatpush1.msra.mxu0 0.0
    %1479 = vmatprep.subr.mxu0 0.0
    %1480 = vmatpush1.msra.mxu0 0.0
    %1481 = vmatprep.subr.mxu0 0.0
    %1482 = vmatpush1.msra.mxu0 0.0
    %1483 = vmatprep.subr.mxu0 0.0
    %1484 = vmatpush1.msra.mxu0 0.0
    %1485 = vmatprep.subr.mxu0 0.0
    %1486 = vmatpush1.msra.mxu0 0.0
    %1487 = vmatprep.subr.mxu0 0.0
    %1488 = vmatpush1.msra.mxu0 0.0
    %1489 = vmatprep.subr.mxu0 0.0
    %1490 = vmatpush1.msra.mxu0 0.0
    %1491 = vmatprep.subr.mxu0 0.0
    %1492 = vmatpush1.msra.mxu0 0.0
    %1493 = vmatprep.subr.mxu0 0.0
    %1494 = vmatpush1.msra.mxu0 0.0
    %1495 = vmatprep.subr.mxu0 0.0
    %1496 = vmatpush1.msra.mxu0 0.0
    %1497 = vmatprep.subr.mxu0 0.0
    %1498 = vmatpush1.msra.mxu0 0.0
    %1499 = vmatprep.subr.mxu0 0.0
    %1500 = vmatpush1.msra.mxu0 0.0
    %1501 = vmatprep.subr.mxu0 0.0
    %1502 = vmatpush1.msra.mxu0 0.0
    %1503 = vmatprep.subr.mxu0 0.0
    %1504 = vmatpush1.msra.mxu0 0.0
    %1505 = vmatprep.subr.mxu0 0.0
    %1506 = vmatpush1.msra.mxu0 0.0
    %1507 = vmatprep.mubr.f32.mxu0 0.0
    %1508 = vmatmul.mubr.f32.gmra.mrb[0].mxu0 %v65
    %v1509 = vpop.f32.mrb[0].mxu0
    %v1510 = vadd.f32 0.0, %v1509
    %v1511 = vpop.f32.mrb[0].mxu0
    %1512 = vdwg.mxu0
    %v1513 = vlog2.pop %v1510
    %v1514 = vmul.f32 %v1513, 0.6931472
    %v1515 = vadd.f32 %v1514, %v1436
    %s1516 = scalar_lea.vmem %s0, 120
    %v1517 = vld [vmem:[%s1516] sm:$0x1f]
    %v1518 = vadd.f32 %v1515, %v1517
    %v1519 = vld [vmem:[%s1 + $0xf] sm:$0x1]
    %vm1520 = vcmp.gt.f32.partialorder %v1519, 0.0
    %v1521 = vsel %vm1520, 1, 0
    %v1522 = vlaneseq
    %v1523 = vshrl.u32 %v1522, 7
    %v1524 = vsub.s32 0, %v1523
    %v1525 = vrot.slane %v1521, %v1524
    %vm1526 = vcmp.eq.s32.totalorder %v1525, 1
    %v1527 = vsel %vm1526, %v1518, %v1429
    %1528 = vset.pattern.permute.xlu0 2
    %1529 = vperm.xlu0 %1528, %v18
    %v1530 = vpop.permute.xlu0 %1529
    %v1532 = vadd.f32 %v1527, %v1530
    %v1533 = vsel %vm50, %v1532, -inf
    %v1534 = vrot.slane %v1533, 4
    %v1535 = vmax.f32 %v1533, %v1534
    %v1536 = vrot.slane %v1535, 2
    %v1537 = vmax.f32 %v1535, %v1536
    %v1538 = vrot.slane %v1537, 1
    %v1539 = vmax.f32 %v1537, %v1538
    %v1540 = vsub.f32 %v1532, %v1539
    %v1541 = vmul.f32 %v1540, 1.442695
    %v1542 = vpow.pop %v1541
    %v1543 = vsel %vm50, %v1542, 0.0
    %v1544 = vrot.slane %v1543, 4
    %v1545 = vadd.f32 %v1543, %v1544
    %v1546 = vrot.slane %v1545, 2
    %v1547 = vadd.f32 %v1545, %v1546
    %v1548 = vrot.slane %v1547, 1
    %v1549 = vadd.f32 %v1547, %v1548
    %v1550 = vlog2.pop %v1549
    %v1551 = vmul.f32 %v1550, 0.6931472
    %v1552 = vadd.f32 %v1539, %v1551
    %v1553 = vlaneseq
    %v1554 = vshrl.u32 %v1553, 7
    %v1555 = vcombine.high %v42, %v42
    %v1557 = vunpack.c.l.s4 1966171168
    %v1558 = vunpack.c.0.s8 %v1557
    %v1559 = vlaneseq
    %v1560 = vshrl.u32 %v1559, 7
    %v1561 = vsub.s32 %v1558, %v1560
    %v1562 = vrot.slane %v42, %v1561
    %v1564 = vunpack.c.l.s4 1966171168
    %v1565 = vunpack.c.0.s8 %v1564
    %v1566 = vlaneseq
    %v1567 = vshrl.u32 %v1566, 7
    %v1568 = vsub.s32 %v1565, %v1567
    %v1569 = vrot.slane %v1555, %v1568
    %v1570 = vcombine.high %v1562, %v1562
    %v1571 = vcombine.high %v1569, %v1569
    %v1573 = vunpack.c.l.s4 1966171168
    %v1574 = vunpack.c.0.s8 %v1573
    %v1575 = vlaneseq
    %v1576 = vshrl.u32 %v1575, 7
    %v1577 = vsub.s32 %v1574, %v1576
    %v1578 = vrot.slane %v1562, %v1577
    %v1580 = vunpack.c.l.s4 1966171168
    %v1581 = vunpack.c.0.s8 %v1580
    %v1582 = vlaneseq
    %v1583 = vshrl.u32 %v1582, 7
    %v1584 = vsub.s32 %v1581, %v1583
    %v1585 = vrot.slane %v1569, %v1584
    %v1587 = vunpack.c.l.s4 1966171168
    %v1588 = vunpack.c.0.s8 %v1587
    %v1589 = vlaneseq
    %v1590 = vshrl.u32 %v1589, 7
    %v1591 = vsub.s32 %v1588, %v1590
    %v1592 = vrot.slane %v1570, %v1591
    %v1594 = vunpack.c.l.s4 1966171168
    %v1595 = vunpack.c.0.s8 %v1594
    %v1596 = vlaneseq
    %v1597 = vshrl.u32 %v1596, 7
    %v1598 = vsub.s32 %v1595, %v1597
    %v1599 = vrot.slane %v1571, %v1598
    %v1600 = vcombine.high %v1578, %v1578
    %v1601 = vcombine.high %v1585, %v1585
    %v1602 = vcombine.high %v1592, %v1592
    %v1603 = vcombine.high %v1599, %v1599
    %v1604 = vcombine.high %v43, %v43
    %v1606 = vunpack.c.l.s4 1966171168
    %v1607 = vunpack.c.0.s8 %v1606
    %v1608 = vlaneseq
    %v1609 = vshrl.u32 %v1608, 7
    %v1610 = vsub.s32 %v1607, %v1609
    %v1611 = vrot.slane %v43, %v1610
    %v1613 = vunpack.c.l.s4 1966171168
    %v1614 = vunpack.c.0.s8 %v1613
    %v1615 = vlaneseq
    %v1616 = vshrl.u32 %v1615, 7
    %v1617 = vsub.s32 %v1614, %v1616
    %v1618 = vrot.slane %v1604, %v1617
    %v1619 = vcombine.high %v1611, %v1611
    %v1620 = vcombine.high %v1618, %v1618
    %v1622 = vunpack.c.l.s4 1966171168
    %v1623 = vunpack.c.0.s8 %v1622
    %v1624 = vlaneseq
    %v1625 = vshrl.u32 %v1624, 7
    %v1626 = vsub.s32 %v1623, %v1625
    %v1627 = vrot.slane %v1611, %v1626
    %v1629 = vunpack.c.l.s4 1966171168
    %v1630 = vunpack.c.0.s8 %v1629
    %v1631 = vlaneseq
    %v1632 = vshrl.u32 %v1631, 7
    %v1633 = vsub.s32 %v1630, %v1632
    %v1634 = vrot.slane %v1618, %v1633
    %v1636 = vunpack.c.l.s4 1966171168
    %v1637 = vunpack.c.0.s8 %v1636
    %v1638 = vlaneseq
    %v1639 = vshrl.u32 %v1638, 7
    %v1640 = vsub.s32 %v1637, %v1639
    %v1641 = vrot.slane %v1619, %v1640
    %v1643 = vunpack.c.l.s4 1966171168
    %v1644 = vunpack.c.0.s8 %v1643
    %v1645 = vlaneseq
    %v1646 = vshrl.u32 %v1645, 7
    %v1647 = vsub.s32 %v1644, %v1646
    %v1648 = vrot.slane %v1620, %v1647
    %v1649 = vcombine.high %v1627, %v1627
    %v1650 = vcombine.high %v1634, %v1634
    %v1651 = vcombine.high %v1641, %v1641
    %v1652 = vcombine.high %v1648, %v1648
    %v1653 = vlaneseq
    %v1654 = vshrl.u32 %v1653, 7
    %v1655 = vsub.s32 0, %v1654
    %v1656 = vrot.slane %v1578, %v1655
    %v1657 = vlaneseq
    %v1658 = vshrl.u32 %v1657, 7
    %v1659 = vsub.s32 0, %v1658
    %v1660 = vrot.slane %v1592, %v1659
    %v1661 = vlaneseq
    %v1662 = vshrl.u32 %v1661, 7
    %v1663 = vsub.s32 0, %v1662
    %v1664 = vrot.slane %v1600, %v1663
    %v1665 = vlaneseq
    %v1666 = vshrl.u32 %v1665, 7
    %v1667 = vsub.s32 0, %v1666
    %v1668 = vrot.slane %v1602, %v1667
    %v1669 = vlaneseq
    %v1670 = vshrl.u32 %v1669, 7
    %v1671 = vsub.s32 0, %v1670
    %v1672 = vrot.slane %v1585, %v1671
    %v1673 = vlaneseq
    %v1674 = vshrl.u32 %v1673, 7
    %v1675 = vsub.s32 0, %v1674
    %v1676 = vrot.slane %v1599, %v1675
    %v1677 = vlaneseq
    %v1678 = vshrl.u32 %v1677, 7
    %v1679 = vsub.s32 0, %v1678
    %v1680 = vrot.slane %v1601, %v1679
    %v1681 = vlaneseq
    %v1682 = vshrl.u32 %v1681, 7
    %v1683 = vsub.s32 0, %v1682
    %v1684 = vrot.slane %v1603, %v1683
    %v1685 = vlaneseq
    %v1686 = vshrl.u32 %v1685, 7
    %v1687 = vsub.s32 0, %v1686
    %v1688 = vrot.slane %v1627, %v1687
    %v1689 = vlaneseq
    %v1690 = vshrl.u32 %v1689, 7
    %v1691 = vsub.s32 0, %v1690
    %v1692 = vrot.slane %v1641, %v1691
    %v1693 = vlaneseq
    %v1694 = vshrl.u32 %v1693, 7
    %v1695 = vsub.s32 0, %v1694
    %v1696 = vrot.slane %v1649, %v1695
    %v1697 = vlaneseq
    %v1698 = vshrl.u32 %v1697, 7
    %v1699 = vsub.s32 0, %v1698
    %v1700 = vrot.slane %v1651, %v1699
    %v1701 = vlaneseq
    %v1702 = vshrl.u32 %v1701, 7
    %v1703 = vsub.s32 0, %v1702
    %v1704 = vrot.slane %v1634, %v1703
    %v1705 = vlaneseq
    %v1706 = vshrl.u32 %v1705, 7
    %v1707 = vsub.s32 0, %v1706
    %v1708 = vrot.slane %v1648, %v1707
    %v1709 = vlaneseq
    %v1710 = vshrl.u32 %v1709, 7
    %v1711 = vsub.s32 0, %v1710
    %v1712 = vrot.slane %v1650, %v1711
    %v1713 = vlaneseq
    %v1714 = vshrl.u32 %v1713, 7
    %v1715 = vsub.s32 0, %v1714
    %v1716 = vrot.slane %v1652, %v1715
    %vm1717 = vcmp.eq.s32.totalorder %v1656, %v1554
    %vm1718 = vcmp.eq.s32.totalorder %v1660, %v1554
    %vm1719 = vcmp.eq.s32.totalorder %v1664, %v1554
    %vm1720 = vcmp.eq.s32.totalorder %v1668, %v1554
    %vm1721 = vcmp.eq.s32.totalorder %v1672, %v1554
    %vm1722 = vcmp.eq.s32.totalorder %v1676, %v1554
    %vm1723 = vcmp.eq.s32.totalorder %v1680, %v1554
    %vm1724 = vcmp.eq.s32.totalorder %v1684, %v1554
    %vm1725 = vcmp.eq.s32.totalorder %v1688, %v1554
    %vm1726 = vcmp.eq.s32.totalorder %v1692, %v1554
    %vm1727 = vcmp.eq.s32.totalorder %v1696, %v1554
    %vm1728 = vcmp.eq.s32.totalorder %v1700, %v1554
    %vm1729 = vcmp.eq.s32.totalorder %v1704, %v1554
    %vm1730 = vcmp.eq.s32.totalorder %v1708, %v1554
    %vm1731 = vcmp.eq.s32.totalorder %v1712, %v1554
    %vm1732 = vcmp.eq.s32.totalorder %v1716, %v1554
    %v1733 = vsel %vm1717, 1, 0
    %v1734 = vsel %vm1718, 1, 0
    %v1735 = vsel %vm1719, 1, 0
    %v1736 = vsel %vm1720, 1, 0
    %v1737 = vsel %vm1721, 1, 0
    %v1738 = vsel %vm1722, 1, 0
    %v1739 = vsel %vm1723, 1, 0
    %v1740 = vsel %vm1724, 1, 0
    %v1741 = vsel %vm1725, 1, 0
    %v1742 = vsel %vm1726, 1, 0
    %v1743 = vsel %vm1727, 1, 0
    %v1744 = vsel %vm1728, 1, 0
    %v1745 = vsel %vm1729, 1, 0
    %v1746 = vsel %vm1730, 1, 0
    %v1747 = vsel %vm1731, 1, 0
    %v1748 = vsel %vm1732, 1, 0
    %v1749 = vcvt.s32.f32 %v1733
    %v1750 = vcvt.s32.f32 %v1734
    %v1751 = vcvt.s32.f32 %v1735
    %v1752 = vcvt.s32.f32 %v1736
    %v1753 = vcvt.s32.f32 %v1737
    %v1754 = vcvt.s32.f32 %v1738
    %v1755 = vcvt.s32.f32 %v1739
    %v1756 = vcvt.s32.f32 %v1740
    %v1757 = vcvt.s32.f32 %v1741
    %v1758 = vcvt.s32.f32 %v1742
    %v1759 = vcvt.s32.f32 %v1743
    %v1760 = vcvt.s32.f32 %v1744
    %v1761 = vcvt.s32.f32 %v1745
    %v1762 = vcvt.s32.f32 %v1746
    %v1763 = vcvt.s32.f32 %v1747
    %v1764 = vcvt.s32.f32 %v1748
    %v1765 = vmul.f32 %v24, %v1749
    %v1766 = vmul.f32 %v25, %v1750
    %v1767 = vmul.f32 %v26, %v1751
    %v1768 = vmul.f32 %v27, %v1752
    %v1769 = vmul.f32 %v28, %v1753
    %v1770 = vmul.f32 %v29, %v1754
    %v1771 = vmul.f32 %v30, %v1755
    %v1772 = vmul.f32 %v31, %v1756
    %v1773 = vmul.f32 %v32, %v1757
    %v1774 = vmul.f32 %v33, %v1758
    %v1775 = vmul.f32 %v34, %v1759
    %v1776 = vmul.f32 %v35, %v1760
    %v1777 = vmul.f32 %v36, %v1761
    %v1778 = vmul.f32 %v37, %v1762
    %v1779 = vmul.f32 %v38, %v1763
    %v1780 = vmul.f32 %v39, %v1764
    %v1781 = vsel %vm50, %v1765, 0.0
    %v1782 = vrot.slane %v1781, 4
    %v1783 = vadd.f32 %v1781, %v1782
    %v1784 = vrot.slane %v1783, 2
    %v1785 = vadd.f32 %v1783, %v1784
    %v1786 = vrot.slane %v1785, 1
    %v1787 = vadd.f32 %v1785, %v1786
    %v1788 = vsel %vm50, %v1766, 0.0
    %v1789 = vrot.slane %v1788, 4
    %v1790 = vadd.f32 %v1788, %v1789
    %v1791 = vrot.slane %v1790, 2
    %v1792 = vadd.f32 %v1790, %v1791
    %v1793 = vrot.slane %v1792, 1
    %v1794 = vadd.f32 %v1792, %v1793
    %v1795 = vsel %vm50, %v1767, 0.0
    %v1796 = vrot.slane %v1795, 4
    %v1797 = vadd.f32 %v1795, %v1796
    %v1798 = vrot.slane %v1797, 2
    %v1799 = vadd.f32 %v1797, %v1798
    %v1800 = vrot.slane %v1799, 1
    %v1801 = vadd.f32 %v1799, %v1800
    %v1802 = vsel %vm50, %v1768, 0.0
    %v1803 = vrot.slane %v1802, 4
    %v1804 = vadd.f32 %v1802, %v1803
    %v1805 = vrot.slane %v1804, 2
    %v1806 = vadd.f32 %v1804, %v1805
    %v1807 = vrot.slane %v1806, 1
    %v1808 = vadd.f32 %v1806, %v1807
    %v1809 = vsel %vm50, %v1769, 0.0
    %v1810 = vrot.slane %v1809, 4
    %v1811 = vadd.f32 %v1809, %v1810
    %v1812 = vrot.slane %v1811, 2
    %v1813 = vadd.f32 %v1811, %v1812
    %v1814 = vrot.slane %v1813, 1
    %v1815 = vadd.f32 %v1813, %v1814
    %v1816 = vsel %vm50, %v1770, 0.0
    %v1817 = vrot.slane %v1816, 4
    %v1818 = vadd.f32 %v1816, %v1817
    %v1819 = vrot.slane %v1818, 2
    %v1820 = vadd.f32 %v1818, %v1819
    %v1821 = vrot.slane %v1820, 1
    %v1822 = vadd.f32 %v1820, %v1821
    %v1823 = vsel %vm50, %v1771, 0.0
    %v1824 = vrot.slane %v1823, 4
    %v1825 = vadd.f32 %v1823, %v1824
    %v1826 = vrot.slane %v1825, 2
    %v1827 = vadd.f32 %v1825, %v1826
    %v1828 = vrot.slane %v1827, 1
    %v1829 = vadd.f32 %v1827, %v1828
    %v1830 = vsel %vm50, %v1772, 0.0
    %v1831 = vrot.slane %v1830, 4
    %v1832 = vadd.f32 %v1830, %v1831
    %v1833 = vrot.slane %v1832, 2
    %v1834 = vadd.f32 %v1832, %v1833
    %v1835 = vrot.slane %v1834, 1
    %v1836 = vadd.f32 %v1834, %v1835
    %v1837 = vsel %vm50, %v1773, 0.0
    %v1838 = vrot.slane %v1837, 4
    %v1839 = vadd.f32 %v1837, %v1838
    %v1840 = vrot.slane %v1839, 2
    %v1841 = vadd.f32 %v1839, %v1840
    %v1842 = vrot.slane %v1841, 1
    %v1843 = vadd.f32 %v1841, %v1842
    %v1844 = vsel %vm50, %v1774, 0.0
    %v1845 = vrot.slane %v1844, 4
    %v1846 = vadd.f32 %v1844, %v1845
    %v1847 = vrot.slane %v1846, 2
    %v1848 = vadd.f32 %v1846, %v1847
    %v1849 = vrot.slane %v1848, 1
    %v1850 = vadd.f32 %v1848, %v1849
    %v1851 = vsel %vm50, %v1775, 0.0
    %v1852 = vrot.slane %v1851, 4
    %v1853 = vadd.f32 %v1851, %v1852
    %v1854 = vrot.slane %v1853, 2
    %v1855 = vadd.f32 %v1853, %v1854
    %v1856 = vrot.slane %v1855, 1
    %v1857 = vadd.f32 %v1855, %v1856
    %v1858 = vsel %vm50, %v1776, 0.0
    %v1859 = vrot.slane %v1858, 4
    %v1860 = vadd.f32 %v1858, %v1859
    %v1861 = vrot.slane %v1860, 2
    %v1862 = vadd.f32 %v1860, %v1861
    %v1863 = vrot.slane %v1862, 1
    %v1864 = vadd.f32 %v1862, %v1863
    %v1865 = vsel %vm50, %v1777, 0.0
    %v1866 = vrot.slane %v1865, 4
    %v1867 = vadd.f32 %v1865, %v1866
    %v1868 = vrot.slane %v1867, 2
    %v1869 = vadd.f32 %v1867, %v1868
    %v1870 = vrot.slane %v1869, 1
    %v1871 = vadd.f32 %v1869, %v1870
    %v1872 = vsel %vm50, %v1778, 0.0
    %v1873 = vrot.slane %v1872, 4
    %v1874 = vadd.f32 %v1872, %v1873
    %v1875 = vrot.slane %v1874, 2
    %v1876 = vadd.f32 %v1874, %v1875
    %v1877 = vrot.slane %v1876, 1
    %v1878 = vadd.f32 %v1876, %v1877
    %v1879 = vsel %vm50, %v1779, 0.0
    %v1880 = vrot.slane %v1879, 4
    %v1881 = vadd.f32 %v1879, %v1880
    %v1882 = vrot.slane %v1881, 2
    %v1883 = vadd.f32 %v1881, %v1882
    %v1884 = vrot.slane %v1883, 1
    %v1885 = vadd.f32 %v1883, %v1884
    %v1886 = vsel %vm50, %v1780, 0.0
    %v1887 = vrot.slane %v1886, 4
    %v1888 = vadd.f32 %v1886, %v1887
    %v1889 = vrot.slane %v1888, 2
    %v1890 = vadd.f32 %v1888, %v1889
    %v1891 = vrot.slane %v1890, 1
    %v1892 = vadd.f32 %v1890, %v1891
    %v1895 = vrot.slane %v40, 1
    %v1896 = vrot.slane %v40, 2
    %v1897 = vrot.slane %v40, 3
    %v1898 = vrot.slane %v40, 4
    %v1899 = vrot.slane %v40, 5
    %v1900 = vrot.slane %v40, 6
    %v1901 = vrot.slane %v40, 7
    %v1902 = vrot.slane %v41, 1
    %v1903 = vrot.slane %v41, 2
    %v1904 = vrot.slane %v41, 3
    %v1905 = vrot.slane %v41, 4
    %v1906 = vrot.slane %v41, 5
    %v1907 = vrot.slane %v41, 6
    %v1908 = vrot.slane %v41, 7
    %v1925 = vmul.f32 %v1787, %v40
    %v1926 = vmul.f32 %v1794, %v1895
    %v1927 = vmul.f32 %v1801, %v1896
    %v1928 = vmul.f32 %v1808, %v1897
    %v1929 = vmul.f32 %v1815, %v1898
    %v1930 = vmul.f32 %v1822, %v1899
    %v1931 = vmul.f32 %v1829, %v1900
    %v1932 = vmul.f32 %v1836, %v1901
    %v1933 = vmul.f32 %v1843, %v41
    %v1934 = vmul.f32 %v1850, %v1902
    %v1935 = vmul.f32 %v1857, %v1903
    %v1936 = vmul.f32 %v1864, %v1904
    %v1937 = vmul.f32 %v1871, %v1905
    %v1938 = vmul.f32 %v1878, %v1906
    %v1939 = vmul.f32 %v1885, %v1907
    %v1940 = vmul.f32 %v1892, %v1908
    %v1957 = vrot.slane %v1926, 7
    %vm1958 = vcmask 1041409
    %v1959 = vsel %vm1958, %v1957, %v1925
    %v1960 = vrot.slane %v1927, 6
    %vm1961 = vcmask 1042434
    %v1962 = vsel %vm1961, %v1960, %v1959
    %v1963 = vrot.slane %v1928, 5
    %vm1964 = vcmask 1043459
    %v1965 = vsel %vm1964, %v1963, %v1962
    %v1966 = vrot.slane %v1929, 4
    %vm1967 = vcmask 1044484
    %v1968 = vsel %vm1967, %v1966, %v1965
    %v1969 = vrot.slane %v1930, 3
    %vm1970 = vcmask 1045509
    %v1971 = vsel %vm1970, %v1969, %v1968
    %v1972 = vrot.slane %v1931, 2
    %vm1973 = vcmask 1046534
    %v1974 = vsel %vm1973, %v1972, %v1971
    %v1975 = vrot.slane %v1932, 1
    %vm1976 = vcmask 1047559
    %v1977 = vsel %vm1976, %v1975, %v1974
    %v1978 = vrot.slane %v1934, 7
    %v1979 = vsel %vm1958, %v1978, %v1933
    %v1980 = vrot.slane %v1935, 6
    %v1981 = vsel %vm1961, %v1980, %v1979
    %v1982 = vrot.slane %v1936, 5
    %v1983 = vsel %vm1964, %v1982, %v1981
    %v1984 = vrot.slane %v1937, 4
    %v1985 = vsel %vm1967, %v1984, %v1983
    %v1986 = vrot.slane %v1938, 3
    %v1987 = vsel %vm1970, %v1986, %v1985
    %v1988 = vrot.slane %v1939, 2
    %v1989 = vsel %vm1973, %v1988, %v1987
    %v1990 = vrot.slane %v1940, 1
    %v1991 = vsel %vm1976, %v1990, %v1989
    %vm1994 = vcmask 261120
    %v1995 = vsel %vm1994, %v1977, 0.0
    %v1996 = vsel %vm1994, %v1991, 0.0
    %v1997 = vadd.f32 %v1995, %v1996
    %v1998 = vrot.slane %v1997, 4
    %v1999 = vadd.f32 %v1997, %v1998
    %v2000 = vrot.slane %v1999, 2
    %v2001 = vadd.f32 %v1999, %v2000
    %v2002 = vrot.slane %v2001, 1
    %v2003 = vadd.f32 %v2001, %v2002
    %v2004 = vmul.f32 %v1749, %v47
    %v2005 = vsel %vm50, %v2004, 0.0
    %v2006 = vrot.slane %v2005, 4
    %v2007 = vadd.f32 %v2005, %v2006
    %v2008 = vrot.slane %v2007, 2
    %v2009 = vadd.f32 %v2007, %v2008
    %v2010 = vrot.slane %v2009, 1
    %v2011 = vadd.f32 %v2009, %v2010
    %v2012 = vadd.f32 %v2003, %v2011
    %v2013 = vmul.u32 %v42, 5
    %v2014 = vmul.u32 %v43, 5
    %vm2015 = vcmask 1046528
    %v2016 = vrot.slane %v42, 1
    %v2017 = vrot.slane %v43, 1
    %v2018 = vsel %vm2015, %v2016, %v2017
    %v2019 = vadd.s32 %v2013, %v2018
    %v2020 = vadd.s32 %v2014, %v2017
    %v2021 = vadd.s32 %v1554, 8
    %v2022 = vadd.s32 %v1554, 16
    %v2023 = vadd.s32 %v1554, 24
    %v2024 = vcombine.high %v2019, %v2019
    %v2026 = vunpack.c.l.s4 1966171168
    %v2027 = vunpack.c.0.s8 %v2026
    %v2028 = vlaneseq
    %v2029 = vshrl.u32 %v2028, 7
    %v2030 = vsub.s32 %v2027, %v2029
    %v2031 = vrot.slane %v2019, %v2030
    %v2033 = vunpack.c.l.s4 1966171168
    %v2034 = vunpack.c.0.s8 %v2033
    %v2035 = vlaneseq
    %v2036 = vshrl.u32 %v2035, 7
    %v2037 = vsub.s32 %v2034, %v2036
    %v2038 = vrot.slane %v2024, %v2037
    %v2039 = vcombine.high %v2031, %v2031
    %v2040 = vcombine.high %v2038, %v2038
    %v2042 = vunpack.c.l.s4 1966171168
    %v2043 = vunpack.c.0.s8 %v2042
    %v2044 = vlaneseq
    %v2045 = vshrl.u32 %v2044, 7
    %v2046 = vsub.s32 %v2043, %v2045
    %v2047 = vrot.slane %v2031, %v2046
    %v2049 = vunpack.c.l.s4 1966171168
    %v2050 = vunpack.c.0.s8 %v2049
    %v2051 = vlaneseq
    %v2052 = vshrl.u32 %v2051, 7
    %v2053 = vsub.s32 %v2050, %v2052
    %v2054 = vrot.slane %v2038, %v2053
    %v2056 = vunpack.c.l.s4 1966171168
    %v2057 = vunpack.c.0.s8 %v2056
    %v2058 = vlaneseq
    %v2059 = vshrl.u32 %v2058, 7
    %v2060 = vsub.s32 %v2057, %v2059
    %v2061 = vrot.slane %v2039, %v2060
    %v2063 = vunpack.c.l.s4 1966171168
    %v2064 = vunpack.c.0.s8 %v2063
    %v2065 = vlaneseq
    %v2066 = vshrl.u32 %v2065, 7
    %v2067 = vsub.s32 %v2064, %v2066
    %v2068 = vrot.slane %v2040, %v2067
    %v2069 = vcombine.high %v2047, %v2047
    %v2070 = vcombine.high %v2054, %v2054
    %v2071 = vcombine.high %v2061, %v2061
    %v2072 = vcombine.high %v2068, %v2068
    %v2073 = vcombine.high %v2020, %v2020
    %v2075 = vunpack.c.l.s4 1966171168
    %v2076 = vunpack.c.0.s8 %v2075
    %v2077 = vlaneseq
    %v2078 = vshrl.u32 %v2077, 7
    %v2079 = vsub.s32 %v2076, %v2078
    %v2080 = vrot.slane %v2020, %v2079
    %v2082 = vunpack.c.l.s4 1966171168
    %v2083 = vunpack.c.0.s8 %v2082
    %v2084 = vlaneseq
    %v2085 = vshrl.u32 %v2084, 7
    %v2086 = vsub.s32 %v2083, %v2085
    %v2087 = vrot.slane %v2073, %v2086
    %v2088 = vcombine.high %v2080, %v2080
    %v2089 = vcombine.high %v2087, %v2087
    %v2091 = vunpack.c.l.s4 1966171168
    %v2092 = vunpack.c.0.s8 %v2091
    %v2093 = vlaneseq
    %v2094 = vshrl.u32 %v2093, 7
    %v2095 = vsub.s32 %v2092, %v2094
    %v2096 = vrot.slane %v2080, %v2095
    %v2098 = vunpack.c.l.s4 1966171168
    %v2099 = vunpack.c.0.s8 %v2098
    %v2100 = vlaneseq
    %v2101 = vshrl.u32 %v2100, 7
    %v2102 = vsub.s32 %v2099, %v2101
    %v2103 = vrot.slane %v2087, %v2102
    %v2105 = vunpack.c.l.s4 1966171168
    %v2106 = vunpack.c.0.s8 %v2105
    %v2107 = vlaneseq
    %v2108 = vshrl.u32 %v2107, 7
    %v2109 = vsub.s32 %v2106, %v2108
    %v2110 = vrot.slane %v2088, %v2109
    %v2112 = vunpack.c.l.s4 1966171168
    %v2113 = vunpack.c.0.s8 %v2112
    %v2114 = vlaneseq
    %v2115 = vshrl.u32 %v2114, 7
    %v2116 = vsub.s32 %v2113, %v2115
    %v2117 = vrot.slane %v2089, %v2116
    %v2118 = vcombine.high %v2096, %v2096
    %v2119 = vcombine.high %v2103, %v2103
    %v2120 = vcombine.high %v2110, %v2110
    %v2121 = vlaneseq
    %v2122 = vshrl.u32 %v2121, 7
    %v2123 = vsub.s32 0, %v2122
    %v2124 = vrot.slane %v2047, %v2123
    %v2125 = vlaneseq
    %v2126 = vshrl.u32 %v2125, 7
    %v2127 = vsub.s32 0, %v2126
    %v2128 = vrot.slane %v2061, %v2127
    %v2129 = vlaneseq
    %v2130 = vshrl.u32 %v2129, 7
    %v2131 = vsub.s32 0, %v2130
    %v2132 = vrot.slane %v2069, %v2131
    %v2133 = vlaneseq
    %v2134 = vshrl.u32 %v2133, 7
    %v2135 = vsub.s32 0, %v2134
    %v2136 = vrot.slane %v2071, %v2135
    %v2137 = vlaneseq
    %v2138 = vshrl.u32 %v2137, 7
    %v2139 = vsub.s32 0, %v2138
    %v2140 = vrot.slane %v2054, %v2139
    %v2141 = vlaneseq
    %v2142 = vshrl.u32 %v2141, 7
    %v2143 = vsub.s32 0, %v2142
    %v2144 = vrot.slane %v2068, %v2143
    %v2145 = vlaneseq
    %v2146 = vshrl.u32 %v2145, 7
    %v2147 = vsub.s32 0, %v2146
    %v2148 = vrot.slane %v2070, %v2147
    %v2149 = vlaneseq
    %v2150 = vshrl.u32 %v2149, 7
    %v2151 = vsub.s32 0, %v2150
    %v2152 = vrot.slane %v2072, %v2151
    %v2153 = vlaneseq
    %v2154 = vshrl.u32 %v2153, 7
    %v2155 = vsub.s32 0, %v2154
    %v2156 = vrot.slane %v2096, %v2155
    %v2157 = vlaneseq
    %v2158 = vshrl.u32 %v2157, 7
    %v2159 = vsub.s32 0, %v2158
    %v2160 = vrot.slane %v2110, %v2159
    %v2161 = vlaneseq
    %v2162 = vshrl.u32 %v2161, 7
    %v2163 = vsub.s32 0, %v2162
    %v2164 = vrot.slane %v2118, %v2163
    %v2165 = vlaneseq
    %v2166 = vshrl.u32 %v2165, 7
    %v2167 = vsub.s32 0, %v2166
    %v2168 = vrot.slane %v2120, %v2167
    %v2169 = vlaneseq
    %v2170 = vshrl.u32 %v2169, 7
    %v2171 = vsub.s32 0, %v2170
    %v2172 = vrot.slane %v2103, %v2171
    %v2173 = vlaneseq
    %v2174 = vshrl.u32 %v2173, 7
    %v2175 = vsub.s32 0, %v2174
    %v2176 = vrot.slane %v2117, %v2175
    %v2177 = vlaneseq
    %v2178 = vshrl.u32 %v2177, 7
    %v2179 = vsub.s32 0, %v2178
    %v2180 = vrot.slane %v2119, %v2179
    %vm2181 = vcmp.eq.s32.totalorder %v2124, %v1554
    %vm2182 = vcmp.eq.s32.totalorder %v2124, %v2021
    %vm2183 = vcmp.eq.s32.totalorder %v2124, %v2022
    %vm2184 = vcmp.eq.s32.totalorder %v2124, %v2023
    %vm2185 = vcmp.eq.s32.totalorder %v2128, %v1554
    %vm2186 = vcmp.eq.s32.totalorder %v2128, %v2021
    %vm2187 = vcmp.eq.s32.totalorder %v2128, %v2022
    %vm2188 = vcmp.eq.s32.totalorder %v2128, %v2023
    %vm2189 = vcmp.eq.s32.totalorder %v2132, %v1554
    %vm2190 = vcmp.eq.s32.totalorder %v2132, %v2021
    %vm2191 = vcmp.eq.s32.totalorder %v2132, %v2022
    %vm2192 = vcmp.eq.s32.totalorder %v2132, %v2023
    %vm2193 = vcmp.eq.s32.totalorder %v2136, %v1554
    %vm2194 = vcmp.eq.s32.totalorder %v2136, %v2021
    %vm2195 = vcmp.eq.s32.totalorder %v2136, %v2022
    %vm2196 = vcmp.eq.s32.totalorder %v2136, %v2023
    %vm2197 = vcmp.eq.s32.totalorder %v2140, %v1554
    %vm2198 = vcmp.eq.s32.totalorder %v2140, %v2021
    %vm2199 = vcmp.eq.s32.totalorder %v2140, %v2022
    %vm2200 = vcmp.eq.s32.totalorder %v2140, %v2023
    %vm2201 = vcmp.eq.s32.totalorder %v2144, %v1554
    %vm2202 = vcmp.eq.s32.totalorder %v2144, %v2021
    %vm2203 = vcmp.eq.s32.totalorder %v2144, %v2022
    %vm2204 = vcmp.eq.s32.totalorder %v2144, %v2023
    %vm2205 = vcmp.eq.s32.totalorder %v2148, %v1554
    %vm2206 = vcmp.eq.s32.totalorder %v2148, %v2021
    %vm2207 = vcmp.eq.s32.totalorder %v2148, %v2022
    %vm2208 = vcmp.eq.s32.totalorder %v2148, %v2023
    %vm2209 = vcmp.eq.s32.totalorder %v2152, %v1554
    %vm2210 = vcmp.eq.s32.totalorder %v2152, %v2021
    %vm2211 = vcmp.eq.s32.totalorder %v2152, %v2022
    %vm2212 = vcmp.eq.s32.totalorder %v2152, %v2023
    %vm2213 = vcmp.eq.s32.totalorder %v2156, %v1554
    %vm2214 = vcmp.eq.s32.totalorder %v2156, %v2021
    %vm2215 = vcmp.eq.s32.totalorder %v2156, %v2022
    %vm2216 = vcmp.eq.s32.totalorder %v2156, %v2023
    %vm2217 = vcmp.eq.s32.totalorder %v2160, %v1554
    %vm2218 = vcmp.eq.s32.totalorder %v2160, %v2021
    %vm2219 = vcmp.eq.s32.totalorder %v2160, %v2022
    %vm2220 = vcmp.eq.s32.totalorder %v2160, %v2023
    %vm2221 = vcmp.eq.s32.totalorder %v2164, %v1554
    %vm2222 = vcmp.eq.s32.totalorder %v2164, %v2021
    %vm2223 = vcmp.eq.s32.totalorder %v2164, %v2022
    %vm2224 = vcmp.eq.s32.totalorder %v2164, %v2023
    %vm2225 = vcmp.eq.s32.totalorder %v2168, %v1554
    %vm2226 = vcmp.eq.s32.totalorder %v2168, %v2021
    %vm2227 = vcmp.eq.s32.totalorder %v2168, %v2022
    %vm2228 = vcmp.eq.s32.totalorder %v2168, %v2023
    %vm2229 = vcmp.eq.s32.totalorder %v2172, %v1554
    %vm2230 = vcmp.eq.s32.totalorder %v2172, %v2021
    %vm2231 = vcmp.eq.s32.totalorder %v2172, %v2022
    %vm2232 = vcmp.eq.s32.totalorder %v2172, %v2023
    %vm2233 = vcmp.eq.s32.totalorder %v2176, %v1554
    %vm2234 = vcmp.eq.s32.totalorder %v2176, %v2021
    %vm2235 = vcmp.eq.s32.totalorder %v2176, %v2022
    %vm2236 = vcmp.eq.s32.totalorder %v2176, %v2023
    %vm2237 = vcmp.eq.s32.totalorder %v2180, %v1554
    %vm2238 = vcmp.eq.s32.totalorder %v2180, %v2021
    %vm2239 = vcmp.eq.s32.totalorder %v2180, %v2022
    %vm2240 = vcmp.eq.s32.totalorder %v2180, %v2023
    %v2241 = vsel %vm2181, 1, 0
    %v2242 = vsel %vm2182, 1, 0
    %v2243 = vsel %vm2183, 1, 0
    %v2244 = vsel %vm2184, 1, 0
    %v2245 = vsel %vm2185, 1, 0
    %v2246 = vsel %vm2186, 1, 0
    %v2247 = vsel %vm2187, 1, 0
    %v2248 = vsel %vm2188, 1, 0
    %v2249 = vsel %vm2189, 1, 0
    %v2250 = vsel %vm2190, 1, 0
    %v2251 = vsel %vm2191, 1, 0
    %v2252 = vsel %vm2192, 1, 0
    %v2253 = vsel %vm2193, 1, 0
    %v2254 = vsel %vm2194, 1, 0
    %v2255 = vsel %vm2195, 1, 0
    %v2256 = vsel %vm2196, 1, 0
    %v2257 = vsel %vm2197, 1, 0
    %v2258 = vsel %vm2198, 1, 0
    %v2259 = vsel %vm2199, 1, 0
    %v2260 = vsel %vm2200, 1, 0
    %v2261 = vsel %vm2201, 1, 0
    %v2262 = vsel %vm2202, 1, 0
    %v2263 = vsel %vm2203, 1, 0
    %v2264 = vsel %vm2204, 1, 0
    %v2265 = vsel %vm2205, 1, 0
    %v2266 = vsel %vm2206, 1, 0
    %v2267 = vsel %vm2207, 1, 0
    %v2268 = vsel %vm2208, 1, 0
    %v2269 = vsel %vm2209, 1, 0
    %v2270 = vsel %vm2210, 1, 0
    %v2271 = vsel %vm2211, 1, 0
    %v2272 = vsel %vm2212, 1, 0
    %v2273 = vsel %vm2213, 1, 0
    %v2274 = vsel %vm2214, 1, 0
    %v2275 = vsel %vm2215, 1, 0
    %v2276 = vsel %vm2216, 1, 0
    %v2277 = vsel %vm2217, 1, 0
    %v2278 = vsel %vm2218, 1, 0
    %v2279 = vsel %vm2219, 1, 0
    %v2280 = vsel %vm2220, 1, 0
    %v2281 = vsel %vm2221, 1, 0
    %v2282 = vsel %vm2222, 1, 0
    %v2283 = vsel %vm2223, 1, 0
    %v2284 = vsel %vm2224, 1, 0
    %v2285 = vsel %vm2225, 1, 0
    %v2286 = vsel %vm2226, 1, 0
    %v2287 = vsel %vm2227, 1, 0
    %v2288 = vsel %vm2228, 1, 0
    %v2289 = vsel %vm2229, 1, 0
    %v2290 = vsel %vm2230, 1, 0
    %v2291 = vsel %vm2231, 1, 0
    %v2292 = vsel %vm2232, 1, 0
    %v2293 = vsel %vm2233, 1, 0
    %v2294 = vsel %vm2234, 1, 0
    %v2295 = vsel %vm2235, 1, 0
    %v2296 = vsel %vm2236, 1, 0
    %v2297 = vsel %vm2237, 1, 0
    %v2298 = vsel %vm2238, 1, 0
    %v2299 = vsel %vm2239, 1, 0
    %v2300 = vsel %vm2240, 1, 0
    %v2301 = vcvt.s32.f32 %v2241
    %v2302 = vcvt.s32.f32 %v2242
    %v2303 = vcvt.s32.f32 %v2243
    %v2304 = vcvt.s32.f32 %v2244
    %v2305 = vcvt.s32.f32 %v2245
    %v2306 = vcvt.s32.f32 %v2246
    %v2307 = vcvt.s32.f32 %v2247
    %v2308 = vcvt.s32.f32 %v2248
    %v2309 = vcvt.s32.f32 %v2249
    %v2310 = vcvt.s32.f32 %v2250
    %v2311 = vcvt.s32.f32 %v2251
    %v2312 = vcvt.s32.f32 %v2252
    %v2313 = vcvt.s32.f32 %v2253
    %v2314 = vcvt.s32.f32 %v2254
    %v2315 = vcvt.s32.f32 %v2255
    %v2316 = vcvt.s32.f32 %v2256
    %v2317 = vcvt.s32.f32 %v2257
    %v2318 = vcvt.s32.f32 %v2258
    %v2319 = vcvt.s32.f32 %v2259
    %v2320 = vcvt.s32.f32 %v2260
    %v2321 = vcvt.s32.f32 %v2261
    %v2322 = vcvt.s32.f32 %v2262
    %v2323 = vcvt.s32.f32 %v2263
    %v2324 = vcvt.s32.f32 %v2264
    %v2325 = vcvt.s32.f32 %v2265
    %v2326 = vcvt.s32.f32 %v2266
    %v2327 = vcvt.s32.f32 %v2267
    %v2328 = vcvt.s32.f32 %v2268
    %v2329 = vcvt.s32.f32 %v2269
    %v2330 = vcvt.s32.f32 %v2270
    %v2331 = vcvt.s32.f32 %v2271
    %v2332 = vcvt.s32.f32 %v2272
    %v2333 = vcvt.s32.f32 %v2273
    %v2334 = vcvt.s32.f32 %v2274
    %v2335 = vcvt.s32.f32 %v2275
    %v2336 = vcvt.s32.f32 %v2276
    %v2337 = vcvt.s32.f32 %v2277
    %v2338 = vcvt.s32.f32 %v2278
    %v2339 = vcvt.s32.f32 %v2279
    %v2340 = vcvt.s32.f32 %v2280
    %v2341 = vcvt.s32.f32 %v2281
    %v2342 = vcvt.s32.f32 %v2282
    %v2343 = vcvt.s32.f32 %v2283
    %v2344 = vcvt.s32.f32 %v2284
    %v2345 = vcvt.s32.f32 %v2285
    %v2346 = vcvt.s32.f32 %v2286
    %v2347 = vcvt.s32.f32 %v2287
    %v2348 = vcvt.s32.f32 %v2288
    %v2349 = vcvt.s32.f32 %v2289
    %v2350 = vcvt.s32.f32 %v2290
    %v2351 = vcvt.s32.f32 %v2291
    %v2352 = vcvt.s32.f32 %v2292
    %v2353 = vcvt.s32.f32 %v2293
    %v2354 = vcvt.s32.f32 %v2294
    %v2355 = vcvt.s32.f32 %v2295
    %v2356 = vcvt.s32.f32 %v2296
    %v2357 = vcvt.s32.f32 %v2297
    %v2358 = vcvt.s32.f32 %v2298
    %v2359 = vcvt.s32.f32 %v2299
    %v2360 = vcvt.s32.f32 %v2300
    %2361 = vset.pattern.permute.xlu0 0
    %2362 = vperm.xlu0 %2361, %v18
    %v2363 = vpop.permute.xlu0 %2362
    %2366 = vset.pattern.permute.xlu0 0
    %2367 = vperm.xlu0 %2366, %v19
    %v2368 = vpop.permute.xlu0 %2367
    %2371 = vset.pattern.permute.xlu0 0
    %2372 = vperm.xlu0 %2371, %v20
    %v2373 = vpop.permute.xlu0 %2372
    %2376 = vset.pattern.permute.xlu0 0
    %2377 = vperm.xlu0 %2376, %v21
    %v2378 = vpop.permute.xlu0 %2377
    %v2380 = vmul.f32 %v2301, %v2363
    %v2381 = vmul.f32 %v2302, %v2368
    %v2382 = vmul.f32 %v2303, %v2373
    %v2383 = vmul.f32 %v2304, %v2378
    %v2384 = vmul.f32 %v2305, %v2363
    %v2385 = vmul.f32 %v2306, %v2368
    %v2386 = vmul.f32 %v2307, %v2373
    %v2387 = vmul.f32 %v2308, %v2378
    %v2388 = vmul.f32 %v2309, %v2363
    %v2389 = vmul.f32 %v2310, %v2368
    %v2390 = vmul.f32 %v2311, %v2373
    %v2391 = vmul.f32 %v2312, %v2378
    %v2392 = vmul.f32 %v2313, %v2363
    %v2393 = vmul.f32 %v2314, %v2368
    %v2394 = vmul.f32 %v2315, %v2373
    %v2395 = vmul.f32 %v2316, %v2378
    %v2396 = vmul.f32 %v2317, %v2363
    %v2397 = vmul.f32 %v2318, %v2368
    %v2398 = vmul.f32 %v2319, %v2373
    %v2399 = vmul.f32 %v2320, %v2378
    %v2400 = vmul.f32 %v2321, %v2363
    %v2401 = vmul.f32 %v2322, %v2368
    %v2402 = vmul.f32 %v2323, %v2373
    %v2403 = vmul.f32 %v2324, %v2378
    %v2404 = vmul.f32 %v2325, %v2363
    %v2405 = vmul.f32 %v2326, %v2368
    %v2406 = vmul.f32 %v2327, %v2373
    %v2407 = vmul.f32 %v2328, %v2378
    %v2408 = vmul.f32 %v2329, %v2363
    %v2409 = vmul.f32 %v2330, %v2368
    %v2410 = vmul.f32 %v2331, %v2373
    %v2411 = vmul.f32 %v2332, %v2378
    %v2412 = vmul.f32 %v2333, %v2363
    %v2413 = vmul.f32 %v2334, %v2368
    %v2414 = vmul.f32 %v2335, %v2373
    %v2415 = vmul.f32 %v2336, %v2378
    %v2416 = vmul.f32 %v2337, %v2363
    %v2417 = vmul.f32 %v2338, %v2368
    %v2418 = vmul.f32 %v2339, %v2373
    %v2419 = vmul.f32 %v2340, %v2378
    %v2420 = vmul.f32 %v2341, %v2363
    %v2421 = vmul.f32 %v2342, %v2368
    %v2422 = vmul.f32 %v2343, %v2373
    %v2423 = vmul.f32 %v2344, %v2378
    %v2424 = vmul.f32 %v2345, %v2363
    %v2425 = vmul.f32 %v2346, %v2368
    %v2426 = vmul.f32 %v2347, %v2373
    %v2427 = vmul.f32 %v2348, %v2378
    %v2428 = vmul.f32 %v2349, %v2363
    %v2429 = vmul.f32 %v2350, %v2368
    %v2430 = vmul.f32 %v2351, %v2373
    %v2431 = vmul.f32 %v2352, %v2378
    %v2432 = vmul.f32 %v2353, %v2363
    %v2433 = vmul.f32 %v2354, %v2368
    %v2434 = vmul.f32 %v2355, %v2373
    %v2435 = vmul.f32 %v2356, %v2378
    %v2436 = vmul.f32 %v2357, %v2363
    %v2437 = vmul.f32 %v2358, %v2368
    %v2438 = vmul.f32 %v2359, %v2373
    %v2439 = vmul.f32 %v2360, %v2378
    %v2440 = vsel %vm1994, %v2380, 0.0
    %v2441 = vsel %vm1994, %v2381, 0.0
    %v2442 = vadd.f32 %v2440, %v2441
    %v2443 = vsel %vm1994, %v2382, 0.0
    %v2444 = vadd.f32 %v2442, %v2443
    %vm2445 = vcmask 253952
    %v2446 = vsel %vm2445, %v2383, 0.0
    %v2447 = vadd.f32 %v2444, %v2446
    %v2448 = vrot.slane %v2447, 4
    %v2449 = vadd.f32 %v2447, %v2448
    %v2450 = vrot.slane %v2449, 2
    %v2451 = vadd.f32 %v2449, %v2450
    %v2452 = vrot.slane %v2451, 1
    %v2453 = vadd.f32 %v2451, %v2452
    %v2454 = vsel %vm1994, %v2384, 0.0
    %v2455 = vsel %vm1994, %v2385, 0.0
    %v2456 = vadd.f32 %v2454, %v2455
    %v2457 = vsel %vm1994, %v2386, 0.0
    %v2458 = vadd.f32 %v2456, %v2457
    %v2459 = vsel %vm2445, %v2387, 0.0
    %v2460 = vadd.f32 %v2458, %v2459
    %v2461 = vrot.slane %v2460, 4
    %v2462 = vadd.f32 %v2460, %v2461
    %v2463 = vrot.slane %v2462, 2
    %v2464 = vadd.f32 %v2462, %v2463
    %v2465 = vrot.slane %v2464, 1
    %v2466 = vadd.f32 %v2464, %v2465
    %v2467 = vsel %vm1994, %v2388, 0.0
    %v2468 = vsel %vm1994, %v2389, 0.0
    %v2469 = vadd.f32 %v2467, %v2468
    %v2470 = vsel %vm1994, %v2390, 0.0
    %v2471 = vadd.f32 %v2469, %v2470
    %v2472 = vsel %vm2445, %v2391, 0.0
    %v2473 = vadd.f32 %v2471, %v2472
    %v2474 = vrot.slane %v2473, 4
    %v2475 = vadd.f32 %v2473, %v2474
    %v2476 = vrot.slane %v2475, 2
    %v2477 = vadd.f32 %v2475, %v2476
    %v2478 = vrot.slane %v2477, 1
    %v2479 = vadd.f32 %v2477, %v2478
    %v2480 = vsel %vm1994, %v2392, 0.0
    %v2481 = vsel %vm1994, %v2393, 0.0
    %v2482 = vadd.f32 %v2480, %v2481
    %v2483 = vsel %vm1994, %v2394, 0.0
    %v2484 = vadd.f32 %v2482, %v2483
    %v2485 = vsel %vm2445, %v2395, 0.0
    %v2486 = vadd.f32 %v2484, %v2485
    %v2487 = vrot.slane %v2486, 4
    %v2488 = vadd.f32 %v2486, %v2487
    %v2489 = vrot.slane %v2488, 2
    %v2490 = vadd.f32 %v2488, %v2489
    %v2491 = vrot.slane %v2490, 1
    %v2492 = vadd.f32 %v2490, %v2491
    %v2493 = vsel %vm1994, %v2396, 0.0
    %v2494 = vsel %vm1994, %v2397, 0.0
    %v2495 = vadd.f32 %v2493, %v2494
    %v2496 = vsel %vm1994, %v2398, 0.0
    %v2497 = vadd.f32 %v2495, %v2496
    %v2498 = vsel %vm2445, %v2399, 0.0
    %v2499 = vadd.f32 %v2497, %v2498
    %v2500 = vrot.slane %v2499, 4
    %v2501 = vadd.f32 %v2499, %v2500
    %v2502 = vrot.slane %v2501, 2
    %v2503 = vadd.f32 %v2501, %v2502
    %v2504 = vrot.slane %v2503, 1
    %v2505 = vadd.f32 %v2503, %v2504
    %v2506 = vsel %vm1994, %v2400, 0.0
    %v2507 = vsel %vm1994, %v2401, 0.0
    %v2508 = vadd.f32 %v2506, %v2507
    %v2509 = vsel %vm1994, %v2402, 0.0
    %v2510 = vadd.f32 %v2508, %v2509
    %v2511 = vsel %vm2445, %v2403, 0.0
    %v2512 = vadd.f32 %v2510, %v2511
    %v2513 = vrot.slane %v2512, 4
    %v2514 = vadd.f32 %v2512, %v2513
    %v2515 = vrot.slane %v2514, 2
    %v2516 = vadd.f32 %v2514, %v2515
    %v2517 = vrot.slane %v2516, 1
    %v2518 = vadd.f32 %v2516, %v2517
    %v2519 = vsel %vm1994, %v2404, 0.0
    %v2520 = vsel %vm1994, %v2405, 0.0
    %v2521 = vadd.f32 %v2519, %v2520
    %v2522 = vsel %vm1994, %v2406, 0.0
    %v2523 = vadd.f32 %v2521, %v2522
    %v2524 = vsel %vm2445, %v2407, 0.0
    %v2525 = vadd.f32 %v2523, %v2524
    %v2526 = vrot.slane %v2525, 4
    %v2527 = vadd.f32 %v2525, %v2526
    %v2528 = vrot.slane %v2527, 2
    %v2529 = vadd.f32 %v2527, %v2528
    %v2530 = vrot.slane %v2529, 1
    %v2531 = vadd.f32 %v2529, %v2530
    %v2532 = vsel %vm1994, %v2408, 0.0
    %v2533 = vsel %vm1994, %v2409, 0.0
    %v2534 = vadd.f32 %v2532, %v2533
    %v2535 = vsel %vm1994, %v2410, 0.0
    %v2536 = vadd.f32 %v2534, %v2535
    %v2537 = vsel %vm2445, %v2411, 0.0
    %v2538 = vadd.f32 %v2536, %v2537
    %v2539 = vrot.slane %v2538, 4
    %v2540 = vadd.f32 %v2538, %v2539
    %v2541 = vrot.slane %v2540, 2
    %v2542 = vadd.f32 %v2540, %v2541
    %v2543 = vrot.slane %v2542, 1
    %v2544 = vadd.f32 %v2542, %v2543
    %v2545 = vsel %vm1994, %v2412, 0.0
    %v2546 = vsel %vm1994, %v2413, 0.0
    %v2547 = vadd.f32 %v2545, %v2546
    %v2548 = vsel %vm1994, %v2414, 0.0
    %v2549 = vadd.f32 %v2547, %v2548
    %v2550 = vsel %vm2445, %v2415, 0.0
    %v2551 = vadd.f32 %v2549, %v2550
    %v2552 = vrot.slane %v2551, 4
    %v2553 = vadd.f32 %v2551, %v2552
    %v2554 = vrot.slane %v2553, 2
    %v2555 = vadd.f32 %v2553, %v2554
    %v2556 = vrot.slane %v2555, 1
    %v2557 = vadd.f32 %v2555, %v2556
    %v2558 = vsel %vm1994, %v2416, 0.0
    %v2559 = vsel %vm1994, %v2417, 0.0
    %v2560 = vadd.f32 %v2558, %v2559
    %v2561 = vsel %vm1994, %v2418, 0.0
    %v2562 = vadd.f32 %v2560, %v2561
    %v2563 = vsel %vm2445, %v2419, 0.0
    %v2564 = vadd.f32 %v2562, %v2563
    %v2565 = vrot.slane %v2564, 4
    %v2566 = vadd.f32 %v2564, %v2565
    %v2567 = vrot.slane %v2566, 2
    %v2568 = vadd.f32 %v2566, %v2567
    %v2569 = vrot.slane %v2568, 1
    %v2570 = vadd.f32 %v2568, %v2569
    %v2571 = vsel %vm1994, %v2420, 0.0
    %v2572 = vsel %vm1994, %v2421, 0.0
    %v2573 = vadd.f32 %v2571, %v2572
    %v2574 = vsel %vm1994, %v2422, 0.0
    %v2575 = vadd.f32 %v2573, %v2574
    %v2576 = vsel %vm2445, %v2423, 0.0
    %v2577 = vadd.f32 %v2575, %v2576
    %v2578 = vrot.slane %v2577, 4
    %v2579 = vadd.f32 %v2577, %v2578
    %v2580 = vrot.slane %v2579, 2
    %v2581 = vadd.f32 %v2579, %v2580
    %v2582 = vrot.slane %v2581, 1
    %v2583 = vadd.f32 %v2581, %v2582
    %v2584 = vsel %vm1994, %v2424, 0.0
    %v2585 = vsel %vm1994, %v2425, 0.0
    %v2586 = vadd.f32 %v2584, %v2585
    %v2587 = vsel %vm1994, %v2426, 0.0
    %v2588 = vadd.f32 %v2586, %v2587
    %v2589 = vsel %vm2445, %v2427, 0.0
    %v2590 = vadd.f32 %v2588, %v2589
    %v2591 = vrot.slane %v2590, 4
    %v2592 = vadd.f32 %v2590, %v2591
    %v2593 = vrot.slane %v2592, 2
    %v2594 = vadd.f32 %v2592, %v2593
    %v2595 = vrot.slane %v2594, 1
    %v2596 = vadd.f32 %v2594, %v2595
    %v2597 = vsel %vm1994, %v2428, 0.0
    %v2598 = vsel %vm1994, %v2429, 0.0
    %v2599 = vadd.f32 %v2597, %v2598
    %v2600 = vsel %vm1994, %v2430, 0.0
    %v2601 = vadd.f32 %v2599, %v2600
    %v2602 = vsel %vm2445, %v2431, 0.0
    %v2603 = vadd.f32 %v2601, %v2602
    %v2604 = vrot.slane %v2603, 4
    %v2605 = vadd.f32 %v2603, %v2604
    %v2606 = vrot.slane %v2605, 2
    %v2607 = vadd.f32 %v2605, %v2606
    %v2608 = vrot.slane %v2607, 1
    %v2609 = vadd.f32 %v2607, %v2608
    %v2610 = vsel %vm1994, %v2432, 0.0
    %v2611 = vsel %vm1994, %v2433, 0.0
    %v2612 = vadd.f32 %v2610, %v2611
    %v2613 = vsel %vm1994, %v2434, 0.0
    %v2614 = vadd.f32 %v2612, %v2613
    %v2615 = vsel %vm2445, %v2435, 0.0
    %v2616 = vadd.f32 %v2614, %v2615
    %v2617 = vrot.slane %v2616, 4
    %v2618 = vadd.f32 %v2616, %v2617
    %v2619 = vrot.slane %v2618, 2
    %v2620 = vadd.f32 %v2618, %v2619
    %v2621 = vrot.slane %v2620, 1
    %v2622 = vadd.f32 %v2620, %v2621
    %v2623 = vsel %vm1994, %v2436, 0.0
    %v2624 = vsel %vm1994, %v2437, 0.0
    %v2625 = vadd.f32 %v2623, %v2624
    %v2626 = vsel %vm1994, %v2438, 0.0
    %v2627 = vadd.f32 %v2625, %v2626
    %v2628 = vsel %vm2445, %v2439, 0.0
    %v2629 = vadd.f32 %v2627, %v2628
    %v2630 = vrot.slane %v2629, 4
    %v2631 = vadd.f32 %v2629, %v2630
    %v2632 = vrot.slane %v2631, 2
    %v2633 = vadd.f32 %v2631, %v2632
    %v2634 = vrot.slane %v2633, 1
    %v2635 = vadd.f32 %v2633, %v2634
    %v2636 = vmul.f32 %v2453, %v1895
    %v2637 = vmul.f32 %v2466, %v1896
    %v2638 = vmul.f32 %v2479, %v1897
    %v2639 = vmul.f32 %v2492, %v1898
    %v2640 = vmul.f32 %v2505, %v1899
    %v2641 = vmul.f32 %v2518, %v1900
    %v2642 = vmul.f32 %v2531, %v1901
    %v2643 = vmul.f32 %v2544, %v41
    %v2644 = vmul.f32 %v2557, %v1902
    %v2645 = vmul.f32 %v2570, %v1903
    %v2646 = vmul.f32 %v2583, %v1904
    %v2647 = vmul.f32 %v2596, %v1905
    %v2648 = vmul.f32 %v2609, %v1906
    %v2649 = vmul.f32 %v2622, %v1907
    %v2650 = vmul.f32 %v2635, %v1908
    %v2666 = vrot.slane %v2637, 7
    %v2667 = vsel %vm1958, %v2666, %v2636
    %v2668 = vrot.slane %v2638, 6
    %v2669 = vsel %vm1961, %v2668, %v2667
    %v2670 = vrot.slane %v2639, 5
    %v2671 = vsel %vm1964, %v2670, %v2669
    %v2672 = vrot.slane %v2640, 4
    %v2673 = vsel %vm1967, %v2672, %v2671
    %v2674 = vrot.slane %v2641, 3
    %v2675 = vsel %vm1970, %v2674, %v2673
    %v2676 = vrot.slane %v2642, 2
    %v2677 = vsel %vm1973, %v2676, %v2675
    %v2678 = vrot.slane %v2643, 1
    %v2679 = vsel %vm1976, %v2678, %v2677
    %v2680 = vrot.slane %v2645, 7
    %v2681 = vsel %vm1958, %v2680, %v2644
    %v2682 = vrot.slane %v2646, 6
    %v2683 = vsel %vm1961, %v2682, %v2681
    %v2684 = vrot.slane %v2647, 5
    %v2685 = vsel %vm1964, %v2684, %v2683
    %v2686 = vrot.slane %v2648, 4
    %v2687 = vsel %vm1967, %v2686, %v2685
    %v2688 = vrot.slane %v2649, 3
    %v2689 = vsel %vm1970, %v2688, %v2687
    %v2690 = vrot.slane %v2650, 2
    %v2691 = vsel %vm1973, %v2690, %v2689
    %v2694 = vsel %vm1994, %v2679, 0.0
    %vm2695 = vcmask 260096
    %v2696 = vsel %vm2695, %v2691, 0.0
    %v2697 = vadd.f32 %v2694, %v2696
    %v2698 = vrot.slane %v2697, 4
    %v2699 = vadd.f32 %v2697, %v2698
    %v2700 = vrot.slane %v2699, 2
    %v2701 = vadd.f32 %v2699, %v2700
    %v2702 = vrot.slane %v2701, 1
    %v2703 = vadd.f32 %v2701, %v2702
    %v2704 = vadd.f32 %v2012, %v2703
    %v2705 = vsel %vm1994, %v40, 0.0
    %v2706 = vsel %vm1994, %v41, 0.0
    %v2707 = vadd.f32 %v2705, %v2706
    %v2708 = vrot.slane %v2707, 4
    %v2709 = vadd.f32 %v2707, %v2708
    %v2710 = vrot.slane %v2709, 2
    %v2711 = vadd.f32 %v2709, %v2710
    %v2712 = vrot.slane %v2711, 1
    %v2713 = vadd.f32 %v2711, %v2712
    %v2714 = vcvt.f32.s32.to.zero.pseudo %v2713
    %v2715 = vsub.s32 %v2714, 1
    %vm2716 = vcmp.eq.s32.totalorder %v1554, %v2715
    %vm2717 = vcmp.eq.s32.totalorder %v2021, %v2715
    %v2718 = vsel %vm2716, 1, 0
    %v2719 = vsel %vm2717, 1, 0
    %v2720 = vcvt.s32.f32 %v2718
    %v2721 = vcvt.s32.f32 %v2719
    %v2724 = vcombine.high %v2720, %v2720
    %v2726 = vunpack.c.l.s4 1966171168
    %v2727 = vunpack.c.0.s8 %v2726
    %v2728 = vlaneseq
    %v2729 = vshrl.u32 %v2728, 7
    %v2730 = vsub.s32 %v2727, %v2729
    %v2731 = vrot.slane %v2720, %v2730
    %v2733 = vunpack.c.l.s4 1966171168
    %v2734 = vunpack.c.0.s8 %v2733
    %v2735 = vlaneseq
    %v2736 = vshrl.u32 %v2735, 7
    %v2737 = vsub.s32 %v2734, %v2736
    %v2738 = vrot.slane %v2724, %v2737
    %v2739 = vcombine.high %v2731, %v2731
    %v2740 = vcombine.high %v2738, %v2738
    %v2742 = vunpack.c.l.s4 1966171168
    %v2743 = vunpack.c.0.s8 %v2742
    %v2744 = vlaneseq
    %v2745 = vshrl.u32 %v2744, 7
    %v2746 = vsub.s32 %v2743, %v2745
    %v2747 = vrot.slane %v2731, %v2746
    %v2749 = vunpack.c.l.s4 1966171168
    %v2750 = vunpack.c.0.s8 %v2749
    %v2751 = vlaneseq
    %v2752 = vshrl.u32 %v2751, 7
    %v2753 = vsub.s32 %v2750, %v2752
    %v2754 = vrot.slane %v2738, %v2753
    %v2756 = vunpack.c.l.s4 1966171168
    %v2757 = vunpack.c.0.s8 %v2756
    %v2758 = vlaneseq
    %v2759 = vshrl.u32 %v2758, 7
    %v2760 = vsub.s32 %v2757, %v2759
    %v2761 = vrot.slane %v2739, %v2760
    %v2763 = vunpack.c.l.s4 1966171168
    %v2764 = vunpack.c.0.s8 %v2763
    %v2765 = vlaneseq
    %v2766 = vshrl.u32 %v2765, 7
    %v2767 = vsub.s32 %v2764, %v2766
    %v2768 = vrot.slane %v2740, %v2767
    %v2769 = vcombine.high %v2747, %v2747
    %v2770 = vcombine.high %v2754, %v2754
    %v2771 = vcombine.high %v2761, %v2761
    %v2772 = vcombine.high %v2768, %v2768
    %v2773 = vcombine.high %v2721, %v2721
    %v2775 = vunpack.c.l.s4 1966171168
    %v2776 = vunpack.c.0.s8 %v2775
    %v2777 = vlaneseq
    %v2778 = vshrl.u32 %v2777, 7
    %v2779 = vsub.s32 %v2776, %v2778
    %v2780 = vrot.slane %v2721, %v2779
    %v2782 = vunpack.c.l.s4 1966171168
    %v2783 = vunpack.c.0.s8 %v2782
    %v2784 = vlaneseq
    %v2785 = vshrl.u32 %v2784, 7
    %v2786 = vsub.s32 %v2783, %v2785
    %v2787 = vrot.slane %v2773, %v2786
    %v2788 = vcombine.high %v2780, %v2780
    %v2789 = vcombine.high %v2787, %v2787
    %v2791 = vunpack.c.l.s4 1966171168
    %v2792 = vunpack.c.0.s8 %v2791
    %v2793 = vlaneseq
    %v2794 = vshrl.u32 %v2793, 7
    %v2795 = vsub.s32 %v2792, %v2794
    %v2796 = vrot.slane %v2780, %v2795
    %v2798 = vunpack.c.l.s4 1966171168
    %v2799 = vunpack.c.0.s8 %v2798
    %v2800 = vlaneseq
    %v2801 = vshrl.u32 %v2800, 7
    %v2802 = vsub.s32 %v2799, %v2801
    %v2803 = vrot.slane %v2787, %v2802
    %v2805 = vunpack.c.l.s4 1966171168
    %v2806 = vunpack.c.0.s8 %v2805
    %v2807 = vlaneseq
    %v2808 = vshrl.u32 %v2807, 7
    %v2809 = vsub.s32 %v2806, %v2808
    %v2810 = vrot.slane %v2788, %v2809
    %v2812 = vunpack.c.l.s4 1966171168
    %v2813 = vunpack.c.0.s8 %v2812
    %v2814 = vlaneseq
    %v2815 = vshrl.u32 %v2814, 7
    %v2816 = vsub.s32 %v2813, %v2815
    %v2817 = vrot.slane %v2789, %v2816
    %v2818 = vcombine.high %v2796, %v2796
    %v2819 = vcombine.high %v2803, %v2803
    %v2820 = vcombine.high %v2810, %v2810
    %v2821 = vcombine.high %v2817, %v2817
    %v2822 = vlaneseq
    %v2823 = vshrl.u32 %v2822, 7
    %v2824 = vsub.s32 0, %v2823
    %v2825 = vrot.slane %v2747, %v2824
    %v2826 = vlaneseq
    %v2827 = vshrl.u32 %v2826, 7
    %v2828 = vsub.s32 0, %v2827
    %v2829 = vrot.slane %v2761, %v2828
    %v2830 = vlaneseq
    %v2831 = vshrl.u32 %v2830, 7
    %v2832 = vsub.s32 0, %v2831
    %v2833 = vrot.slane %v2769, %v2832
    %v2834 = vlaneseq
    %v2835 = vshrl.u32 %v2834, 7
    %v2836 = vsub.s32 0, %v2835
    %v2837 = vrot.slane %v2771, %v2836
    %v2838 = vlaneseq
    %v2839 = vshrl.u32 %v2838, 7
    %v2840 = vsub.s32 0, %v2839
    %v2841 = vrot.slane %v2754, %v2840
    %v2842 = vlaneseq
    %v2843 = vshrl.u32 %v2842, 7
    %v2844 = vsub.s32 0, %v2843
    %v2845 = vrot.slane %v2768, %v2844
    %v2846 = vlaneseq
    %v2847 = vshrl.u32 %v2846, 7
    %v2848 = vsub.s32 0, %v2847
    %v2849 = vrot.slane %v2770, %v2848
    %v2850 = vlaneseq
    %v2851 = vshrl.u32 %v2850, 7
    %v2852 = vsub.s32 0, %v2851
    %v2853 = vrot.slane %v2772, %v2852
    %v2854 = vlaneseq
    %v2855 = vshrl.u32 %v2854, 7
    %v2856 = vsub.s32 0, %v2855
    %v2857 = vrot.slane %v2796, %v2856
    %v2858 = vlaneseq
    %v2859 = vshrl.u32 %v2858, 7
    %v2860 = vsub.s32 0, %v2859
    %v2861 = vrot.slane %v2810, %v2860
    %v2862 = vlaneseq
    %v2863 = vshrl.u32 %v2862, 7
    %v2864 = vsub.s32 0, %v2863
    %v2865 = vrot.slane %v2818, %v2864
    %v2866 = vlaneseq
    %v2867 = vshrl.u32 %v2866, 7
    %v2868 = vsub.s32 0, %v2867
    %v2869 = vrot.slane %v2820, %v2868
    %v2870 = vlaneseq
    %v2871 = vshrl.u32 %v2870, 7
    %v2872 = vsub.s32 0, %v2871
    %v2873 = vrot.slane %v2803, %v2872
    %v2874 = vlaneseq
    %v2875 = vshrl.u32 %v2874, 7
    %v2876 = vsub.s32 0, %v2875
    %v2877 = vrot.slane %v2817, %v2876
    %v2878 = vlaneseq
    %v2879 = vshrl.u32 %v2878, 7
    %v2880 = vsub.s32 0, %v2879
    %v2881 = vrot.slane %v2819, %v2880
    %v2882 = vlaneseq
    %v2883 = vshrl.u32 %v2882, 7
    %v2884 = vsub.s32 0, %v2883
    %v2885 = vrot.slane %v2821, %v2884
    %v2902 = vmul.f32 %v1749, %v2825
    %v2903 = vmul.f32 %v1750, %v2829
    %v2904 = vmul.f32 %v1751, %v2833
    %v2905 = vmul.f32 %v1752, %v2837
    %v2906 = vmul.f32 %v1753, %v2841
    %v2907 = vmul.f32 %v1754, %v2845
    %v2908 = vmul.f32 %v1755, %v2849
    %v2909 = vmul.f32 %v1756, %v2853
    %v2910 = vmul.f32 %v1757, %v2857
    %v2911 = vmul.f32 %v1758, %v2861
    %v2912 = vmul.f32 %v1759, %v2865
    %v2913 = vmul.f32 %v1760, %v2869
    %v2914 = vmul.f32 %v1761, %v2873
    %v2915 = vmul.f32 %v1762, %v2877
    %v2916 = vmul.f32 %v1763, %v2881
    %v2917 = vmul.f32 %v1764, %v2885
    %v2918 = vsel %vm50, %v2902, 0.0
    %v2919 = vsel %vm50, %v2903, 0.0
    %v2920 = vadd.f32 %v2918, %v2919
    %v2921 = vsel %vm50, %v2904, 0.0
    %v2922 = vadd.f32 %v2920, %v2921
    %v2923 = vsel %vm50, %v2905, 0.0
    %v2924 = vadd.f32 %v2922, %v2923
    %v2925 = vsel %vm50, %v2906, 0.0
    %v2926 = vadd.f32 %v2924, %v2925
    %v2927 = vsel %vm50, %v2907, 0.0
    %v2928 = vadd.f32 %v2926, %v2927
    %v2929 = vsel %vm50, %v2908, 0.0
    %v2930 = vadd.f32 %v2928, %v2929
    %v2931 = vsel %vm50, %v2909, 0.0
    %v2932 = vadd.f32 %v2930, %v2931
    %v2933 = vsel %vm50, %v2910, 0.0
    %v2934 = vadd.f32 %v2932, %v2933
    %v2935 = vsel %vm50, %v2911, 0.0
    %v2936 = vadd.f32 %v2934, %v2935
    %v2937 = vsel %vm50, %v2912, 0.0
    %v2938 = vadd.f32 %v2936, %v2937
    %v2939 = vsel %vm50, %v2913, 0.0
    %v2940 = vadd.f32 %v2938, %v2939
    %v2941 = vsel %vm50, %v2914, 0.0
    %v2942 = vadd.f32 %v2940, %v2941
    %v2943 = vsel %vm50, %v2915, 0.0
    %v2944 = vadd.f32 %v2942, %v2943
    %v2945 = vsel %vm50, %v2916, 0.0
    %v2946 = vadd.f32 %v2944, %v2945
    %v2947 = vsel %vm50, %v2917, 0.0
    %v2948 = vadd.f32 %v2946, %v2947
    %v2949 = vmul.f32 %v1530, %v2948
    %v2950 = vsel %vm50, %v2949, 0.0
    %v2951 = vrot.slane %v2950, 4
    %v2952 = vadd.f32 %v2950, %v2951
    %v2953 = vrot.slane %v2952, 2
    %v2954 = vadd.f32 %v2952, %v2953
    %v2955 = vrot.slane %v2954, 1
    %v2956 = vadd.f32 %v2954, %v2955
    %v2957 = vadd.f32 %v2704, %v2956
    %v2958 = vsub.f32 %v2957, %v1552
    %2959 = vst.msk [vmem:[#allocation2] sm:$0x1] %vm2445, %v2958
    // Predicated region
    $region18: #{tpu_custom_call.1} parent=1 // pred_check
      _
    $region19: #{tpu_custom_call.1} parent=1 // pred_check_branch
      %2961 = sbr.rel (0) target = $region21
    $region20: #{tpu_custom_call.1} parent=1 // pred_region
      %s2963 = ssub.s32 16, 16
      %2964 = vsyncadd [#allocation3], %s2963
      %s2966 = sshll.u32 [#allocation2], 4
      %s2967 = int_to_ptr.vmem [resolvable:$true] %s2966
      %2969 = dma.vmem_to_hbm [thread:$0]  %s2967, 16, %s4, [#allocation3]
    $region21: #{tpu_custom_call.1} parent=1 // pred_fallthru
      _
    // Predicated region
    $region22: #{tpu_custom_call.1} parent=1 // pred_check
      _
    $region23: #{tpu_custom_call.1} parent=1 // pred_check_branch
      %2971 = sbr.rel (0) target = $region25
    $region24: #{tpu_custom_call.1} parent=1 // pred_region
      %2972 = dma.done [#allocation3], 16
    $region25: #{tpu_custom_call.1} parent=1 // pred_fallthru
      _
    %2973 = vsyncpa [#allocation3], 1

</llo_original>
